<compile_context>
chip_gen: v7x
topology: tpu7x:2x2x1
jax: 0.10.0
libtpu: 0.0.40
codegen_flags: <defaults>
</compile_context>

<pallas_src>
import jax
import jax.numpy as jnp
from jax.experimental import pallas as pl
from jax.experimental.pallas import tpu as pltpu


HIDDEN = 512


def _softplus(x):
    # numerically-stable softplus, matches torch.nn.Softplus (beta=1)
    return jnp.maximum(x, 0.0) + jnp.log1p(jnp.exp(-jnp.abs(x)))


def _round_up(x, m):
    return (x + m - 1) // m * m


def transition_kernel(
    state_ref, action_ref,                 # (tb, sd), (tb, ad) activation tiles
    w1st_ref, w1ac_ref, b1_ref,            # fused layer-1 (rows split state/action)
    w2m_ref, b2m_ref,                      # mean-branch layer-2
    w2s_ref, b2s_ref,                      # std-branch  layer-2
    w3_ref, b3_ref,                        # block-diagonal fused layer-3 (2H, 2*out)
    out_ref,                               # (tb, 2*out): [mean | std]
):
    out_dim = out_ref.shape[1] // 2
    cdt = w1st_ref.dtype                   # compute dtype for MXU inputs (bf16)

    state = state_ref[...].astype(cdt)
    action = action_ref[...].astype(cdt)

    # ---- layer 1, both branches at once: (tb, 2*HIDDEN), f32 accumulate ----
    # (two small-K dots instead of a lane-unaligned concat; micro-cost only)
    h1 = (
        jnp.dot(state, w1st_ref[...], preferred_element_type=jnp.float32)
        + jnp.dot(action, w1ac_ref[...], preferred_element_type=jnp.float32)
        + b1_ref[...]
    )
    h1 = jnp.maximum(h1, 0.0)
    h = h1[:, :HIDDEN].astype(cdt)         # mean branch activations
    g = h1[:, HIDDEN:].astype(cdt)         # std branch activations

    # ---- layer 2, branch-specific 512x512 matmuls, f32 bias/ReLU ----
    h2 = jnp.dot(h, w2m_ref[...], preferred_element_type=jnp.float32) + b2m_ref[...]
    h2 = jnp.maximum(h2, 0.0).astype(cdt)
    g2 = jnp.dot(g, w2s_ref[...], preferred_element_type=jnp.float32) + b2s_ref[...]
    g2 = jnp.maximum(g2, 0.0).astype(cdt)

    # ---- layer 3, both branches fused via block-diagonal weight ----
    # [h2 | g2] (tb, 2H) @ blockdiag(w3m, w3s) (2H, 2*out) -> mean cols [:out],
    # raw std cols [out:] of the SAME rows: one matmul, one lane-contiguous store.
    hg = jnp.concatenate([h2, g2], axis=1)                     # lane-aligned concat
    o = jnp.dot(hg, w3_ref[...], preferred_element_type=jnp.float32) + b3_ref[...]

    col = jax.lax.broadcasted_iota(jnp.int32, o.shape, 1)
    res = jnp.where(col < out_dim, o, _softplus(o) + 1e-6)
    out_ref[...] = res.astype(out_ref.dtype)


def pack_params(params, state_dim, weight_dtype=jnp.bfloat16):
    """One-time packing: fuse layer-1/layer-3 weights across branches, cast to bf16.

    Biases stay f32 (added after f32 accumulation). Layer-3 is stored
    block-diagonally so mean/std land directly in their output columns."""
    (w1m, b1m), (w2m, b2m), (w3m, b3m) = params["mean"]
    (w1s, b1s), (w2s, b2s), (w3s, b3s) = params["std"]

    out_dim = int(w3m.shape[1])
    w1_cat = jnp.concatenate([w1m, w1s], axis=1)               # (in, 2H)

    w3_bd = jnp.zeros((2 * HIDDEN, 2 * out_dim), jnp.float32)
    w3_bd = w3_bd.at[:HIDDEN, :out_dim].set(w3m)
    w3_bd = w3_bd.at[HIDDEN:, out_dim:].set(w3s)

    packed = {
        "w1_state": w1_cat[:state_dim].astype(weight_dtype),   # (sd, 2H)
        "w1_action": w1_cat[state_dim:].astype(weight_dtype),  # (ad, 2H)
        "b1": jnp.concatenate([b1m, b1s]).reshape(1, -1).astype(jnp.float32),
        "w2m": w2m.astype(weight_dtype),
        "b2m": b2m.reshape(1, -1).astype(jnp.float32),
        "w2s": w2s.astype(weight_dtype),
        "b2s": b2s.reshape(1, -1).astype(jnp.float32),
        "w3": w3_bd.astype(weight_dtype),                      # (2H, 2*out) block-diag
        "b3": jnp.concatenate([b3m, b3s]).reshape(1, -1).astype(jnp.float32),
        "out_dim": out_dim,
    }
    return packed


def transition_network_forward(state, action, packed, *, block_b=128):
    """Returns (mean, std) of the predicted Normal distribution."""
    B, state_dim = state.shape
    action_dim = action.shape[1]
    out_dim = packed["out_dim"]

    # Batch tiling: tile is a multiple of 16 (bf16 sublane pack); pad batch up.
    block_b = _round_up(max(block_b, 16), 16)
    tb = min(block_b, _round_up(B, 16))
    b_pad = _round_up(B, tb)
    if b_pad != B:
        state = jnp.pad(state, ((0, b_pad - B), (0, 0)))
        action = jnp.pad(action, ((0, b_pad - B), (0, 0)))
    nb = b_pad // tb

    weight_keys = ["w1_state", "w1_action", "b1", "w2m", "b2m", "w2s", "b2s", "w3", "b3"]
    args = [state, action] + [packed[k] for k in weight_keys]

    const2 = lambda i: (0, 0)              # weights: same block every grid step
    batch2 = lambda i: (i, 0)              # activations/output: stream per step
    in_specs = [
        pl.BlockSpec((tb, state_dim), batch2),
        pl.BlockSpec((tb, action_dim), batch2),
    ] + [pl.BlockSpec(packed[k].shape, const2) for k in weight_keys]
    out_specs = pl.BlockSpec((tb, 2 * out_dim), batch2)

    flops = 2 * b_pad * (
        (state_dim + action_dim) * 2 * HIDDEN   # fused layer 1
        + 2 * HIDDEN * HIDDEN                   # two layer-2 matmuls
        + 2 * HIDDEN * 2 * out_dim              # fused block-diag layer 3
    )
    weight_bytes = sum(int(packed[k].size) * packed[k].dtype.itemsize for k in weight_keys)
    bytes_accessed = (
        weight_bytes
        + int(state.size) * state.dtype.itemsize
        + int(action.size) * action.dtype.itemsize
        + b_pad * 2 * out_dim * 4
    )

    full = pl.pallas_call(
        transition_kernel,
        grid=(nb,),
        in_specs=in_specs,
        out_specs=out_specs,
        out_shape=jax.ShapeDtypeStruct((b_pad, 2 * out_dim), jnp.float32),
        compiler_params=pltpu.CompilerParams(
            dimension_semantics=("parallel",),   # batch tiles split across TCs on v7x
        ),
        cost_estimate=pl.CostEstimate(
            flops=flops,
            transcendentals=2 * b_pad * 2 * out_dim,   # exp/log1p in softplus
            bytes_accessed=bytes_accessed,
        ),
    )(*args)

    mean = full[:B, :out_dim]
    std = full[:B, out_dim:]
    return mean, std


def init_params(key, input_dim, output_dim):
    """Deterministic init mimicking nn.Linear default (uniform +/- 1/sqrt(fan_in)).

    Weights stored as (in_features, out_features) so each layer is x @ W + b."""
    hs = [HIDDEN, HIDDEN]
    dims = [(input_dim, hs[0]), (hs[0], hs[1]), (hs[1], output_dim)]
    params = {}
    for branch in ("mean", "std"):
        layers = []
        for (fan_in, fan_out) in dims:
            key, kw, kb = jax.random.split(key, 3)
            bound = 1.0 / jnp.sqrt(fan_in)
            w = jax.random.uniform(kw, (fan_in, fan_out), jnp.float32, -bound, bound)
            b = jax.random.uniform(kb, (fan_out,), jnp.float32, -bound, bound)
            layers.append((w, b))
        params[branch] = layers
    return params


def _reference_forward(state, action, params):
    """Pure-JAX f32 reference of the PyTorch forward (for tolerance check)."""
    x = jnp.concatenate([state, action], axis=1)

    def mlp(x, layers):
        (w1, b1), (w2, b2), (w3, b3) = layers
        h = jnp.maximum(x @ w1 + b1, 0.0)
        h = jnp.maximum(h @ w2 + b2, 0.0)
        return h @ w3 + b3

    u = mlp(x, params["mean"])
    s = mlp(x, params["std"])
    std = jnp.logaddexp(s, 0.0) + 1e-6   # softplus + eps
    return u, std


if __name__ == "__main__":
    key = jax.random.PRNGKey(0)
    kp, ks, ka = jax.random.split(key, 3)

    batch = 200                          # not a tile multiple -> exercises padding
    state_dim = 24
    action_dim = 8
    input_dim = state_dim + action_dim   # 32
    output_dim = 24                      # predicted next-state dim

    params = init_params(kp, input_dim, output_dim)
    packed = pack_params(params, state_dim)

    state = jax.random.normal(ks, (batch, state_dim), jnp.float32)
    action = jax.random.normal(ka, (batch, action_dim), jnp.float32)

    # block_b=64 -> padded batch 256, 4 grid steps sharing one weight DMA.
    mean, std = transition_network_forward(state, action, packed, block_b=64)
    jax.block_until_ready((mean, std))

    # torch.distributions.Normal(u, std) — we return its parameters.
    assert mean.shape == (batch, output_dim)
    assert std.shape == (batch, output_dim)
    assert bool(jnp.all(std > 0.0))

    # bf16 weights/activations with f32 accumulation: validate against f32 ref.
    ref_mean, ref_std = _reference_forward(state, action, params)
    assert float(jnp.max(jnp.abs(mean - ref_mean))) < 5e-2
    assert float(jnp.max(jnp.abs(std - ref_std))) < 5e-2

    print("KERNEL_OK")
</pallas_src>

<mosaic_0001>
module attributes {stable_mosaic.version = 11 : i64} {
  func.func @transition_kernel(%arg0: i32, %arg1: memref<64x24xf32, #tpu.memory_space<vmem>>, %arg2: memref<64x8xf32, #tpu.memory_space<vmem>>, %arg3: memref<24x1024xbf16, #tpu.memory_space<vmem>>, %arg4: memref<8x1024xbf16, #tpu.memory_space<vmem>>, %arg5: memref<1x1024xf32, #tpu.memory_space<vmem>>, %arg6: memref<512x512xbf16, #tpu.memory_space<vmem>>, %arg7: memref<1x512xf32, #tpu.memory_space<vmem>>, %arg8: memref<512x512xbf16, #tpu.memory_space<vmem>>, %arg9: memref<1x512xf32, #tpu.memory_space<vmem>>, %arg10: memref<1024x48xbf16, #tpu.memory_space<vmem>>, %arg11: memref<1x48xf32, #tpu.memory_space<vmem>>, %arg12: memref<64x48xf32, #tpu.memory_space<vmem>>) attributes {dimension_semantics = [#tpu.dimension_semantics<parallel>], iteration_bounds = array<i64: 4>, scalar_prefetch = 0 : i64, scratch_operands = 0 : i64, tpu.core_type = #tpu.core_type<tc>, window_params = [{transform_indices = @transform_0, window_bounds = array<i64: 64, 24>}, {transform_indices = @transform_1, window_bounds = array<i64: 64, 8>}, {pipeline_mode = #tpu.pipeline_mode<synchronous>, transform_indices = @transform_2, window_bounds = array<i64: 24, 1024>}, {pipeline_mode = #tpu.pipeline_mode<synchronous>, transform_indices = @transform_3, window_bounds = array<i64: 8, 1024>}, {pipeline_mode = #tpu.pipeline_mode<synchronous>, transform_indices = @transform_4, window_bounds = array<i64: 1, 1024>}, {pipeline_mode = #tpu.pipeline_mode<synchronous>, transform_indices = @transform_5, window_bounds = array<i64: 512, 512>}, {pipeline_mode = #tpu.pipeline_mode<synchronous>, transform_indices = @transform_6, window_bounds = array<i64: 1, 512>}, {pipeline_mode = #tpu.pipeline_mode<synchronous>, transform_indices = @transform_7, window_bounds = array<i64: 512, 512>}, {pipeline_mode = #tpu.pipeline_mode<synchronous>, transform_indices = @transform_8, window_bounds = array<i64: 1, 512>}, {pipeline_mode = #tpu.pipeline_mode<synchronous>, transform_indices = @transform_9, window_bounds = array<i64: 1024, 48>}, {pipeline_mode = #tpu.pipeline_mode<synchronous>, transform_indices = @transform_10, window_bounds = array<i64: 1, 48>}, {transform_indices = @transform_11, window_bounds = array<i64: 64, 48>}]} {
    %c0 = arith.constant 0 : index
    %c0_0 = arith.constant 0 : index
    %0 = vector.load %arg1[%c0, %c0_0] : memref<64x24xf32, #tpu.memory_space<vmem>>, vector<64x24xf32>
    %1 = arith.truncf %0 : vector<64x24xf32> to vector<64x24xbf16>
    %c0_1 = arith.constant 0 : index
    %c0_2 = arith.constant 0 : index
    %2 = vector.load %arg2[%c0_1, %c0_2] : memref<64x8xf32, #tpu.memory_space<vmem>>, vector<64x8xf32>
    %3 = arith.truncf %2 : vector<64x8xf32> to vector<64x8xbf16>
    %c0_3 = arith.constant 0 : index
    %c0_4 = arith.constant 0 : index
    %4 = vector.load %arg3[%c0_3, %c0_4] : memref<24x1024xbf16, #tpu.memory_space<vmem>>, vector<24x1024xbf16>
    %cst = arith.constant dense<0.000000e+00> : vector<64x1024xf32>
    %5 = tpu.matmul %1, %4, %cst {dimension_numbers = #tpu.dot_dimension_numbers<[1], [0], [0], [1], [0, 0, 1, 1], [], []>} : vector<64x24xbf16>, vector<24x1024xbf16>, vector<64x1024xf32> -> vector<64x1024xf32>
    %c0_5 = arith.constant 0 : index
    %c0_6 = arith.constant 0 : index
    %6 = vector.load %arg4[%c0_5, %c0_6] : memref<8x1024xbf16, #tpu.memory_space<vmem>>, vector<8x1024xbf16>
    %cst_7 = arith.constant dense<0.000000e+00> : vector<64x1024xf32>
    %7 = tpu.matmul %3, %6, %cst_7 {dimension_numbers = #tpu.dot_dimension_numbers<[1], [0], [0], [1], [0, 0, 1, 1], [], []>} : vector<64x8xbf16>, vector<8x1024xbf16>, vector<64x1024xf32> -> vector<64x1024xf32>
    %8 = arith.addf %5, %7 : vector<64x1024xf32>
    %c0_8 = arith.constant 0 : index
    %c0_9 = arith.constant 0 : index
    %9 = vector.load %arg5[%c0_8, %c0_9] : memref<1x1024xf32, #tpu.memory_space<vmem>>, vector<1x1024xf32>
    %10 = vector.broadcast %9 : vector<1x1024xf32> to vector<64x1024xf32>
    %11 = arith.addf %8, %10 : vector<64x1024xf32>
    %cst_10 = arith.constant 0.000000e+00 : f32
    %12 = vector.broadcast %cst_10 : f32 to vector<64x1024xf32>
    %13 = arith.maximumf %11, %12 : vector<64x1024xf32>
    %14 = vector.extract_strided_slice %13 {offsets = [0, 0], sizes = [64, 512], strides = [1, 1]} : vector<64x1024xf32> to vector<64x512xf32>
    %15 = arith.truncf %14 : vector<64x512xf32> to vector<64x512xbf16>
    %16 = vector.extract_strided_slice %13 {offsets = [0, 512], sizes = [64, 512], strides = [1, 1]} : vector<64x1024xf32> to vector<64x512xf32>
    %17 = arith.truncf %16 : vector<64x512xf32> to vector<64x512xbf16>
    %c0_11 = arith.constant 0 : index
    %c0_12 = arith.constant 0 : index
    %18 = vector.load %arg6[%c0_11, %c0_12] : memref<512x512xbf16, #tpu.memory_space<vmem>>, vector<512x512xbf16>
    %cst_13 = arith.constant dense<0.000000e+00> : vector<64x512xf32>
    %19 = tpu.matmul %15, %18, %cst_13 {dimension_numbers = #tpu.dot_dimension_numbers<[1], [0], [0], [1], [0, 0, 1, 1], [], []>} : vector<64x512xbf16>, vector<512x512xbf16>, vector<64x512xf32> -> vector<64x512xf32>
    %c0_14 = arith.constant 0 : index
    %c0_15 = arith.constant 0 : index
    %20 = vector.load %arg7[%c0_14, %c0_15] : memref<1x512xf32, #tpu.memory_space<vmem>>, vector<1x512xf32>
    %21 = vector.broadcast %20 : vector<1x512xf32> to vector<64x512xf32>
    %22 = arith.addf %19, %21 : vector<64x512xf32>
    %cst_16 = arith.constant 0.000000e+00 : f32
    %23 = vector.broadcast %cst_16 : f32 to vector<64x512xf32>
    %24 = arith.maximumf %22, %23 : vector<64x512xf32>
    %25 = arith.truncf %24 : vector<64x512xf32> to vector<64x512xbf16>
    %c0_17 = arith.constant 0 : index
    %c0_18 = arith.constant 0 : index
    %26 = vector.load %arg8[%c0_17, %c0_18] : memref<512x512xbf16, #tpu.memory_space<vmem>>, vector<512x512xbf16>
    %cst_19 = arith.constant dense<0.000000e+00> : vector<64x512xf32>
    %27 = tpu.matmul %17, %26, %cst_19 {dimension_numbers = #tpu.dot_dimension_numbers<[1], [0], [0], [1], [0, 0, 1, 1], [], []>} : vector<64x512xbf16>, vector<512x512xbf16>, vector<64x512xf32> -> vector<64x512xf32>
    %c0_20 = arith.constant 0 : index
    %c0_21 = arith.constant 0 : index
    %28 = vector.load %arg9[%c0_20, %c0_21] : memref<1x512xf32, #tpu.memory_space<vmem>>, vector<1x512xf32>
    %29 = vector.broadcast %28 : vector<1x512xf32> to vector<64x512xf32>
    %30 = arith.addf %27, %29 : vector<64x512xf32>
    %cst_22 = arith.constant 0.000000e+00 : f32
    %31 = vector.broadcast %cst_22 : f32 to vector<64x512xf32>
    %32 = arith.maximumf %30, %31 : vector<64x512xf32>
    %33 = arith.truncf %32 : vector<64x512xf32> to vector<64x512xbf16>
    %34 = tpu.concatenate %25, %33 in 1 : vector<64x512xbf16>, vector<64x512xbf16> -> vector<64x1024xbf16>
    %c0_23 = arith.constant 0 : index
    %c0_24 = arith.constant 0 : index
    %35 = vector.load %arg10[%c0_23, %c0_24] : memref<1024x48xbf16, #tpu.memory_space<vmem>>, vector<1024x48xbf16>
    %cst_25 = arith.constant dense<0.000000e+00> : vector<64x48xf32>
    %36 = tpu.matmul %34, %35, %cst_25 {dimension_numbers = #tpu.dot_dimension_numbers<[1], [0], [0], [1], [0, 0, 1, 1], [], []>} : vector<64x1024xbf16>, vector<1024x48xbf16>, vector<64x48xf32> -> vector<64x48xf32>
    %c0_26 = arith.constant 0 : index
    %c0_27 = arith.constant 0 : index
    %37 = vector.load %arg11[%c0_26, %c0_27] : memref<1x48xf32, #tpu.memory_space<vmem>>, vector<1x48xf32>
    %38 = vector.broadcast %37 : vector<1x48xf32> to vector<64x48xf32>
    %39 = arith.addf %36, %38 : vector<64x48xf32>
    %40 = tpu.iota {dimensions = array<i32: 1>} : vector<64x48xi32>
    %c24_i32 = arith.constant 24 : i32
    %41 = vector.broadcast %c24_i32 : i32 to vector<64x48xi32>
    %42 = arith.cmpi slt, %40, %41 : vector<64x48xi32>
    %cst_28 = arith.constant 0.000000e+00 : f32
    %43 = vector.broadcast %cst_28 : f32 to vector<64x48xf32>
    %44 = arith.maximumf %39, %43 : vector<64x48xf32>
    %45 = math.absf %39 : vector<64x48xf32>
    %cst_29 = arith.constant 0.000000e+00 : f32
    %46 = vector.broadcast %cst_29 : f32 to vector<64x48xf32>
    %47 = arith.subf %46, %45 : vector<64x48xf32>
    %48 = math.exp %47 : vector<64x48xf32>
    %49 = math.log1p %48 : vector<64x48xf32>
    %50 = arith.addf %44, %49 : vector<64x48xf32>
    %cst_30 = arith.constant 9.99999997E-7 : f32
    %51 = vector.broadcast %cst_30 : f32 to vector<64x48xf32>
    %52 = arith.addf %50, %51 : vector<64x48xf32>
    %53 = arith.select %42, %39, %52 : vector<64x48xi1>, vector<64x48xf32>
    %c0_31 = arith.constant 0 : index
    %c0_32 = arith.constant 0 : index
    %54 = vector.load %arg12[%c0_31, %c0_32] : memref<64x48xf32, #tpu.memory_space<vmem>>, vector<64x48xf32>
    tpu.vector_store %arg12[%c0_31, %c0_32], %53 {strides = array<i32>} : memref<64x48xf32, #tpu.memory_space<vmem>>, vector<64x48xf32>,
    return
  }
  func.func @transform_0(%arg0: i32) -> (i32, i32) {
    %c0_i32 = arith.constant 0 : i32
    %c0_i32_0 = arith.constant 0 : i32
    return %arg0, %c0_i32 : i32, i32
  }
  func.func @transform_1(%arg0: i32) -> (i32, i32) {
    %c0_i32 = arith.constant 0 : i32
    %c0_i32_0 = arith.constant 0 : i32
    return %arg0, %c0_i32 : i32, i32
  }
  func.func @transform_2(%arg0: i32) -> (i32, i32) {
    %c0_i32 = arith.constant 0 : i32
    %c0_i32_0 = arith.constant 0 : i32
    %c0_i32_1 = arith.constant 0 : i32
    return %c0_i32, %c0_i32_0 : i32, i32
  }
  func.func @transform_3(%arg0: i32) -> (i32, i32) {
    %c0_i32 = arith.constant 0 : i32
    %c0_i32_0 = arith.constant 0 : i32
    %c0_i32_1 = arith.constant 0 : i32
    return %c0_i32, %c0_i32_0 : i32, i32
  }
  func.func @transform_4(%arg0: i32) -> (i32, i32) {
    %c0_i32 = arith.constant 0 : i32
    %c0_i32_0 = arith.constant 0 : i32
    %c0_i32_1 = arith.constant 0 : i32
    return %c0_i32, %c0_i32_0 : i32, i32
  }
  func.func @transform_5(%arg0: i32) -> (i32, i32) {
    %c0_i32 = arith.constant 0 : i32
    %c0_i32_0 = arith.constant 0 : i32
    %c0_i32_1 = arith.constant 0 : i32
    return %c0_i32, %c0_i32_0 : i32, i32
  }
  func.func @transform_6(%arg0: i32) -> (i32, i32) {
    %c0_i32 = arith.constant 0 : i32
    %c0_i32_0 = arith.constant 0 : i32
    %c0_i32_1 = arith.constant 0 : i32
    return %c0_i32, %c0_i32_0 : i32, i32
  }
  func.func @transform_7(%arg0: i32) -> (i32, i32) {
    %c0_i32 = arith.constant 0 : i32
    %c0_i32_0 = arith.constant 0 : i32
    %c0_i32_1 = arith.constant 0 : i32
    return %c0_i32, %c0_i32_0 : i32, i32
  }
  func.func @transform_8(%arg0: i32) -> (i32, i32) {
    %c0_i32 = arith.constant 0 : i32
    %c0_i32_0 = arith.constant 0 : i32
    %c0_i32_1 = arith.constant 0 : i32
    return %c0_i32, %c0_i32_0 : i32, i32
  }
  func.func @transform_9(%arg0: i32) -> (i32, i32) {
    %c0_i32 = arith.constant 0 : i32
    %c0_i32_0 = arith.constant 0 : i32
    %c0_i32_1 = arith.constant 0 : i32
    return %c0_i32, %c0_i32_0 : i32, i32
  }
  func.func @transform_10(%arg0: i32) -> (i32, i32) {
    %c0_i32 = arith.constant 0 : i32
    %c0_i32_0 = arith.constant 0 : i32
    %c0_i32_1 = arith.constant 0 : i32
    return %c0_i32, %c0_i32_0 : i32, i32
  }
  func.func @transform_11(%arg0: i32) -> (i32, i32) {
    %c0_i32 = arith.constant 0 : i32
    %c0_i32_0 = arith.constant 0 : i32
    return %arg0, %c0_i32 : i32, i32
  }
}

</mosaic_0001>

<llo_original>
// kernel: tpu_custom_call.1
$region0: #{tpu_custom_call.1}
  #allocation0 [shape = 'u32[]', space=smem, size = 0x4, offset = 0x4, fixed_abs, tag = 'smem constant byte address 0x4 - core index']
  #allocation1 [shape = 'u32[144,128]{1,0:T(1,128)}', space=vmem, size = 0x12000, scoped, tag = 'internal scratch']
  %s0 = inlined_call_operand.vmem [shape: f32[256,24], index: 0, kind: input, shape index: {}]
  %s1 = inlined_call_operand.vmem [shape: f32[256,8], index: 1, kind: input, shape index: {}]
  %s2 = inlined_call_operand.hbm [shape: bf16[24,1024], index: 2, kind: input, shape index: {}]
  %s3 = inlined_call_operand.vmem [shape: bf16[8,1024], index: 3, kind: input, shape index: {}]
  %s4 = inlined_call_operand.vmem [shape: f32[1,1024], index: 4, kind: input, shape index: {}]
  %s5 = inlined_call_operand.vmem [shape: bf16[512,512], index: 5, kind: input, shape index: {}]
  %s6 = inlined_call_operand.vmem [shape: f32[1,512], index: 6, kind: input, shape index: {}]
  %s7 = inlined_call_operand.hbm [shape: bf16[512,512], index: 7, kind: input, shape index: {}]
  %s8 = inlined_call_operand.vmem [shape: f32[1,512], index: 8, kind: input, shape index: {}]
  %s9 = inlined_call_operand.vmem [shape: bf16[1024,48], index: 9, kind: input, shape index: {}]
  %s10 = inlined_call_operand.vmem [shape: f32[1,48], index: 10, kind: input, shape index: {}]
  %s11 = inlined_call_operand.vmem [shape: f32[256,48], index: 11, kind: output, shape index: {}]
  %s12 = sld [smem:[#allocation0]]
  $region85: #{tpu_custom_call.1} parent=0
    _
  %s14 = ssub.s32 1, %s12
  %s15 = scalar_select 0, %s14, %s12
  $region1: #{tpu_custom_call.1} parent=0
    #allocation2 [shape = 'u8[49152]{0}', space=vmem, size = 0xc000, scoped, tag = 'input window, operand 2, single buffered']
    #allocation3 [shape = 's32[2]{0}', space=sflag, size = 0x8, scoped, tag = 'scoped memory for tpu_custom_call.1']
    #allocation4 [shape = 'u8[524288]{0}', space=vmem, size = 0x80000, scoped, tag = 'input window, operand 7, single buffered']
    #allocation5 [shape = 's32[1]{0}', space=sflag, size = 0x4, scoped, tag = 'scoped memory for tpu_custom_call.1']
    %16 = vsyncpa [#allocation3], 0
    %17 = vsyncpa [#allocation5], 0
    loop: start=0, step=1, limit=6
    $region2: #{tpu_custom_call.1} parent=1 // loop_pre_header
      _
    $region3: #{tpu_custom_call.1} parent=1 // loop_header
      %s19 = sphi 0, %s23
      %p20 = scmp.ge.s32.totalorder %s19, 6
      %s29 = sphi 0, %s31
      %s32 = sphi 0, %s29
      %s33 = sphi 0, %s32
      %s49 = sphi 0, %s33
      %s55 = sphi 0, %s57
      %s58 = sphi 0, %s55
      %s59 = sphi 0, %s58
      %s75 = sphi 0, %s59
      %s79 = sphi 0, %s79
      %s81 = sphi 0, %s79
      %s82 = sphi 0, %s81
      %s96 = sphi 0, %s82
      %s100 = sphi 0, %s100
      %s102 = sphi 0, %s100
      %s103 = sphi 0, %s102
      %s117 = sphi 0, %s103
      %s121 = sphi 0, %s121
      %s123 = sphi 0, %s121
      %s124 = sphi 0, %s123
      %s138 = sphi 0, %s124
      %s142 = sphi 0, %s142
      %s144 = sphi 0, %s142
      %s145 = sphi 0, %s144
      %s159 = sphi 0, %s145
      %s163 = sphi 0, %s163
      %s165 = sphi 0, %s163
      %s166 = sphi 0, %s165
      %s180 = sphi 0, %s166
      %s184 = sphi 0, %s184
      %s186 = sphi 0, %s184
      %s187 = sphi 0, %s186
      %s201 = sphi 0, %s187
      %s205 = sphi 0, %s205
      %s207 = sphi 0, %s205
      %s208 = sphi 0, %s207
      %s222 = sphi 0, %s208
      %s226 = sphi 0, %s226
      %s228 = sphi 0, %s226
      %s229 = sphi 0, %s228
      %s243 = sphi 0, %s229
      %s247 = sphi 0, %s247
      %s249 = sphi 0, %s247
      %s250 = sphi 0, %s249
      %s264 = sphi 0, %s250
      %s270 = sphi 0, %s272
      %s273 = sphi 0, %s270
      %s274 = sphi 0, %s273
      %s290 = sphi 0, %s274
    $region4: #{tpu_custom_call.1} parent=1 // loop_header_branch
      %22 = sbr.rel (%p20) target = $region8
    $region5: #{tpu_custom_call.1} parent=1 // loop_body
      %s24 = ssub.s32 %s19, 1
      %s25 = ssub.s32 %s19, 2
      %s26 = sadd.s32 %s19, 1
      %s27 = ssub.s32 %s19, %s26
      %p28 = scmp.eq.s32.totalorder %s27, 0
      %s30 = sadd.s32 %s29, 1
      %s31 = scalar_select %p28, %s29, %s30
      %p34 = pneg %p28
      %p35 = scmp.eq.s32.totalorder %s19, 3
      %p36 = por %p34, %p35
      %p37 = scmp.ne.s32.totalorder %s29, %s32
      %p38 = scmp.eq.s32.totalorder %s19, 0
      %p39 = por %p37, %p38
      %p40 = scmp.ne.s32.totalorder %s29, %s32
      %p41 = scmp.eq.s32.totalorder %s24, 3
      %p42 = por %p40, %p41
      %p43 = scmp.ne.s32.totalorder %s32, %s33
      %p44 = scmp.eq.s32.totalorder %s24, 0
      %p45 = por %p43, %p44
      %p46 = scmp.ne.s32.totalorder %s32, %s33
      %p47 = scmp.eq.s32.totalorder %s25, 3
      %p48 = por %p46, %p47
      %p50 = scmp.ne.s32.totalorder %s33, %s49
      %p51 = scmp.eq.s32.totalorder %s25, 0
      %p52 = por %p50, %p51
      %s53 = ssub.s32 %s19, %s26
      %p54 = scmp.eq.s32.totalorder %s53, 0
      %s56 = sadd.s32 %s55, 1
      %s57 = scalar_select %p54, %s55, %s56
      %p60 = pneg %p54
      %p61 = scmp.eq.s32.totalorder %s19, 3
      %p62 = por %p60, %p61
      %p63 = scmp.ne.s32.totalorder %s55, %s58
      %p64 = scmp.eq.s32.totalorder %s19, 0
      %p65 = por %p63, %p64
      %p66 = scmp.ne.s32.totalorder %s55, %s58
      %p67 = scmp.eq.s32.totalorder %s24, 3
      %p68 = por %p66, %p67
      %p69 = scmp.ne.s32.totalorder %s58, %s59
      %p70 = scmp.eq.s32.totalorder %s24, 0
      %p71 = por %p69, %p70
      %p72 = scmp.ne.s32.totalorder %s58, %s59
      %p73 = scmp.eq.s32.totalorder %s25, 3
      %p74 = por %p72, %p73
      %p76 = scmp.ne.s32.totalorder %s59, %s75
      %p77 = scmp.eq.s32.totalorder %s25, 0
      %p78 = por %p76, %p77
      %s80 = sadd.s32 %s79, 1
      %p83 = scmp.eq.s32.totalorder %s19, 3
      %p84 = scmp.ne.s32.totalorder %s79, %s81
      %p85 = scmp.eq.s32.totalorder %s19, 0
      %p86 = por %p84, %p85
      %p87 = scmp.ne.s32.totalorder %s79, %s81
      %p88 = scmp.eq.s32.totalorder %s24, 3
      %p89 = por %p87, %p88
      %p90 = scmp.ne.s32.totalorder %s81, %s82
      %p91 = scmp.eq.s32.totalorder %s24, 0
      %p92 = por %p90, %p91
      %p93 = scmp.ne.s32.totalorder %s81, %s82
      %p94 = scmp.eq.s32.totalorder %s25, 3
      %p95 = por %p93, %p94
      %p97 = scmp.ne.s32.totalorder %s82, %s96
      %p98 = scmp.eq.s32.totalorder %s25, 0
      %p99 = por %p97, %p98
      %s101 = sadd.s32 %s100, 1
      %p104 = scmp.eq.s32.totalorder %s19, 3
      %p105 = scmp.ne.s32.totalorder %s100, %s102
      %p106 = scmp.eq.s32.totalorder %s19, 0
      %p107 = por %p105, %p106
      %p108 = scmp.ne.s32.totalorder %s100, %s102
      %p109 = scmp.eq.s32.totalorder %s24, 3
      %p110 = por %p108, %p109
      %p111 = scmp.ne.s32.totalorder %s102, %s103
      %p112 = scmp.eq.s32.totalorder %s24, 0
      %p113 = por %p111, %p112
      %p114 = scmp.ne.s32.totalorder %s102, %s103
      %p115 = scmp.eq.s32.totalorder %s25, 3
      %p116 = por %p114, %p115
      %p118 = scmp.ne.s32.totalorder %s103, %s117
      %p119 = scmp.eq.s32.totalorder %s25, 0
      %p120 = por %p118, %p119
      %s122 = sadd.s32 %s121, 1
      %p125 = scmp.eq.s32.totalorder %s19, 3
      %p126 = scmp.ne.s32.totalorder %s121, %s123
      %p127 = scmp.eq.s32.totalorder %s19, 0
      %p128 = por %p126, %p127
      %p129 = scmp.ne.s32.totalorder %s121, %s123
      %p130 = scmp.eq.s32.totalorder %s24, 3
      %p131 = por %p129, %p130
      %p132 = scmp.ne.s32.totalorder %s123, %s124
      %p133 = scmp.eq.s32.totalorder %s24, 0
      %p134 = por %p132, %p133
      %p135 = scmp.ne.s32.totalorder %s123, %s124
      %p136 = scmp.eq.s32.totalorder %s25, 3
      %p137 = por %p135, %p136
      %p139 = scmp.ne.s32.totalorder %s124, %s138
      %p140 = scmp.eq.s32.totalorder %s25, 0
      %p141 = por %p139, %p140
      %s143 = sadd.s32 %s142, 1
      %p146 = scmp.eq.s32.totalorder %s19, 3
      %p147 = scmp.ne.s32.totalorder %s142, %s144
      %p148 = scmp.eq.s32.totalorder %s19, 0
      %p149 = por %p147, %p148
      %p150 = scmp.ne.s32.totalorder %s142, %s144
      %p151 = scmp.eq.s32.totalorder %s24, 3
      %p152 = por %p150, %p151
      %p153 = scmp.ne.s32.totalorder %s144, %s145
      %p154 = scmp.eq.s32.totalorder %s24, 0
      %p155 = por %p153, %p154
      %p156 = scmp.ne.s32.totalorder %s144, %s145
      %p157 = scmp.eq.s32.totalorder %s25, 3
      %p158 = por %p156, %p157
      %p160 = scmp.ne.s32.totalorder %s145, %s159
      %p161 = scmp.eq.s32.totalorder %s25, 0
      %p162 = por %p160, %p161
      %s164 = sadd.s32 %s163, 1
      %p167 = scmp.eq.s32.totalorder %s19, 3
      %p168 = scmp.ne.s32.totalorder %s163, %s165
      %p169 = scmp.eq.s32.totalorder %s19, 0
      %p170 = por %p168, %p169
      %p171 = scmp.ne.s32.totalorder %s163, %s165
      %p172 = scmp.eq.s32.totalorder %s24, 3
      %p173 = por %p171, %p172
      %p174 = scmp.ne.s32.totalorder %s165, %s166
      %p175 = scmp.eq.s32.totalorder %s24, 0
      %p176 = por %p174, %p175
      %p177 = scmp.ne.s32.totalorder %s165, %s166
      %p178 = scmp.eq.s32.totalorder %s25, 3
      %p179 = por %p177, %p178
      %p181 = scmp.ne.s32.totalorder %s166, %s180
      %p182 = scmp.eq.s32.totalorder %s25, 0
      %p183 = por %p181, %p182
      %s185 = sadd.s32 %s184, 1
      %p188 = scmp.eq.s32.totalorder %s19, 3
      %p189 = scmp.ne.s32.totalorder %s184, %s186
      %p190 = scmp.eq.s32.totalorder %s19, 0
      %p191 = por %p189, %p190
      %p192 = scmp.ne.s32.totalorder %s184, %s186
      %p193 = scmp.eq.s32.totalorder %s24, 3
      %p194 = por %p192, %p193
      %p195 = scmp.ne.s32.totalorder %s186, %s187
      %p196 = scmp.eq.s32.totalorder %s24, 0
      %p197 = por %p195, %p196
      %p198 = scmp.ne.s32.totalorder %s186, %s187
      %p199 = scmp.eq.s32.totalorder %s25, 3
      %p200 = por %p198, %p199
      %p202 = scmp.ne.s32.totalorder %s187, %s201
      %p203 = scmp.eq.s32.totalorder %s25, 0
      %p204 = por %p202, %p203
      %s206 = sadd.s32 %s205, 1
      %p209 = scmp.eq.s32.totalorder %s19, 3
      %p210 = scmp.ne.s32.totalorder %s205, %s207
      %p211 = scmp.eq.s32.totalorder %s19, 0
      %p212 = por %p210, %p211
      %p213 = scmp.ne.s32.totalorder %s205, %s207
      %p214 = scmp.eq.s32.totalorder %s24, 3
      %p215 = por %p213, %p214
      %p216 = scmp.ne.s32.totalorder %s207, %s208
      %p217 = scmp.eq.s32.totalorder %s24, 0
      %p218 = por %p216, %p217
      %p219 = scmp.ne.s32.totalorder %s207, %s208
      %p220 = scmp.eq.s32.totalorder %s25, 3
      %p221 = por %p219, %p220
      %p223 = scmp.ne.s32.totalorder %s208, %s222
      %p224 = scmp.eq.s32.totalorder %s25, 0
      %p225 = por %p223, %p224
      %s227 = sadd.s32 %s226, 1
      %p230 = scmp.eq.s32.totalorder %s19, 3
      %p231 = scmp.ne.s32.totalorder %s226, %s228
      %p232 = scmp.eq.s32.totalorder %s19, 0
      %p233 = por %p231, %p232
      %p234 = scmp.ne.s32.totalorder %s226, %s228
      %p235 = scmp.eq.s32.totalorder %s24, 3
      %p236 = por %p234, %p235
      %p237 = scmp.ne.s32.totalorder %s228, %s229
      %p238 = scmp.eq.s32.totalorder %s24, 0
      %p239 = por %p237, %p238
      %p240 = scmp.ne.s32.totalorder %s228, %s229
      %p241 = scmp.eq.s32.totalorder %s25, 3
      %p242 = por %p240, %p241
      %p244 = scmp.ne.s32.totalorder %s229, %s243
      %p245 = scmp.eq.s32.totalorder %s25, 0
      %p246 = por %p244, %p245
      %s248 = sadd.s32 %s247, 1
      %p251 = scmp.eq.s32.totalorder %s19, 3
      %p252 = scmp.ne.s32.totalorder %s247, %s249
      %p253 = scmp.eq.s32.totalorder %s19, 0
      %p254 = por %p252, %p253
      %p255 = scmp.ne.s32.totalorder %s247, %s249
      %p256 = scmp.eq.s32.totalorder %s24, 3
      %p257 = por %p255, %p256
      %p258 = scmp.ne.s32.totalorder %s249, %s250
      %p259 = scmp.eq.s32.totalorder %s24, 0
      %p260 = por %p258, %p259
      %p261 = scmp.ne.s32.totalorder %s249, %s250
      %p262 = scmp.eq.s32.totalorder %s25, 3
      %p263 = por %p261, %p262
      %p265 = scmp.ne.s32.totalorder %s250, %s264
      %p266 = scmp.eq.s32.totalorder %s25, 0
      %p267 = por %p265, %p266
      %s268 = ssub.s32 %s19, %s26
      %p269 = scmp.eq.s32.totalorder %s268, 0
      %s271 = sadd.s32 %s270, 1
      %s272 = scalar_select %p269, %s270, %s271
      %p275 = pneg %p269
      %p276 = scmp.eq.s32.totalorder %s19, 3
      %p277 = por %p275, %p276
      %p278 = scmp.ne.s32.totalorder %s270, %s273
      %p279 = scmp.eq.s32.totalorder %s19, 0
      %p280 = por %p278, %p279
      %p281 = scmp.ne.s32.totalorder %s270, %s273
      %p282 = scmp.eq.s32.totalorder %s24, 3
      %p283 = por %p281, %p282
      %p284 = scmp.ne.s32.totalorder %s273, %s274
      %p285 = scmp.eq.s32.totalorder %s24, 0
      %p286 = por %p284, %p285
      %p287 = scmp.ne.s32.totalorder %s273, %s274
      %p288 = scmp.eq.s32.totalorder %s25, 3
      %p289 = por %p287, %p288
      %p291 = scmp.ne.s32.totalorder %s274, %s290
      %p292 = scmp.eq.s32.totalorder %s25, 0
      %p293 = por %p291, %p292
      %p294 = scmp.le.s32.totalorder 1, %s19
      %p295 = scmp.lt.s32.totalorder %s19, 5
      %p296 = pnand %p294, %p295
      %p297 = pneg %p296
      // Predicated region
      $region9: #{tpu_custom_call.1} parent=5 // pred_check
        _
      $region10: #{tpu_custom_call.1} parent=5 // pred_check_branch
        %299 = sbr.rel (%p296) target = $region12
      $region11: #{tpu_custom_call.1} parent=5 // pred_region
        %s300 = ssub.s32 %s19, 1
        // Predicated region
        $region13: #{tpu_custom_call.1} parent=11 // pred_check
          %p301 = pneg %p92
        $region14: #{tpu_custom_call.1} parent=11 // pred_check_branch
          %303 = sbr.rel (%p301) target = $region16
        $region15: #{tpu_custom_call.1} parent=11 // pred_region
          %s305 = ssub.s32 1536, 1536
          %306 = vsyncadd [#allocation3], %s305
          %s307 = sshll.u32 [#allocation2], 4
          %s308 = int_to_ptr.vmem [resolvable:$true] %s307
          %313 = dma.hbm_to_vmem [thread:$0]  %s2, 1536, %s308, [#allocation3], 512, 512, 32
        $region16: #{tpu_custom_call.1} parent=11 // pred_fallthru
          _
        // Predicated region
        $region17: #{tpu_custom_call.1} parent=11 // pred_check
          %p314 = pneg %p113
        $region18: #{tpu_custom_call.1} parent=11 // pred_check_branch
          %316 = sbr.rel (%p314) target = $region20
        $region19: #{tpu_custom_call.1} parent=11 // pred_region
          _
        $region20: #{tpu_custom_call.1} parent=11 // pred_fallthru
          _
        // Predicated region
        $region21: #{tpu_custom_call.1} parent=11 // pred_check
          %p317 = pneg %p134
        $region22: #{tpu_custom_call.1} parent=11 // pred_check_branch
          %319 = sbr.rel (%p317) target = $region24
        $region23: #{tpu_custom_call.1} parent=11 // pred_region
          _
        $region24: #{tpu_custom_call.1} parent=11 // pred_fallthru
          _
        // Predicated region
        $region25: #{tpu_custom_call.1} parent=11 // pred_check
          %p320 = pneg %p155
        $region26: #{tpu_custom_call.1} parent=11 // pred_check_branch
          %322 = sbr.rel (%p320) target = $region28
        $region27: #{tpu_custom_call.1} parent=11 // pred_region
          _
        $region28: #{tpu_custom_call.1} parent=11 // pred_fallthru
          _
        // Predicated region
        $region29: #{tpu_custom_call.1} parent=11 // pred_check
          %p323 = pneg %p176
        $region30: #{tpu_custom_call.1} parent=11 // pred_check_branch
          %325 = sbr.rel (%p323) target = $region32
        $region31: #{tpu_custom_call.1} parent=11 // pred_region
          _
        $region32: #{tpu_custom_call.1} parent=11 // pred_fallthru
          _
        // Predicated region
        $region33: #{tpu_custom_call.1} parent=11 // pred_check
          %p326 = pneg %p197
        $region34: #{tpu_custom_call.1} parent=11 // pred_check_branch
          %328 = sbr.rel (%p326) target = $region36
        $region35: #{tpu_custom_call.1} parent=11 // pred_region
          %s330 = ssub.s32 16384, 16384
          %331 = vsyncadd [#allocation5], %s330
          %s332 = sshll.u32 [#allocation4], 4
          %s333 = int_to_ptr.vmem [resolvable:$true] %s332
          %338 = dma.hbm_to_vmem [thread:$0]  %s7, 16384, %s333, [#allocation5], 256, 256, 16
        $region36: #{tpu_custom_call.1} parent=11 // pred_fallthru
          _
        // Predicated region
        $region37: #{tpu_custom_call.1} parent=11 // pred_check
          %p339 = pneg %p218
        $region38: #{tpu_custom_call.1} parent=11 // pred_check_branch
          %341 = sbr.rel (%p339) target = $region40
        $region39: #{tpu_custom_call.1} parent=11 // pred_region
          _
        $region40: #{tpu_custom_call.1} parent=11 // pred_fallthru
          _
        // Predicated region
        $region41: #{tpu_custom_call.1} parent=11 // pred_check
          %p342 = pneg %p239
        $region42: #{tpu_custom_call.1} parent=11 // pred_check_branch
          %344 = sbr.rel (%p342) target = $region44
        $region43: #{tpu_custom_call.1} parent=11 // pred_region
          _
        $region44: #{tpu_custom_call.1} parent=11 // pred_fallthru
          _
        // Predicated region
        $region45: #{tpu_custom_call.1} parent=11 // pred_check
          %p345 = pneg %p260
        $region46: #{tpu_custom_call.1} parent=11 // pred_check_branch
          %347 = sbr.rel (%p345) target = $region48
        $region47: #{tpu_custom_call.1} parent=11 // pred_region
          _
        $region48: #{tpu_custom_call.1} parent=11 // pred_fallthru
          _
      $region12: #{tpu_custom_call.1} parent=5 // pred_fallthru
        _
      %p348 = scmp.lt.s32.totalorder %s19, 4
      // Predicated region
      $region49: #{tpu_custom_call.1} parent=5 // pred_check
        %p349 = pneg %p348
      $region50: #{tpu_custom_call.1} parent=5 // pred_check_branch
        %351 = sbr.rel (%p349) target = $region52
      $region51: #{tpu_custom_call.1} parent=5 // pred_region
        // Predicated region
        $region53: #{tpu_custom_call.1} parent=51 // pred_check
          %p352 = pneg %p39
        $region54: #{tpu_custom_call.1} parent=51 // pred_check_branch
          %354 = sbr.rel (%p352) target = $region56
        $region55: #{tpu_custom_call.1} parent=51 // pred_region
          %s355 = smul.u32 8, %s19
          %p356 = scmp.lt.s32.totalorder %s355, 31
          %s357 = scalar_select %p356, %s355, 31
          %s358 = smul.addr %s357, 8
          %s359 = scalar_lea.vmem %s0, %s358
          %s360 = smul.u32 8, %s19
        $region56: #{tpu_custom_call.1} parent=51 // pred_fallthru
          _
        // Predicated region
        $region57: #{tpu_custom_call.1} parent=51 // pred_check
          %p361 = pneg %p65
        $region58: #{tpu_custom_call.1} parent=51 // pred_check_branch
          %363 = sbr.rel (%p361) target = $region60
        $region59: #{tpu_custom_call.1} parent=51 // pred_region
          %s364 = smul.u32 8, %s19
          %p365 = scmp.lt.s32.totalorder %s364, 31
          %s366 = scalar_select %p365, %s364, 31
          %s367 = smul.addr %s366, 8
          %s368 = scalar_lea.vmem %s1, %s367
          %s369 = smul.u32 8, %s19
        $region60: #{tpu_custom_call.1} parent=51 // pred_fallthru
          _
      $region52: #{tpu_custom_call.1} parent=5 // pred_fallthru
        _
      %p370 = scmp.le.s32.totalorder 1, %s19
      %p371 = scmp.lt.s32.totalorder %s19, 5
      %p372 = pnand %p370, %p371
      %p373 = pneg %p372
      // Predicated region
      $region61: #{tpu_custom_call.1} parent=5 // pred_check
        _
      $region62: #{tpu_custom_call.1} parent=5 // pred_check_branch
        %375 = sbr.rel (%p372) target = $region64
      $region63: #{tpu_custom_call.1} parent=5 // pred_region
        %s376 = ssub.s32 %s19, 1
        // Predicated region
        $region65: #{tpu_custom_call.1} parent=63 // pred_check
          %p377 = pneg %p92
        $region66: #{tpu_custom_call.1} parent=63 // pred_check_branch
          %379 = sbr.rel (%p377) target = $region68
        $region67: #{tpu_custom_call.1} parent=63 // pred_region
          %380 = dma.done [#allocation3], 1536
        $region68: #{tpu_custom_call.1} parent=63 // pred_fallthru
          _
        // Predicated region
        $region69: #{tpu_custom_call.1} parent=63 // pred_check
          %p381 = pneg %p197
        $region70: #{tpu_custom_call.1} parent=63 // pred_check_branch
          %383 = sbr.rel (%p381) target = $region72
        $region71: #{tpu_custom_call.1} parent=63 // pred_region
          %384 = dma.done [#allocation5], 16384
        $region72: #{tpu_custom_call.1} parent=63 // pred_fallthru
          _
        %s385 = smul.u32 8, %s24
        %p386 = scmp.lt.s32.totalorder %s385, 31
        %s387 = scalar_select %p386, %s385, 31
        %s388 = smul.addr %s387, 8
        %s389 = scalar_lea.vmem %s0, %s388
        %p390 = pneg %p45
        %p391 = pneg %p42
        %s392 = smul.u32 8, %s24
        %p393 = scmp.lt.s32.totalorder %s392, 31
        %s394 = scalar_select %p393, %s392, 31
        %s395 = smul.addr %s394, 8
        %s396 = scalar_lea.vmem %s1, %s395
        %p397 = pneg %p71
        %p398 = pneg %p68
        %p399 = pneg %p92
        %p400 = pneg %p89
        %p401 = pneg %p113
        %p402 = pneg %p110
        %p403 = pneg %p134
        %p404 = pneg %p131
        %p405 = pneg %p155
        %p406 = pneg %p152
        %p407 = pneg %p176
        %p408 = pneg %p173
        %p409 = pneg %p197
        %p410 = pneg %p194
        %p411 = pneg %p218
        %p412 = pneg %p215
        %p413 = pneg %p239
        %p414 = pneg %p236
        %p415 = pneg %p260
        %p416 = pneg %p257
        %p417 = pneg %p286
        %p418 = pneg %p283
        %s419 = smul.u32 8, %s24
        %p420 = scmp.lt.s32.totalorder %s419, 31
        %s421 = scalar_select %p420, %s419, 31
        %s422 = smul.addr %s421, 8
        %s423 = scalar_lea.vmem %s11, %s422
        %s424 = smul.u32 8, %s24
        %p425 = scmp.lt.s32.totalorder %s424, 31
        %s426 = scalar_select %p425, %s424, 31
        %s427 = smul.addr %s426, 8
        %s428 = scalar_lea.vmem %s0, %s427
        %s429 = smul.u32 8, %s24
        %s430 = smul.u32 8, %s24
        %p431 = scmp.lt.s32.totalorder %s430, 31
        %s432 = scalar_select %p431, %s430, 31
        %s433 = smul.addr %s432, 8
        %s434 = scalar_lea.vmem %s1, %s433
        %s435 = smul.u32 8, %s24
        %s436 = smul.u32 8, %s24
        %p437 = scmp.lt.s32.totalorder %s436, 31
        %s438 = scalar_select %p437, %s436, 31
        %s439 = smul.addr %s438, 8
        %s440 = scalar_lea.vmem %s11, %s439
        %s441 = smul.u32 8, %s24
        %v443 = vld [vmem:[%s428] sm:$0xff]
        %v444 = vld [vmem:[%s428 + $0x8] sm:$0xff]
        %v445 = vld [vmem:[%s428 + $0x10] sm:$0xff]
        %v446 = vld [vmem:[%s428 + $0x18] sm:$0xff]
        %v447 = vld [vmem:[%s428 + $0x20] sm:$0xff]
        %v448 = vld [vmem:[%s428 + $0x28] sm:$0xff]
        %v449 = vld [vmem:[%s428 + $0x30] sm:$0xff]
        %v450 = vld [vmem:[%s428 + $0x38] sm:$0xff]
        %v451 = vpack.c.bf16 %v444, %v443
        %v452 = vpack.c.bf16 %v446, %v445
        %v453 = vpack.c.bf16 %v448, %v447
        %v454 = vpack.c.bf16 %v450, %v449
        %v455 = vld [vmem:[%s434] sm:$0xff]
        %v456 = vld [vmem:[%s434 + $0x8] sm:$0xff]
        %v457 = vld [vmem:[%s434 + $0x10] sm:$0xff]
        %v458 = vld [vmem:[%s434 + $0x18] sm:$0xff]
        %v459 = vld [vmem:[%s434 + $0x20] sm:$0xff]
        %v460 = vld [vmem:[%s434 + $0x28] sm:$0xff]
        %v461 = vld [vmem:[%s434 + $0x30] sm:$0xff]
        %v462 = vld [vmem:[%s434 + $0x38] sm:$0xff]
        %v463 = vpack.c.bf16 %v456, %v455
        %v464 = vpack.c.bf16 %v458, %v457
        %v465 = vpack.c.bf16 %v460, %v459
        %v466 = vpack.c.bf16 %v462, %v461
        %v467 = vld [vmem:[#allocation2] sm:$0xff]
        %v468 = vld [vmem:[#allocation2 + $0x8] sm:$0xff]
        %v469 = vld [vmem:[#allocation2 + $0x10] sm:$0xff]
        %v470 = vld [vmem:[#allocation2 + $0x18] sm:$0xff]
        %v471 = vld [vmem:[#allocation2 + $0x20] sm:$0xff]
        %v472 = vld [vmem:[#allocation2 + $0x28] sm:$0xff]
        %v473 = vld [vmem:[#allocation2 + $0x30] sm:$0xff]
        %v474 = vld [vmem:[#allocation2 + $0x38] sm:$0xff]
        %v475 = vld [vmem:[#allocation2 + $0x40] sm:$0xff]
        %v476 = vld [vmem:[#allocation2 + $0x48] sm:$0xff]
        %v477 = vld [vmem:[#allocation2 + $0x50] sm:$0xff]
        %v478 = vld [vmem:[#allocation2 + $0x58] sm:$0xff]
        %v479 = vld [vmem:[%s3] sm:$0xff]
        %v480 = vld [vmem:[%s3 + $0x8] sm:$0xff]
        %v481 = vld [vmem:[%s3 + $0x10] sm:$0xff]
        %v482 = vld [vmem:[%s3 + $0x18] sm:$0xff]
        %v487 = vunpack.c.l.b16 %v479
        %v488 = vunpack.c.h.b16 %v479
        %v489 = vunpack.c.l.b16 %v480
        %v490 = vunpack.c.h.b16 %v480
        %v491 = vunpack.c.l.b16 %v481
        %v492 = vunpack.c.h.b16 %v481
        %v493 = vunpack.c.l.b16 %v482
        %v494 = vunpack.c.h.b16 %v482
        %v495 = vpack.c.b16 %v487, %v487
        %v496 = vpack.c.b16 %v488, %v488
        %v497 = vpack.c.b16 %v489, %v489
        %v498 = vpack.c.b16 %v490, %v490
        %v499 = vpack.c.b16 %v491, %v491
        %v500 = vpack.c.b16 %v492, %v492
        %v501 = vpack.c.b16 %v493, %v493
        %v502 = vpack.c.b16 %v494, %v494
        %vm503 = vcmask 64512
        %v505 = vsel %vm503, %v463, 0
        %v508 = vsel %vm503, %v464, 0
        %v511 = vsel %vm503, %v465, 0
        %v514 = vsel %vm503, %v466, 0
        %vm516 = vcmask 1043456
        %v518 = vsel %vm516, %v495, 0
        %v521 = vsel %vm516, %v496, 0
        %v524 = vsel %vm516, %v497, 0
        %v527 = vsel %vm516, %v498, 0
        %v530 = vsel %vm516, %v499, 0
        %v533 = vsel %vm516, %v500, 0
        %v536 = vsel %vm516, %v501, 0
        %v539 = vsel %vm516, %v502, 0
        %541 = vmatprep.subr.bf16.mxu0 %v521
        %542 = vmatpush1.bf16.msra.mxu0 %v518
        %543 = vmatprep.subr.bf16.mxu0 0
        %544 = vmatpush1.bf16.msra.mxu0 0
        %545 = vmatprep.subr.bf16.mxu0 0
        %546 = vmatpush1.bf16.msra.mxu0 0
        %547 = vmatprep.subr.bf16.mxu0 0
        %548 = vmatpush1.bf16.msra.mxu0 0
        %549 = vmatprep.subr.bf16.mxu0 0
        %550 = vmatpush1.bf16.msra.mxu0 0
        %551 = vmatprep.subr.bf16.mxu0 0
        %552 = vmatpush1.bf16.msra.mxu0 0
        %553 = vmatprep.subr.bf16.mxu0 0
        %554 = vmatpush1.bf16.msra.mxu0 0
        %555 = vmatprep.subr.bf16.mxu0 0
        %556 = vmatpush1.bf16.msra.mxu0 0
        %557 = vmatprep.subr.bf16.mxu0 0
        %558 = vmatpush1.bf16.msra.mxu0 0
        %559 = vmatprep.subr.bf16.mxu0 0
        %560 = vmatpush1.bf16.msra.mxu0 0
        %561 = vmatprep.subr.bf16.mxu0 0
        %562 = vmatpush1.bf16.msra.mxu0 0
        %563 = vmatprep.subr.bf16.mxu0 0
        %564 = vmatpush1.bf16.msra.mxu0 0
        %565 = vmatprep.subr.bf16.mxu0 0
        %566 = vmatpush1.bf16.msra.mxu0 0
        %567 = vmatprep.subr.bf16.mxu0 0
        %568 = vmatpush1.bf16.msra.mxu0 0
        %569 = vmatprep.subr.bf16.mxu0 0
        %570 = vmatpush1.bf16.msra.mxu0 0
        %571 = vmatprep.subr.bf16.mxu0 0
        %572 = vmatpush1.bf16.msra.mxu0 0
        %573 = vmatprep.mubr.bf16.mxu0 0
        %574 = vmatmul.mubr.bf16.gmra.mrb[0].mxu0 %v505
        %v575 = vpop.f32.mrb[0].mxu0
        %v576 = vadd.f32 0.0, %v575
        %v577 = vpop.f32.mrb[0].mxu0
        %v578 = vadd.f32 0.0, %v577
        %v579 = vpop.f32.mrb[0].mxu0
        %v580 = vadd.f32 0.0, %v579
        %v581 = vpop.f32.mrb[0].mxu0
        %v582 = vadd.f32 0.0, %v581
        %583 = vmatprep.mubr.bf16.mxu0 0
        %584 = vmatmul.mubr.bf16.gmra.mrb[0].mxu0 %v508
        %v585 = vpop.f32.mrb[0].mxu0
        %v586 = vadd.f32 0.0, %v585
        %v587 = vpop.f32.mrb[0].mxu0
        %v588 = vadd.f32 0.0, %v587
        %v589 = vpop.f32.mrb[0].mxu0
        %v590 = vadd.f32 0.0, %v589
        %v591 = vpop.f32.mrb[0].mxu0
        %v592 = vadd.f32 0.0, %v591
        %593 = vmatprep.mubr.bf16.mxu0 0
        %594 = vmatmul.mubr.bf16.gmra.mrb[0].mxu0 %v511
        %v595 = vpop.f32.mrb[0].mxu0
        %v596 = vadd.f32 0.0, %v595
        %v597 = vpop.f32.mrb[0].mxu0
        %v598 = vadd.f32 0.0, %v597
        %v599 = vpop.f32.mrb[0].mxu0
        %v600 = vadd.f32 0.0, %v599
        %v601 = vpop.f32.mrb[0].mxu0
        %v602 = vadd.f32 0.0, %v601
        %603 = vmatprep.mubr.bf16.mxu0 0
        %604 = vmatmul.mubr.bf16.gmra.mrb[0].mxu0 %v514
        %v605 = vpop.f32.mrb[0].mxu0
        %v606 = vadd.f32 0.0, %v605
        %v607 = vpop.f32.mrb[0].mxu0
        %v608 = vadd.f32 0.0, %v607
        %v609 = vpop.f32.mrb[0].mxu0
        %v610 = vadd.f32 0.0, %v609
        %v611 = vpop.f32.mrb[0].mxu0
        %v612 = vadd.f32 0.0, %v611
        %613 = vdwg.mxu0
        %614 = vmatprep.subr.bf16.mxu0 %v527
        %615 = vmatpush1.bf16.msra.mxu0 %v524
        %616 = vmatprep.subr.bf16.mxu0 0
        %617 = vmatpush1.bf16.msra.mxu0 0
        %618 = vmatprep.subr.bf16.mxu0 0
        %619 = vmatpush1.bf16.msra.mxu0 0
        %620 = vmatprep.subr.bf16.mxu0 0
        %621 = vmatpush1.bf16.msra.mxu0 0
        %622 = vmatprep.subr.bf16.mxu0 0
        %623 = vmatpush1.bf16.msra.mxu0 0
        %624 = vmatprep.subr.bf16.mxu0 0
        %625 = vmatpush1.bf16.msra.mxu0 0
        %626 = vmatprep.subr.bf16.mxu0 0
        %627 = vmatpush1.bf16.msra.mxu0 0
        %628 = vmatprep.subr.bf16.mxu0 0
        %629 = vmatpush1.bf16.msra.mxu0 0
        %630 = vmatprep.subr.bf16.mxu0 0
        %631 = vmatpush1.bf16.msra.mxu0 0
        %632 = vmatprep.subr.bf16.mxu0 0
        %633 = vmatpush1.bf16.msra.mxu0 0
        %634 = vmatprep.subr.bf16.mxu0 0
        %635 = vmatpush1.bf16.msra.mxu0 0
        %636 = vmatprep.subr.bf16.mxu0 0
        %637 = vmatpush1.bf16.msra.mxu0 0
        %638 = vmatprep.subr.bf16.mxu0 0
        %639 = vmatpush1.bf16.msra.mxu0 0
        %640 = vmatprep.subr.bf16.mxu0 0
        %641 = vmatpush1.bf16.msra.mxu0 0
        %642 = vmatprep.subr.bf16.mxu0 0
        %643 = vmatpush1.bf16.msra.mxu0 0
        %644 = vmatprep.subr.bf16.mxu0 0
        %645 = vmatpush1.bf16.msra.mxu0 0
        %646 = vmatprep.mubr.bf16.mxu0 0
        %647 = vmatmul.mubr.bf16.gmra.mrb[0].mxu0 %v505
        %v648 = vpop.f32.mrb[0].mxu0
        %v649 = vadd.f32 0.0, %v648
        %v650 = vpop.f32.mrb[0].mxu0
        %v651 = vadd.f32 0.0, %v650
        %v652 = vpop.f32.mrb[0].mxu0
        %v653 = vadd.f32 0.0, %v652
        %v654 = vpop.f32.mrb[0].mxu0
        %v655 = vadd.f32 0.0, %v654
        %656 = vmatprep.mubr.bf16.mxu0 0
        %657 = vmatmul.mubr.bf16.gmra.mrb[0].mxu0 %v508
        %v658 = vpop.f32.mrb[0].mxu0
        %v659 = vadd.f32 0.0, %v658
        %v660 = vpop.f32.mrb[0].mxu0
        %v661 = vadd.f32 0.0, %v660
        %v662 = vpop.f32.mrb[0].mxu0
        %v663 = vadd.f32 0.0, %v662
        %v664 = vpop.f32.mrb[0].mxu0
        %v665 = vadd.f32 0.0, %v664
        %666 = vmatprep.mubr.bf16.mxu0 0
        %667 = vmatmul.mubr.bf16.gmra.mrb[0].mxu0 %v511
        %v668 = vpop.f32.mrb[0].mxu0
        %v669 = vadd.f32 0.0, %v668
        %v670 = vpop.f32.mrb[0].mxu0
        %v671 = vadd.f32 0.0, %v670
        %v672 = vpop.f32.mrb[0].mxu0
        %v673 = vadd.f32 0.0, %v672
        %v674 = vpop.f32.mrb[0].mxu0
        %v675 = vadd.f32 0.0, %v674
        %676 = vmatprep.mubr.bf16.mxu0 0
        %677 = vmatmul.mubr.bf16.gmra.mrb[0].mxu0 %v514
        %v678 = vpop.f32.mrb[0].mxu0
        %v679 = vadd.f32 0.0, %v678
        %v680 = vpop.f32.mrb[0].mxu0
        %v681 = vadd.f32 0.0, %v680
        %v682 = vpop.f32.mrb[0].mxu0
        %v683 = vadd.f32 0.0, %v682
        %v684 = vpop.f32.mrb[0].mxu0
        %v685 = vadd.f32 0.0, %v684
        %686 = vdwg.mxu0
        %687 = vmatprep.subr.bf16.mxu0 %v533
        %688 = vmatpush1.bf16.msra.mxu0 %v530
        %689 = vmatprep.subr.bf16.mxu0 0
        %690 = vmatpush1.bf16.msra.mxu0 0
        %691 = vmatprep.subr.bf16.mxu0 0
        %692 = vmatpush1.bf16.msra.mxu0 0
        %693 = vmatprep.subr.bf16.mxu0 0
        %694 = vmatpush1.bf16.msra.mxu0 0
        %695 = vmatprep.subr.bf16.mxu0 0
        %696 = vmatpush1.bf16.msra.mxu0 0
        %697 = vmatprep.subr.bf16.mxu0 0
        %698 = vmatpush1.bf16.msra.mxu0 0
        %699 = vmatprep.subr.bf16.mxu0 0
        %700 = vmatpush1.bf16.msra.mxu0 0
        %701 = vmatprep.subr.bf16.mxu0 0
        %702 = vmatpush1.bf16.msra.mxu0 0
        %703 = vmatprep.subr.bf16.mxu0 0
        %704 = vmatpush1.bf16.msra.mxu0 0
        %705 = vmatprep.subr.bf16.mxu0 0
        %706 = vmatpush1.bf16.msra.mxu0 0
        %707 = vmatprep.subr.bf16.mxu0 0
        %708 = vmatpush1.bf16.msra.mxu0 0
        %709 = vmatprep.subr.bf16.mxu0 0
        %710 = vmatpush1.bf16.msra.mxu0 0
        %711 = vmatprep.subr.bf16.mxu0 0
        %712 = vmatpush1.bf16.msra.mxu0 0
        %713 = vmatprep.subr.bf16.mxu0 0
        %714 = vmatpush1.bf16.msra.mxu0 0
        %715 = vmatprep.subr.bf16.mxu0 0
        %716 = vmatpush1.bf16.msra.mxu0 0
        %717 = vmatprep.subr.bf16.mxu0 0
        %718 = vmatpush1.bf16.msra.mxu0 0
        %719 = vmatprep.mubr.bf16.mxu0 0
        %720 = vmatmul.mubr.bf16.gmra.mrb[0].mxu0 %v505
        %v721 = vpop.f32.mrb[0].mxu0
        %v722 = vadd.f32 0.0, %v721
        %v723 = vpop.f32.mrb[0].mxu0
        %v724 = vadd.f32 0.0, %v723
        %v725 = vpop.f32.mrb[0].mxu0
        %v726 = vadd.f32 0.0, %v725
        %v727 = vpop.f32.mrb[0].mxu0
        %v728 = vadd.f32 0.0, %v727
        %729 = vmatprep.mubr.bf16.mxu0 0
        %730 = vmatmul.mubr.bf16.gmra.mrb[0].mxu0 %v508
        %v731 = vpop.f32.mrb[0].mxu0
        %v732 = vadd.f32 0.0, %v731
        %v733 = vpop.f32.mrb[0].mxu0
        %v734 = vadd.f32 0.0, %v733
        %v735 = vpop.f32.mrb[0].mxu0
        %v736 = vadd.f32 0.0, %v735
        %v737 = vpop.f32.mrb[0].mxu0
        %v738 = vadd.f32 0.0, %v737
        %739 = vmatprep.mubr.bf16.mxu0 0
        %740 = vmatmul.mubr.bf16.gmra.mrb[0].mxu0 %v511
        %v741 = vpop.f32.mrb[0].mxu0
        %v742 = vadd.f32 0.0, %v741
        %v743 = vpop.f32.mrb[0].mxu0
        %v744 = vadd.f32 0.0, %v743
        %v745 = vpop.f32.mrb[0].mxu0
        %v746 = vadd.f32 0.0, %v745
        %v747 = vpop.f32.mrb[0].mxu0
        %v748 = vadd.f32 0.0, %v747
        %749 = vmatprep.mubr.bf16.mxu0 0
        %750 = vmatmul.mubr.bf16.gmra.mrb[0].mxu0 %v514
        %v751 = vpop.f32.mrb[0].mxu0
        %v752 = vadd.f32 0.0, %v751
        %v753 = vpop.f32.mrb[0].mxu0
        %v754 = vadd.f32 0.0, %v753
        %v755 = vpop.f32.mrb[0].mxu0
        %v756 = vadd.f32 0.0, %v755
        %v757 = vpop.f32.mrb[0].mxu0
        %v758 = vadd.f32 0.0, %v757
        %759 = vdwg.mxu0
        %760 = vmatprep.subr.bf16.mxu0 %v539
        %761 = vmatpush1.bf16.msra.mxu0 %v536
        %762 = vmatprep.subr.bf16.mxu0 0
        %763 = vmatpush1.bf16.msra.mxu0 0
        %764 = vmatprep.subr.bf16.mxu0 0
        %765 = vmatpush1.bf16.msra.mxu0 0
        %766 = vmatprep.subr.bf16.mxu0 0
        %767 = vmatpush1.bf16.msra.mxu0 0
        %768 = vmatprep.subr.bf16.mxu0 0
        %769 = vmatpush1.bf16.msra.mxu0 0
        %770 = vmatprep.subr.bf16.mxu0 0
        %771 = vmatpush1.bf16.msra.mxu0 0
        %772 = vmatprep.subr.bf16.mxu0 0
        %773 = vmatpush1.bf16.msra.mxu0 0
        %774 = vmatprep.subr.bf16.mxu0 0
        %775 = vmatpush1.bf16.msra.mxu0 0
        %776 = vmatprep.subr.bf16.mxu0 0
        %777 = vmatpush1.bf16.msra.mxu0 0
        %778 = vmatprep.subr.bf16.mxu0 0
        %779 = vmatpush1.bf16.msra.mxu0 0
        %780 = vmatprep.subr.bf16.mxu0 0
        %781 = vmatpush1.bf16.msra.mxu0 0
        %782 = vmatprep.subr.bf16.mxu0 0
        %783 = vmatpush1.bf16.msra.mxu0 0
        %784 = vmatprep.subr.bf16.mxu0 0
        %785 = vmatpush1.bf16.msra.mxu0 0
        %786 = vmatprep.subr.bf16.mxu0 0
        %787 = vmatpush1.bf16.msra.mxu0 0
        %788 = vmatprep.subr.bf16.mxu0 0
        %789 = vmatpush1.bf16.msra.mxu0 0
        %790 = vmatprep.subr.bf16.mxu0 0
        %791 = vmatpush1.bf16.msra.mxu0 0
        %792 = vmatprep.mubr.bf16.mxu0 0
        %793 = vmatmul.mubr.bf16.gmra.mrb[0].mxu0 %v505
        %v794 = vpop.f32.mrb[0].mxu0
        %v795 = vadd.f32 0.0, %v794
        %v796 = vpop.f32.mrb[0].mxu0
        %v797 = vadd.f32 0.0, %v796
        %v798 = vpop.f32.mrb[0].mxu0
        %v799 = vadd.f32 0.0, %v798
        %v800 = vpop.f32.mrb[0].mxu0
        %v801 = vadd.f32 0.0, %v800
        %802 = vmatprep.mubr.bf16.mxu0 0
        %803 = vmatmul.mubr.bf16.gmra.mrb[0].mxu0 %v508
        %v804 = vpop.f32.mrb[0].mxu0
        %v805 = vadd.f32 0.0, %v804
        %v806 = vpop.f32.mrb[0].mxu0
        %v807 = vadd.f32 0.0, %v806
        %v808 = vpop.f32.mrb[0].mxu0
        %v809 = vadd.f32 0.0, %v808
        %v810 = vpop.f32.mrb[0].mxu0
        %v811 = vadd.f32 0.0, %v810
        %812 = vmatprep.mubr.bf16.mxu0 0
        %813 = vmatmul.mubr.bf16.gmra.mrb[0].mxu0 %v511
        %v814 = vpop.f32.mrb[0].mxu0
        %v815 = vadd.f32 0.0, %v814
        %v816 = vpop.f32.mrb[0].mxu0
        %v817 = vadd.f32 0.0, %v816
        %v818 = vpop.f32.mrb[0].mxu0
        %v819 = vadd.f32 0.0, %v818
        %v820 = vpop.f32.mrb[0].mxu0
        %v821 = vadd.f32 0.0, %v820
        %822 = vmatprep.mubr.bf16.mxu0 0
        %823 = vmatmul.mubr.bf16.gmra.mrb[0].mxu0 %v514
        %v824 = vpop.f32.mrb[0].mxu0
        %v825 = vadd.f32 0.0, %v824
        %v826 = vpop.f32.mrb[0].mxu0
        %v827 = vadd.f32 0.0, %v826
        %v828 = vpop.f32.mrb[0].mxu0
        %v829 = vadd.f32 0.0, %v828
        %v830 = vpop.f32.mrb[0].mxu0
        %v831 = vadd.f32 0.0, %v830
        %832 = vdwg.mxu0
        %v845 = vunpack.c.l.b16 %v467
        %v846 = vunpack.c.h.b16 %v467
        %v847 = vunpack.c.l.b16 %v468
        %v848 = vunpack.c.h.b16 %v468
        %v849 = vunpack.c.l.b16 %v469
        %v850 = vunpack.c.h.b16 %v469
        %v851 = vunpack.c.l.b16 %v470
        %v852 = vunpack.c.h.b16 %v470
        %v853 = vunpack.c.l.b16 %v471
        %v854 = vunpack.c.h.b16 %v471
        %v855 = vunpack.c.l.b16 %v472
        %v856 = vunpack.c.h.b16 %v472
        %v857 = vunpack.c.l.b16 %v473
        %v858 = vunpack.c.h.b16 %v473
        %v859 = vunpack.c.l.b16 %v474
        %v860 = vunpack.c.h.b16 %v474
        %v861 = vunpack.c.l.b16 %v475
        %v862 = vunpack.c.h.b16 %v475
        %v863 = vunpack.c.l.b16 %v476
        %v864 = vunpack.c.h.b16 %v476
        %v865 = vunpack.c.l.b16 %v477
        %v866 = vunpack.c.h.b16 %v477
        %v867 = vunpack.c.l.b16 %v478
        %v868 = vunpack.c.h.b16 %v478
        %v869 = vpack.c.b16 %v853, %v845
        %v870 = vpack.c.b16 %v854, %v846
        %v871 = vpack.c.b16 %v855, %v847
        %v872 = vpack.c.b16 %v856, %v848
        %v873 = vpack.c.b16 %v857, %v849
        %v874 = vpack.c.b16 %v858, %v850
        %v875 = vpack.c.b16 %v859, %v851
        %v876 = vpack.c.b16 %v860, %v852
        %v877 = vpack.c.b16 %v861, %v861
        %v878 = vpack.c.b16 %v862, %v862
        %v879 = vpack.c.b16 %v863, %v863
        %v880 = vpack.c.b16 %v864, %v864
        %v881 = vpack.c.b16 %v865, %v865
        %v882 = vpack.c.b16 %v866, %v866
        %v883 = vpack.c.b16 %v867, %v867
        %v884 = vpack.c.b16 %v868, %v868
        %vm893 = vcmask 195584
        %v895 = vsel %vm893, %v451, 0
        %v898 = vsel %vm893, %v452, 0
        %v901 = vsel %vm893, %v453, 0
        %v904 = vsel %vm893, %v454, 0
        %v907 = vsel %vm516, %v877, 0
        %v910 = vsel %vm516, %v878, 0
        %v913 = vsel %vm516, %v879, 0
        %v916 = vsel %vm516, %v880, 0
        %v919 = vsel %vm516, %v881, 0
        %v922 = vsel %vm516, %v882, 0
        %v925 = vsel %vm516, %v883, 0
        %v928 = vsel %vm516, %v884, 0
        %930 = vmatprep.subr.bf16.mxu0 %v870
        %931 = vmatpush1.bf16.msra.mxu0 %v869
        %932 = vmatprep.subr.bf16.mxu0 %v910
        %933 = vmatpush1.bf16.msra.mxu0 %v907
        %934 = vmatprep.subr.bf16.mxu0 0
        %935 = vmatpush1.bf16.msra.mxu0 0
        %936 = vmatprep.subr.bf16.mxu0 0
        %937 = vmatpush1.bf16.msra.mxu0 0
        %938 = vmatprep.subr.bf16.mxu0 0
        %939 = vmatpush1.bf16.msra.mxu0 0
        %940 = vmatprep.subr.bf16.mxu0 0
        %941 = vmatpush1.bf16.msra.mxu0 0
        %942 = vmatprep.subr.bf16.mxu0 0
        %943 = vmatpush1.bf16.msra.mxu0 0
        %944 = vmatprep.subr.bf16.mxu0 0
        %945 = vmatpush1.bf16.msra.mxu0 0
        %946 = vmatprep.subr.bf16.mxu0 0
        %947 = vmatpush1.bf16.msra.mxu0 0
        %948 = vmatprep.subr.bf16.mxu0 0
        %949 = vmatpush1.bf16.msra.mxu0 0
        %950 = vmatprep.subr.bf16.mxu0 0
        %951 = vmatpush1.bf16.msra.mxu0 0
        %952 = vmatprep.subr.bf16.mxu0 0
        %953 = vmatpush1.bf16.msra.mxu0 0
        %954 = vmatprep.subr.bf16.mxu0 0
        %955 = vmatpush1.bf16.msra.mxu0 0
        %956 = vmatprep.subr.bf16.mxu0 0
        %957 = vmatpush1.bf16.msra.mxu0 0
        %958 = vmatprep.subr.bf16.mxu0 0
        %959 = vmatpush1.bf16.msra.mxu0 0
        %960 = vmatprep.subr.bf16.mxu0 0
        %961 = vmatpush1.bf16.msra.mxu0 0
        %962 = vmatprep.mubr.bf16.mxu0 0
        %963 = vmatmul.mubr.bf16.gmra.mrb[0].mxu0 %v895
        %v964 = vpop.f32.mrb[0].mxu0
        %v965 = vadd.f32 %v576, %v964
        %v966 = vpop.f32.mrb[0].mxu0
        %v967 = vadd.f32 %v578, %v966
        %v968 = vpop.f32.mrb[0].mxu0
        %v969 = vadd.f32 %v580, %v968
        %v970 = vpop.f32.mrb[0].mxu0
        %v971 = vadd.f32 %v582, %v970
        %972 = vmatprep.mubr.bf16.mxu0 0
        %973 = vmatmul.mubr.bf16.gmra.mrb[0].mxu0 %v898
        %v974 = vpop.f32.mrb[0].mxu0
        %v975 = vadd.f32 %v586, %v974
        %v976 = vpop.f32.mrb[0].mxu0
        %v977 = vadd.f32 %v588, %v976
        %v978 = vpop.f32.mrb[0].mxu0
        %v979 = vadd.f32 %v590, %v978
        %v980 = vpop.f32.mrb[0].mxu0
        %v981 = vadd.f32 %v592, %v980
        %982 = vmatprep.mubr.bf16.mxu0 0
        %983 = vmatmul.mubr.bf16.gmra.mrb[0].mxu0 %v901
        %v984 = vpop.f32.mrb[0].mxu0
        %v985 = vadd.f32 %v596, %v984
        %v986 = vpop.f32.mrb[0].mxu0
        %v987 = vadd.f32 %v598, %v986
        %v988 = vpop.f32.mrb[0].mxu0
        %v989 = vadd.f32 %v600, %v988
        %v990 = vpop.f32.mrb[0].mxu0
        %v991 = vadd.f32 %v602, %v990
        %992 = vmatprep.mubr.bf16.mxu0 0
        %993 = vmatmul.mubr.bf16.gmra.mrb[0].mxu0 %v904
        %v994 = vpop.f32.mrb[0].mxu0
        %v995 = vadd.f32 %v606, %v994
        %v996 = vpop.f32.mrb[0].mxu0
        %v997 = vadd.f32 %v608, %v996
        %v998 = vpop.f32.mrb[0].mxu0
        %v999 = vadd.f32 %v610, %v998
        %v1000 = vpop.f32.mrb[0].mxu0
        %v1001 = vadd.f32 %v612, %v1000
        %1002 = vdwg.mxu0
        %1003 = vmatprep.subr.bf16.mxu0 %v872
        %1004 = vmatpush1.bf16.msra.mxu0 %v871
        %1005 = vmatprep.subr.bf16.mxu0 %v916
        %1006 = vmatpush1.bf16.msra.mxu0 %v913
        %1007 = vmatprep.subr.bf16.mxu0 0
        %1008 = vmatpush1.bf16.msra.mxu0 0
        %1009 = vmatprep.subr.bf16.mxu0 0
        %1010 = vmatpush1.bf16.msra.mxu0 0
        %1011 = vmatprep.subr.bf16.mxu0 0
        %1012 = vmatpush1.bf16.msra.mxu0 0
        %1013 = vmatprep.subr.bf16.mxu0 0
        %1014 = vmatpush1.bf16.msra.mxu0 0
        %1015 = vmatprep.subr.bf16.mxu0 0
        %1016 = vmatpush1.bf16.msra.mxu0 0
        %1017 = vmatprep.subr.bf16.mxu0 0
        %1018 = vmatpush1.bf16.msra.mxu0 0
        %1019 = vmatprep.subr.bf16.mxu0 0
        %1020 = vmatpush1.bf16.msra.mxu0 0
        %1021 = vmatprep.subr.bf16.mxu0 0
        %1022 = vmatpush1.bf16.msra.mxu0 0
        %1023 = vmatprep.subr.bf16.mxu0 0
        %1024 = vmatpush1.bf16.msra.mxu0 0
        %1025 = vmatprep.subr.bf16.mxu0 0
        %1026 = vmatpush1.bf16.msra.mxu0 0
        %1027 = vmatprep.subr.bf16.mxu0 0
        %1028 = vmatpush1.bf16.msra.mxu0 0
        %1029 = vmatprep.subr.bf16.mxu0 0
        %1030 = vmatpush1.bf16.msra.mxu0 0
        %1031 = vmatprep.subr.bf16.mxu0 0
        %1032 = vmatpush1.bf16.msra.mxu0 0
        %1033 = vmatprep.subr.bf16.mxu0 0
        %1034 = vmatpush1.bf16.msra.mxu0 0
        %1035 = vmatprep.mubr.bf16.mxu0 0
        %1036 = vmatmul.mubr.bf16.gmra.mrb[0].mxu0 %v895
        %v1037 = vpop.f32.mrb[0].mxu0
        %v1038 = vadd.f32 %v649, %v1037
        %v1039 = vpop.f32.mrb[0].mxu0
        %v1040 = vadd.f32 %v651, %v1039
        %v1041 = vpop.f32.mrb[0].mxu0
        %v1042 = vadd.f32 %v653, %v1041
        %v1043 = vpop.f32.mrb[0].mxu0
        %v1044 = vadd.f32 %v655, %v1043
        %1045 = vmatprep.mubr.bf16.mxu0 0
        %1046 = vmatmul.mubr.bf16.gmra.mrb[0].mxu0 %v898
        %v1047 = vpop.f32.mrb[0].mxu0
        %v1048 = vadd.f32 %v659, %v1047
        %v1049 = vpop.f32.mrb[0].mxu0
        %v1050 = vadd.f32 %v661, %v1049
        %v1051 = vpop.f32.mrb[0].mxu0
        %v1052 = vadd.f32 %v663, %v1051
        %v1053 = vpop.f32.mrb[0].mxu0
        %v1054 = vadd.f32 %v665, %v1053
        %1055 = vmatprep.mubr.bf16.mxu0 0
        %1056 = vmatmul.mubr.bf16.gmra.mrb[0].mxu0 %v901
        %v1057 = vpop.f32.mrb[0].mxu0
        %v1058 = vadd.f32 %v669, %v1057
        %v1059 = vpop.f32.mrb[0].mxu0
        %v1060 = vadd.f32 %v671, %v1059
        %v1061 = vpop.f32.mrb[0].mxu0
        %v1062 = vadd.f32 %v673, %v1061
        %v1063 = vpop.f32.mrb[0].mxu0
        %v1064 = vadd.f32 %v675, %v1063
        %1065 = vmatprep.mubr.bf16.mxu0 0
        %1066 = vmatmul.mubr.bf16.gmra.mrb[0].mxu0 %v904
        %v1067 = vpop.f32.mrb[0].mxu0
        %v1068 = vadd.f32 %v679, %v1067
        %v1069 = vpop.f32.mrb[0].mxu0
        %v1070 = vadd.f32 %v681, %v1069
        %v1071 = vpop.f32.mrb[0].mxu0
        %v1072 = vadd.f32 %v683, %v1071
        %v1073 = vpop.f32.mrb[0].mxu0
        %v1074 = vadd.f32 %v685, %v1073
        %1075 = vdwg.mxu0
        %1076 = vmatprep.subr.bf16.mxu0 %v874
        %1077 = vmatpush1.bf16.msra.mxu0 %v873
        %1078 = vmatprep.subr.bf16.mxu0 %v922
        %1079 = vmatpush1.bf16.msra.mxu0 %v919
        %1080 = vmatprep.subr.bf16.mxu0 0
        %1081 = vmatpush1.bf16.msra.mxu0 0
        %1082 = vmatprep.subr.bf16.mxu0 0
        %1083 = vmatpush1.bf16.msra.mxu0 0
        %1084 = vmatprep.subr.bf16.mxu0 0
        %1085 = vmatpush1.bf16.msra.mxu0 0
        %1086 = vmatprep.subr.bf16.mxu0 0
        %1087 = vmatpush1.bf16.msra.mxu0 0
        %1088 = vmatprep.subr.bf16.mxu0 0
        %1089 = vmatpush1.bf16.msra.mxu0 0
        %1090 = vmatprep.subr.bf16.mxu0 0
        %1091 = vmatpush1.bf16.msra.mxu0 0
        %1092 = vmatprep.subr.bf16.mxu0 0
        %1093 = vmatpush1.bf16.msra.mxu0 0
        %1094 = vmatprep.subr.bf16.mxu0 0
        %1095 = vmatpush1.bf16.msra.mxu0 0
        %1096 = vmatprep.subr.bf16.mxu0 0
        %1097 = vmatpush1.bf16.msra.mxu0 0
        %1098 = vmatprep.subr.bf16.mxu0 0
        %1099 = vmatpush1.bf16.msra.mxu0 0
        %1100 = vmatprep.subr.bf16.mxu0 0
        %1101 = vmatpush1.bf16.msra.mxu0 0
        %1102 = vmatprep.subr.bf16.mxu0 0
        %1103 = vmatpush1.bf16.msra.mxu0 0
        %1104 = vmatprep.subr.bf16.mxu0 0
        %1105 = vmatpush1.bf16.msra.mxu0 0
        %1106 = vmatprep.subr.bf16.mxu0 0
        %1107 = vmatpush1.bf16.msra.mxu0 0
        %1108 = vmatprep.mubr.bf16.mxu0 0
        %1109 = vmatmul.mubr.bf16.gmra.mrb[0].mxu0 %v895
        %v1110 = vpop.f32.mrb[0].mxu0
        %v1111 = vadd.f32 %v722, %v1110
        %v1112 = vpop.f32.mrb[0].mxu0
        %v1113 = vadd.f32 %v724, %v1112
        %v1114 = vpop.f32.mrb[0].mxu0
        %v1115 = vadd.f32 %v726, %v1114
        %v1116 = vpop.f32.mrb[0].mxu0
        %v1117 = vadd.f32 %v728, %v1116
        %1118 = vmatprep.mubr.bf16.mxu0 0
        %1119 = vmatmul.mubr.bf16.gmra.mrb[0].mxu0 %v898
        %v1120 = vpop.f32.mrb[0].mxu0
        %v1121 = vadd.f32 %v732, %v1120
        %v1122 = vpop.f32.mrb[0].mxu0
        %v1123 = vadd.f32 %v734, %v1122
        %v1124 = vpop.f32.mrb[0].mxu0
        %v1125 = vadd.f32 %v736, %v1124
        %v1126 = vpop.f32.mrb[0].mxu0
        %v1127 = vadd.f32 %v738, %v1126
        %1128 = vmatprep.mubr.bf16.mxu0 0
        %1129 = vmatmul.mubr.bf16.gmra.mrb[0].mxu0 %v901
        %v1130 = vpop.f32.mrb[0].mxu0
        %v1131 = vadd.f32 %v742, %v1130
        %v1132 = vpop.f32.mrb[0].mxu0
        %v1133 = vadd.f32 %v744, %v1132
        %v1134 = vpop.f32.mrb[0].mxu0
        %v1135 = vadd.f32 %v746, %v1134
        %v1136 = vpop.f32.mrb[0].mxu0
        %v1137 = vadd.f32 %v748, %v1136
        %1138 = vmatprep.mubr.bf16.mxu0 0
        %1139 = vmatmul.mubr.bf16.gmra.mrb[0].mxu0 %v904
        %v1140 = vpop.f32.mrb[0].mxu0
        %v1141 = vadd.f32 %v752, %v1140
        %v1142 = vpop.f32.mrb[0].mxu0
        %v1143 = vadd.f32 %v754, %v1142
        %v1144 = vpop.f32.mrb[0].mxu0
        %v1145 = vadd.f32 %v756, %v1144
        %v1146 = vpop.f32.mrb[0].mxu0
        %v1147 = vadd.f32 %v758, %v1146
        %1148 = vdwg.mxu0
        %1149 = vmatprep.subr.bf16.mxu0 %v876
        %1150 = vmatpush1.bf16.msra.mxu0 %v875
        %1151 = vmatprep.subr.bf16.mxu0 %v928
        %1152 = vmatpush1.bf16.msra.mxu0 %v925
        %1153 = vmatprep.subr.bf16.mxu0 0
        %1154 = vmatpush1.bf16.msra.mxu0 0
        %1155 = vmatprep.subr.bf16.mxu0 0
        %1156 = vmatpush1.bf16.msra.mxu0 0
        %1157 = vmatprep.subr.bf16.mxu0 0
        %1158 = vmatpush1.bf16.msra.mxu0 0
        %1159 = vmatprep.subr.bf16.mxu0 0
        %1160 = vmatpush1.bf16.msra.mxu0 0
        %1161 = vmatprep.subr.bf16.mxu0 0
        %1162 = vmatpush1.bf16.msra.mxu0 0
        %1163 = vmatprep.subr.bf16.mxu0 0
        %1164 = vmatpush1.bf16.msra.mxu0 0
        %1165 = vmatprep.subr.bf16.mxu0 0
        %1166 = vmatpush1.bf16.msra.mxu0 0
        %1167 = vmatprep.subr.bf16.mxu0 0
        %1168 = vmatpush1.bf16.msra.mxu0 0
        %1169 = vmatprep.subr.bf16.mxu0 0
        %1170 = vmatpush1.bf16.msra.mxu0 0
        %1171 = vmatprep.subr.bf16.mxu0 0
        %1172 = vmatpush1.bf16.msra.mxu0 0
        %1173 = vmatprep.subr.bf16.mxu0 0
        %1174 = vmatpush1.bf16.msra.mxu0 0
        %1175 = vmatprep.subr.bf16.mxu0 0
        %1176 = vmatpush1.bf16.msra.mxu0 0
        %1177 = vmatprep.subr.bf16.mxu0 0
        %1178 = vmatpush1.bf16.msra.mxu0 0
        %1179 = vmatprep.subr.bf16.mxu0 0
        %1180 = vmatpush1.bf16.msra.mxu0 0
        %1181 = vmatprep.mubr.bf16.mxu0 0
        %1182 = vmatmul.mubr.bf16.gmra.mrb[0].mxu0 %v895
        %v1183 = vpop.f32.mrb[0].mxu0
        %v1184 = vadd.f32 %v795, %v1183
        %v1185 = vpop.f32.mrb[0].mxu0
        %v1186 = vadd.f32 %v797, %v1185
        %v1187 = vpop.f32.mrb[0].mxu0
        %v1188 = vadd.f32 %v799, %v1187
        %v1189 = vpop.f32.mrb[0].mxu0
        %v1190 = vadd.f32 %v801, %v1189
        %1191 = vmatprep.mubr.bf16.mxu0 0
        %1192 = vmatmul.mubr.bf16.gmra.mrb[0].mxu0 %v898
        %v1193 = vpop.f32.mrb[0].mxu0
        %v1194 = vadd.f32 %v805, %v1193
        %v1195 = vpop.f32.mrb[0].mxu0
        %v1196 = vadd.f32 %v807, %v1195
        %v1197 = vpop.f32.mrb[0].mxu0
        %v1198 = vadd.f32 %v809, %v1197
        %v1199 = vpop.f32.mrb[0].mxu0
        %v1200 = vadd.f32 %v811, %v1199
        %1201 = vmatprep.mubr.bf16.mxu0 0
        %1202 = vmatmul.mubr.bf16.gmra.mrb[0].mxu0 %v901
        %v1203 = vpop.f32.mrb[0].mxu0
        %v1204 = vadd.f32 %v815, %v1203
        %v1205 = vpop.f32.mrb[0].mxu0
        %v1206 = vadd.f32 %v817, %v1205
        %v1207 = vpop.f32.mrb[0].mxu0
        %v1208 = vadd.f32 %v819, %v1207
        %v1209 = vpop.f32.mrb[0].mxu0
        %v1210 = vadd.f32 %v821, %v1209
        %1211 = vmatprep.mubr.bf16.mxu0 0
        %1212 = vmatmul.mubr.bf16.gmra.mrb[0].mxu0 %v904
        %v1213 = vpop.f32.mrb[0].mxu0
        %v1214 = vadd.f32 %v825, %v1213
        %v1215 = vpop.f32.mrb[0].mxu0
        %v1216 = vadd.f32 %v827, %v1215
        %v1217 = vpop.f32.mrb[0].mxu0
        %v1218 = vadd.f32 %v829, %v1217
        %v1219 = vpop.f32.mrb[0].mxu0
        %v1220 = vadd.f32 %v831, %v1219
        %1221 = vdwg.mxu0
        %v1222 = vld [vmem:[%s4] sm:$0xff]
        %v1224 = vlaneseq
        %v1225 = vshrl.u32 %v1224, 7
        %v1226 = vsub.s32 0, %v1225
        %v1227 = vrot.slane %v1222, %v1226
        %v1228 = vlaneseq
        %v1229 = vshrl.u32 %v1228, 7
        %v1230 = vsub.s32 1, %v1229
        %v1231 = vrot.slane %v1222, %v1230
        %v1232 = vlaneseq
        %v1233 = vshrl.u32 %v1232, 7
        %v1234 = vsub.s32 2, %v1233
        %v1235 = vrot.slane %v1222, %v1234
        %v1236 = vlaneseq
        %v1237 = vshrl.u32 %v1236, 7
        %v1238 = vsub.s32 3, %v1237
        %v1239 = vrot.slane %v1222, %v1238
        %v1240 = vlaneseq
        %v1241 = vshrl.u32 %v1240, 7
        %v1242 = vsub.s32 4, %v1241
        %v1243 = vrot.slane %v1222, %v1242
        %v1244 = vlaneseq
        %v1245 = vshrl.u32 %v1244, 7
        %v1246 = vsub.s32 5, %v1245
        %v1247 = vrot.slane %v1222, %v1246
        %v1248 = vlaneseq
        %v1249 = vshrl.u32 %v1248, 7
        %v1250 = vsub.s32 6, %v1249
        %v1251 = vrot.slane %v1222, %v1250
        %v1252 = vlaneseq
        %v1253 = vshrl.u32 %v1252, 7
        %v1254 = vsub.s32 7, %v1253
        %v1255 = vrot.slane %v1222, %v1254
        %v1264 = vadd.f32 %v965, %v1227
        %v1265 = vadd.f32 %v967, %v1231
        %v1266 = vadd.f32 %v1038, %v1235
        %v1267 = vadd.f32 %v1040, %v1239
        %v1268 = vadd.f32 %v1111, %v1243
        %v1269 = vadd.f32 %v1113, %v1247
        %v1270 = vadd.f32 %v1184, %v1251
        %v1271 = vadd.f32 %v1186, %v1255
        %v1272 = vadd.f32 %v969, %v1227
        %v1273 = vadd.f32 %v971, %v1231
        %v1274 = vadd.f32 %v1042, %v1235
        %v1275 = vadd.f32 %v1044, %v1239
        %v1276 = vadd.f32 %v1115, %v1243
        %v1277 = vadd.f32 %v1117, %v1247
        %v1278 = vadd.f32 %v1188, %v1251
        %v1279 = vadd.f32 %v1190, %v1255
        %v1280 = vadd.f32 %v975, %v1227
        %v1281 = vadd.f32 %v977, %v1231
        %v1282 = vadd.f32 %v1048, %v1235
        %v1283 = vadd.f32 %v1050, %v1239
        %v1284 = vadd.f32 %v1121, %v1243
        %v1285 = vadd.f32 %v1123, %v1247
        %v1286 = vadd.f32 %v1194, %v1251
        %v1287 = vadd.f32 %v1196, %v1255
        %v1288 = vadd.f32 %v979, %v1227
        %v1289 = vadd.f32 %v981, %v1231
        %v1290 = vadd.f32 %v1052, %v1235
        %v1291 = vadd.f32 %v1054, %v1239
        %v1292 = vadd.f32 %v1125, %v1243
        %v1293 = vadd.f32 %v1127, %v1247
        %v1294 = vadd.f32 %v1198, %v1251
        %v1295 = vadd.f32 %v1200, %v1255
        %v1296 = vadd.f32 %v985, %v1227
        %v1297 = vadd.f32 %v987, %v1231
        %v1298 = vadd.f32 %v1058, %v1235
        %v1299 = vadd.f32 %v1060, %v1239
        %v1300 = vadd.f32 %v1131, %v1243
        %v1301 = vadd.f32 %v1133, %v1247
        %v1302 = vadd.f32 %v1204, %v1251
        %v1303 = vadd.f32 %v1206, %v1255
        %v1304 = vadd.f32 %v989, %v1227
        %v1305 = vadd.f32 %v991, %v1231
        %v1306 = vadd.f32 %v1062, %v1235
        %v1307 = vadd.f32 %v1064, %v1239
        %v1308 = vadd.f32 %v1135, %v1243
        %v1309 = vadd.f32 %v1137, %v1247
        %v1310 = vadd.f32 %v1208, %v1251
        %v1311 = vadd.f32 %v1210, %v1255
        %v1312 = vadd.f32 %v995, %v1227
        %v1313 = vadd.f32 %v997, %v1231
        %v1314 = vadd.f32 %v1068, %v1235
        %v1315 = vadd.f32 %v1070, %v1239
        %v1316 = vadd.f32 %v1141, %v1243
        %v1317 = vadd.f32 %v1143, %v1247
        %v1318 = vadd.f32 %v1214, %v1251
        %v1319 = vadd.f32 %v1216, %v1255
        %v1320 = vadd.f32 %v999, %v1227
        %v1321 = vadd.f32 %v1001, %v1231
        %v1322 = vadd.f32 %v1072, %v1235
        %v1323 = vadd.f32 %v1074, %v1239
        %v1324 = vadd.f32 %v1145, %v1243
        %v1325 = vadd.f32 %v1147, %v1247
        %v1326 = vadd.f32 %v1218, %v1251
        %v1327 = vadd.f32 %v1220, %v1255
        %v1328 = vmax.f32 %v1264, 0.0
        %v1329 = vmax.f32 %v1265, 0.0
        %v1330 = vmax.f32 %v1266, 0.0
        %v1331 = vmax.f32 %v1267, 0.0
        %v1332 = vmax.f32 %v1268, 0.0
        %v1333 = vmax.f32 %v1269, 0.0
        %v1334 = vmax.f32 %v1270, 0.0
        %v1335 = vmax.f32 %v1271, 0.0
        %v1336 = vmax.f32 %v1272, 0.0
        %v1337 = vmax.f32 %v1273, 0.0
        %v1338 = vmax.f32 %v1274, 0.0
        %v1339 = vmax.f32 %v1275, 0.0
        %v1340 = vmax.f32 %v1276, 0.0
        %v1341 = vmax.f32 %v1277, 0.0
        %v1342 = vmax.f32 %v1278, 0.0
        %v1343 = vmax.f32 %v1279, 0.0
        %v1344 = vmax.f32 %v1280, 0.0
        %v1345 = vmax.f32 %v1281, 0.0
        %v1346 = vmax.f32 %v1282, 0.0
        %v1347 = vmax.f32 %v1283, 0.0
        %v1348 = vmax.f32 %v1284, 0.0
        %v1349 = vmax.f32 %v1285, 0.0
        %v1350 = vmax.f32 %v1286, 0.0
        %v1351 = vmax.f32 %v1287, 0.0
        %v1352 = vmax.f32 %v1288, 0.0
        %v1353 = vmax.f32 %v1289, 0.0
        %v1354 = vmax.f32 %v1290, 0.0
        %v1355 = vmax.f32 %v1291, 0.0
        %v1356 = vmax.f32 %v1292, 0.0
        %v1357 = vmax.f32 %v1293, 0.0
        %v1358 = vmax.f32 %v1294, 0.0
        %v1359 = vmax.f32 %v1295, 0.0
        %v1360 = vmax.f32 %v1296, 0.0
        %v1361 = vmax.f32 %v1297, 0.0
        %v1362 = vmax.f32 %v1298, 0.0
        %v1363 = vmax.f32 %v1299, 0.0
        %v1364 = vmax.f32 %v1300, 0.0
        %v1365 = vmax.f32 %v1301, 0.0
        %v1366 = vmax.f32 %v1302, 0.0
        %v1367 = vmax.f32 %v1303, 0.0
        %v1368 = vmax.f32 %v1304, 0.0
        %v1369 = vmax.f32 %v1305, 0.0
        %v1370 = vmax.f32 %v1306, 0.0
        %v1371 = vmax.f32 %v1307, 0.0
        %v1372 = vmax.f32 %v1308, 0.0
        %v1373 = vmax.f32 %v1309, 0.0
        %v1374 = vmax.f32 %v1310, 0.0
        %v1375 = vmax.f32 %v1311, 0.0
        %v1376 = vmax.f32 %v1312, 0.0
        %v1377 = vmax.f32 %v1313, 0.0
        %v1378 = vmax.f32 %v1314, 0.0
        %v1379 = vmax.f32 %v1315, 0.0
        %v1380 = vmax.f32 %v1316, 0.0
        %v1381 = vmax.f32 %v1317, 0.0
        %v1382 = vmax.f32 %v1318, 0.0
        %v1383 = vmax.f32 %v1319, 0.0
        %v1384 = vmax.f32 %v1320, 0.0
        %v1385 = vmax.f32 %v1321, 0.0
        %v1386 = vmax.f32 %v1322, 0.0
        %v1387 = vmax.f32 %v1323, 0.0
        %v1388 = vmax.f32 %v1324, 0.0
        %v1389 = vmax.f32 %v1325, 0.0
        %v1390 = vmax.f32 %v1326, 0.0
        %v1391 = vmax.f32 %v1327, 0.0
        %v1392 = vpack.c.bf16 %v1336, %v1328
        %v1393 = vpack.c.bf16 %v1337, %v1329
        %v1394 = vpack.c.bf16 %v1338, %v1330
        %v1395 = vpack.c.bf16 %v1339, %v1331
        %v1396 = vpack.c.bf16 %v1352, %v1344
        %v1397 = vpack.c.bf16 %v1353, %v1345
        %v1398 = vpack.c.bf16 %v1354, %v1346
        %v1399 = vpack.c.bf16 %v1355, %v1347
        %v1400 = vpack.c.bf16 %v1368, %v1360
        %v1401 = vpack.c.bf16 %v1369, %v1361
        %v1402 = vpack.c.bf16 %v1370, %v1362
        %v1403 = vpack.c.bf16 %v1371, %v1363
        %v1404 = vpack.c.bf16 %v1384, %v1376
        %v1405 = vpack.c.bf16 %v1385, %v1377
        %v1406 = vpack.c.bf16 %v1386, %v1378
        %v1407 = vpack.c.bf16 %v1387, %v1379
        %v1408 = vpack.c.bf16 %v1340, %v1332
        %v1409 = vpack.c.bf16 %v1341, %v1333
        %v1410 = vpack.c.bf16 %v1342, %v1334
        %v1411 = vpack.c.bf16 %v1343, %v1335
        %v1412 = vpack.c.bf16 %v1356, %v1348
        %v1413 = vpack.c.bf16 %v1357, %v1349
        %v1414 = vpack.c.bf16 %v1358, %v1350
        %v1415 = vpack.c.bf16 %v1359, %v1351
        %v1416 = vpack.c.bf16 %v1372, %v1364
        %v1417 = vpack.c.bf16 %v1373, %v1365
        %v1418 = vpack.c.bf16 %v1374, %v1366
        %v1419 = vpack.c.bf16 %v1375, %v1367
        %v1420 = vpack.c.bf16 %v1388, %v1380
        %v1421 = vpack.c.bf16 %v1389, %v1381
        %v1422 = vpack.c.bf16 %v1390, %v1382
        %v1423 = vpack.c.bf16 %v1391, %v1383
        %v1424 = vld [vmem:[%s5] sm:$0xff]
        %v1425 = vld [vmem:[%s5 + $0x8] sm:$0xff]
        %v1426 = vld [vmem:[%s5 + $0x10] sm:$0xff]
        %v1427 = vld [vmem:[%s5 + $0x18] sm:$0xff]
        %v1428 = vld [vmem:[%s5 + $0x20] sm:$0xff]
        %v1429 = vld [vmem:[%s5 + $0x28] sm:$0xff]
        %v1430 = vld [vmem:[%s5 + $0x30] sm:$0xff]
        %v1431 = vld [vmem:[%s5 + $0x38] sm:$0xff]
        %v1432 = vld [vmem:[%s5 + $0x40] sm:$0xff]
        %v1433 = vld [vmem:[%s5 + $0x48] sm:$0xff]
        %v1434 = vld [vmem:[%s5 + $0x50] sm:$0xff]
        %v1435 = vld [vmem:[%s5 + $0x58] sm:$0xff]
        %v1436 = vld [vmem:[%s5 + $0x60] sm:$0xff]
        %v1437 = vld [vmem:[%s5 + $0x68] sm:$0xff]
        %v1438 = vld [vmem:[%s5 + $0x70] sm:$0xff]
        %v1439 = vld [vmem:[%s5 + $0x78] sm:$0xff]
        %v1440 = vld [vmem:[%s5 + $0x80] sm:$0xff]
        %v1441 = vld [vmem:[%s5 + $0x88] sm:$0xff]
        %v1442 = vld [vmem:[%s5 + $0x90] sm:$0xff]
        %v1443 = vld [vmem:[%s5 + $0x98] sm:$0xff]
        %v1444 = vld [vmem:[%s5 + $0xa0] sm:$0xff]
        %v1445 = vld [vmem:[%s5 + $0xa8] sm:$0xff]
        %v1446 = vld [vmem:[%s5 + $0xb0] sm:$0xff]
        %v1447 = vld [vmem:[%s5 + $0xb8] sm:$0xff]
        %v1448 = vld [vmem:[%s5 + $0xc0] sm:$0xff]
        %v1449 = vld [vmem:[%s5 + $0xc8] sm:$0xff]
        %v1450 = vld [vmem:[%s5 + $0xd0] sm:$0xff]
        %v1451 = vld [vmem:[%s5 + $0xd8] sm:$0xff]
        %v1452 = vld [vmem:[%s5 + $0xe0] sm:$0xff]
        %v1453 = vld [vmem:[%s5 + $0xe8] sm:$0xff]
        %v1454 = vld [vmem:[%s5 + $0xf0] sm:$0xff]
        %v1455 = vld [vmem:[%s5 + $0xf8] sm:$0xff]
        %v1456 = vld [vmem:[%s5 + $0x100] sm:$0xff]
        %v1457 = vld [vmem:[%s5 + $0x108] sm:$0xff]
        %v1458 = vld [vmem:[%s5 + $0x110] sm:$0xff]
        %v1459 = vld [vmem:[%s5 + $0x118] sm:$0xff]
        %v1460 = vld [vmem:[%s5 + $0x120] sm:$0xff]
        %v1461 = vld [vmem:[%s5 + $0x128] sm:$0xff]
        %v1462 = vld [vmem:[%s5 + $0x130] sm:$0xff]
        %v1463 = vld [vmem:[%s5 + $0x138] sm:$0xff]
        %v1464 = vld [vmem:[%s5 + $0x140] sm:$0xff]
        %v1465 = vld [vmem:[%s5 + $0x148] sm:$0xff]
        %v1466 = vld [vmem:[%s5 + $0x150] sm:$0xff]
        %v1467 = vld [vmem:[%s5 + $0x158] sm:$0xff]
        %v1468 = vld [vmem:[%s5 + $0x160] sm:$0xff]
        %v1469 = vld [vmem:[%s5 + $0x168] sm:$0xff]
        %v1470 = vld [vmem:[%s5 + $0x170] sm:$0xff]
        %v1471 = vld [vmem:[%s5 + $0x178] sm:$0xff]
        %v1472 = vld [vmem:[%s5 + $0x180] sm:$0xff]
        %v1473 = vld [vmem:[%s5 + $0x188] sm:$0xff]
        %v1474 = vld [vmem:[%s5 + $0x190] sm:$0xff]
        %v1475 = vld [vmem:[%s5 + $0x198] sm:$0xff]
        %v1476 = vld [vmem:[%s5 + $0x1a0] sm:$0xff]
        %v1477 = vld [vmem:[%s5 + $0x1a8] sm:$0xff]
        %v1478 = vld [vmem:[%s5 + $0x1b0] sm:$0xff]
        %v1479 = vld [vmem:[%s5 + $0x1b8] sm:$0xff]
        %v1480 = vld [vmem:[%s5 + $0x1c0] sm:$0xff]
        %v1481 = vld [vmem:[%s5 + $0x1c8] sm:$0xff]
        %v1482 = vld [vmem:[%s5 + $0x1d0] sm:$0xff]
        %v1483 = vld [vmem:[%s5 + $0x1d8] sm:$0xff]
        %v1484 = vld [vmem:[%s5 + $0x1e0] sm:$0xff]
        %v1485 = vld [vmem:[%s5 + $0x1e8] sm:$0xff]
        %v1486 = vld [vmem:[%s5 + $0x1f0] sm:$0xff]
        %v1487 = vld [vmem:[%s5 + $0x1f8] sm:$0xff]
        %v1488 = vld [vmem:[%s5 + $0x200] sm:$0xff]
        %v1489 = vld [vmem:[%s5 + $0x208] sm:$0xff]
        %v1490 = vld [vmem:[%s5 + $0x210] sm:$0xff]
        %v1491 = vld [vmem:[%s5 + $0x218] sm:$0xff]
        %v1492 = vld [vmem:[%s5 + $0x220] sm:$0xff]
        %v1493 = vld [vmem:[%s5 + $0x228] sm:$0xff]
        %v1494 = vld [vmem:[%s5 + $0x230] sm:$0xff]
        %v1495 = vld [vmem:[%s5 + $0x238] sm:$0xff]
        %v1496 = vld [vmem:[%s5 + $0x240] sm:$0xff]
        %v1497 = vld [vmem:[%s5 + $0x248] sm:$0xff]
        %v1498 = vld [vmem:[%s5 + $0x250] sm:$0xff]
        %v1499 = vld [vmem:[%s5 + $0x258] sm:$0xff]
        %v1500 = vld [vmem:[%s5 + $0x260] sm:$0xff]
        %v1501 = vld [vmem:[%s5 + $0x268] sm:$0xff]
        %v1502 = vld [vmem:[%s5 + $0x270] sm:$0xff]
        %v1503 = vld [vmem:[%s5 + $0x278] sm:$0xff]
        %v1504 = vld [vmem:[%s5 + $0x280] sm:$0xff]
        %v1505 = vld [vmem:[%s5 + $0x288] sm:$0xff]
        %v1506 = vld [vmem:[%s5 + $0x290] sm:$0xff]
        %v1507 = vld [vmem:[%s5 + $0x298] sm:$0xff]
        %v1508 = vld [vmem:[%s5 + $0x2a0] sm:$0xff]
        %v1509 = vld [vmem:[%s5 + $0x2a8] sm:$0xff]
        %v1510 = vld [vmem:[%s5 + $0x2b0] sm:$0xff]
        %v1511 = vld [vmem:[%s5 + $0x2b8] sm:$0xff]
        %v1512 = vld [vmem:[%s5 + $0x2c0] sm:$0xff]
        %v1513 = vld [vmem:[%s5 + $0x2c8] sm:$0xff]
        %v1514 = vld [vmem:[%s5 + $0x2d0] sm:$0xff]
        %v1515 = vld [vmem:[%s5 + $0x2d8] sm:$0xff]
        %v1516 = vld [vmem:[%s5 + $0x2e0] sm:$0xff]
        %v1517 = vld [vmem:[%s5 + $0x2e8] sm:$0xff]
        %v1518 = vld [vmem:[%s5 + $0x2f0] sm:$0xff]
        %v1519 = vld [vmem:[%s5 + $0x2f8] sm:$0xff]
        %v1520 = vld [vmem:[%s5 + $0x300] sm:$0xff]
        %v1521 = vld [vmem:[%s5 + $0x308] sm:$0xff]
        %v1522 = vld [vmem:[%s5 + $0x310] sm:$0xff]
        %v1523 = vld [vmem:[%s5 + $0x318] sm:$0xff]
        %v1524 = vld [vmem:[%s5 + $0x320] sm:$0xff]
        %v1525 = vld [vmem:[%s5 + $0x328] sm:$0xff]
        %v1526 = vld [vmem:[%s5 + $0x330] sm:$0xff]
        %v1527 = vld [vmem:[%s5 + $0x338] sm:$0xff]
        %v1528 = vld [vmem:[%s5 + $0x340] sm:$0xff]
        %v1529 = vld [vmem:[%s5 + $0x348] sm:$0xff]
        %v1530 = vld [vmem:[%s5 + $0x350] sm:$0xff]
        %v1531 = vld [vmem:[%s5 + $0x358] sm:$0xff]
        %v1532 = vld [vmem:[%s5 + $0x360] sm:$0xff]
        %v1533 = vld [vmem:[%s5 + $0x368] sm:$0xff]
        %v1534 = vld [vmem:[%s5 + $0x370] sm:$0xff]
        %v1535 = vld [vmem:[%s5 + $0x378] sm:$0xff]
        %v1536 = vld [vmem:[%s5 + $0x380] sm:$0xff]
        %v1537 = vld [vmem:[%s5 + $0x388] sm:$0xff]
        %v1538 = vld [vmem:[%s5 + $0x390] sm:$0xff]
        %v1539 = vld [vmem:[%s5 + $0x398] sm:$0xff]
        %v1540 = vld [vmem:[%s5 + $0x3a0] sm:$0xff]
        %v1541 = vld [vmem:[%s5 + $0x3a8] sm:$0xff]
        %v1542 = vld [vmem:[%s5 + $0x3b0] sm:$0xff]
        %v1543 = vld [vmem:[%s5 + $0x3b8] sm:$0xff]
        %v1544 = vld [vmem:[%s5 + $0x3c0] sm:$0xff]
        %v1545 = vld [vmem:[%s5 + $0x3c8] sm:$0xff]
        %v1546 = vld [vmem:[%s5 + $0x3d0] sm:$0xff]
        %v1547 = vld [vmem:[%s5 + $0x3d8] sm:$0xff]
        %v1548 = vld [vmem:[%s5 + $0x3e0] sm:$0xff]
        %v1549 = vld [vmem:[%s5 + $0x3e8] sm:$0xff]
        %v1550 = vld [vmem:[%s5 + $0x3f0] sm:$0xff]
        %v1551 = vld [vmem:[%s5 + $0x3f8] sm:$0xff]
        %v1552 = vld [vmem:[%s6] sm:$0xf]
        %v1554 = vlaneseq
        %v1555 = vshrl.u32 %v1554, 7
        %v1556 = vsub.s32 0, %v1555
        %v1557 = vrot.slane %v1552, %v1556
        %v1558 = vlaneseq
        %v1559 = vshrl.u32 %v1558, 7
        %v1560 = vsub.s32 1, %v1559
        %v1561 = vrot.slane %v1552, %v1560
        %v1562 = vlaneseq
        %v1563 = vshrl.u32 %v1562, 7
        %v1564 = vsub.s32 2, %v1563
        %v1565 = vrot.slane %v1552, %v1564
        %v1566 = vlaneseq
        %v1567 = vshrl.u32 %v1566, 7
        %v1568 = vsub.s32 3, %v1567
        %v1569 = vrot.slane %v1552, %v1568
        %v1702 = vunpack.c.l.b16 %v1424
        %v1703 = vunpack.c.h.b16 %v1424
        %v1704 = vunpack.c.l.b16 %v1425
        %v1705 = vunpack.c.h.b16 %v1425
        %v1706 = vunpack.c.l.b16 %v1426
        %v1707 = vunpack.c.h.b16 %v1426
        %v1708 = vunpack.c.l.b16 %v1427
        %v1709 = vunpack.c.h.b16 %v1427
        %v1710 = vunpack.c.l.b16 %v1428
        %v1711 = vunpack.c.h.b16 %v1428
        %v1712 = vunpack.c.l.b16 %v1429
        %v1713 = vunpack.c.h.b16 %v1429
        %v1714 = vunpack.c.l.b16 %v1430
        %v1715 = vunpack.c.h.b16 %v1430
        %v1716 = vunpack.c.l.b16 %v1431
        %v1717 = vunpack.c.h.b16 %v1431
        %v1718 = vunpack.c.l.b16 %v1432
        %v1719 = vunpack.c.h.b16 %v1432
        %v1720 = vunpack.c.l.b16 %v1433
        %v1721 = vunpack.c.h.b16 %v1433
        %v1722 = vunpack.c.l.b16 %v1434
        %v1723 = vunpack.c.h.b16 %v1434
        %v1724 = vunpack.c.l.b16 %v1435
        %v1725 = vunpack.c.h.b16 %v1435
        %v1726 = vunpack.c.l.b16 %v1436
        %v1727 = vunpack.c.h.b16 %v1436
        %v1728 = vunpack.c.l.b16 %v1437
        %v1729 = vunpack.c.h.b16 %v1437
        %v1730 = vunpack.c.l.b16 %v1438
        %v1731 = vunpack.c.h.b16 %v1438
        %v1732 = vunpack.c.l.b16 %v1439
        %v1733 = vunpack.c.h.b16 %v1439
        %v1734 = vunpack.c.l.b16 %v1440
        %v1735 = vunpack.c.h.b16 %v1440
        %v1736 = vunpack.c.l.b16 %v1441
        %v1737 = vunpack.c.h.b16 %v1441
        %v1738 = vunpack.c.l.b16 %v1442
        %v1739 = vunpack.c.h.b16 %v1442
        %v1740 = vunpack.c.l.b16 %v1443
        %v1741 = vunpack.c.h.b16 %v1443
        %v1742 = vunpack.c.l.b16 %v1444
        %v1743 = vunpack.c.h.b16 %v1444
        %v1744 = vunpack.c.l.b16 %v1445
        %v1745 = vunpack.c.h.b16 %v1445
        %v1746 = vunpack.c.l.b16 %v1446
        %v1747 = vunpack.c.h.b16 %v1446
        %v1748 = vunpack.c.l.b16 %v1447
        %v1749 = vunpack.c.h.b16 %v1447
        %v1750 = vunpack.c.l.b16 %v1448
        %v1751 = vunpack.c.h.b16 %v1448
        %v1752 = vunpack.c.l.b16 %v1449
        %v1753 = vunpack.c.h.b16 %v1449
        %v1754 = vunpack.c.l.b16 %v1450
        %v1755 = vunpack.c.h.b16 %v1450
        %v1756 = vunpack.c.l.b16 %v1451
        %v1757 = vunpack.c.h.b16 %v1451
        %v1758 = vunpack.c.l.b16 %v1452
        %v1759 = vunpack.c.h.b16 %v1452
        %v1760 = vunpack.c.l.b16 %v1453
        %v1761 = vunpack.c.h.b16 %v1453
        %v1762 = vunpack.c.l.b16 %v1454
        %v1763 = vunpack.c.h.b16 %v1454
        %v1764 = vunpack.c.l.b16 %v1455
        %v1765 = vunpack.c.h.b16 %v1455
        %v1766 = vunpack.c.l.b16 %v1456
        %v1767 = vunpack.c.h.b16 %v1456
        %v1768 = vunpack.c.l.b16 %v1457
        %v1769 = vunpack.c.h.b16 %v1457
        %v1770 = vunpack.c.l.b16 %v1458
        %v1771 = vunpack.c.h.b16 %v1458
        %v1772 = vunpack.c.l.b16 %v1459
        %v1773 = vunpack.c.h.b16 %v1459
        %v1774 = vunpack.c.l.b16 %v1460
        %v1775 = vunpack.c.h.b16 %v1460
        %v1776 = vunpack.c.l.b16 %v1461
        %v1777 = vunpack.c.h.b16 %v1461
        %v1778 = vunpack.c.l.b16 %v1462
        %v1779 = vunpack.c.h.b16 %v1462
        %v1780 = vunpack.c.l.b16 %v1463
        %v1781 = vunpack.c.h.b16 %v1463
        %v1782 = vunpack.c.l.b16 %v1464
        %v1783 = vunpack.c.h.b16 %v1464
        %v1784 = vunpack.c.l.b16 %v1465
        %v1785 = vunpack.c.h.b16 %v1465
        %v1786 = vunpack.c.l.b16 %v1466
        %v1787 = vunpack.c.h.b16 %v1466
        %v1788 = vunpack.c.l.b16 %v1467
        %v1789 = vunpack.c.h.b16 %v1467
        %v1790 = vunpack.c.l.b16 %v1468
        %v1791 = vunpack.c.h.b16 %v1468
        %v1792 = vunpack.c.l.b16 %v1469
        %v1793 = vunpack.c.h.b16 %v1469
        %v1794 = vunpack.c.l.b16 %v1470
        %v1795 = vunpack.c.h.b16 %v1470
        %v1796 = vunpack.c.l.b16 %v1471
        %v1797 = vunpack.c.h.b16 %v1471
        %v1798 = vunpack.c.l.b16 %v1472
        %v1799 = vunpack.c.h.b16 %v1472
        %v1800 = vunpack.c.l.b16 %v1473
        %v1801 = vunpack.c.h.b16 %v1473
        %v1802 = vunpack.c.l.b16 %v1474
        %v1803 = vunpack.c.h.b16 %v1474
        %v1804 = vunpack.c.l.b16 %v1475
        %v1805 = vunpack.c.h.b16 %v1475
        %v1806 = vunpack.c.l.b16 %v1476
        %v1807 = vunpack.c.h.b16 %v1476
        %v1808 = vunpack.c.l.b16 %v1477
        %v1809 = vunpack.c.h.b16 %v1477
        %v1810 = vunpack.c.l.b16 %v1478
        %v1811 = vunpack.c.h.b16 %v1478
        %v1812 = vunpack.c.l.b16 %v1479
        %v1813 = vunpack.c.h.b16 %v1479
        %v1814 = vunpack.c.l.b16 %v1480
        %v1815 = vunpack.c.h.b16 %v1480
        %v1816 = vunpack.c.l.b16 %v1481
        %v1817 = vunpack.c.h.b16 %v1481
        %v1818 = vunpack.c.l.b16 %v1482
        %v1819 = vunpack.c.h.b16 %v1482
        %v1820 = vunpack.c.l.b16 %v1483
        %v1821 = vunpack.c.h.b16 %v1483
        %v1822 = vunpack.c.l.b16 %v1484
        %v1823 = vunpack.c.h.b16 %v1484
        %v1824 = vunpack.c.l.b16 %v1485
        %v1825 = vunpack.c.h.b16 %v1485
        %v1826 = vunpack.c.l.b16 %v1486
        %v1827 = vunpack.c.h.b16 %v1486
        %v1828 = vunpack.c.l.b16 %v1487
        %v1829 = vunpack.c.h.b16 %v1487
        %v1830 = vunpack.c.l.b16 %v1488
        %v1831 = vunpack.c.h.b16 %v1488
        %v1832 = vunpack.c.l.b16 %v1489
        %v1833 = vunpack.c.h.b16 %v1489
        %v1834 = vunpack.c.l.b16 %v1490
        %v1835 = vunpack.c.h.b16 %v1490
        %v1836 = vunpack.c.l.b16 %v1491
        %v1837 = vunpack.c.h.b16 %v1491
        %v1838 = vunpack.c.l.b16 %v1492
        %v1839 = vunpack.c.h.b16 %v1492
        %v1840 = vunpack.c.l.b16 %v1493
        %v1841 = vunpack.c.h.b16 %v1493
        %v1842 = vunpack.c.l.b16 %v1494
        %v1843 = vunpack.c.h.b16 %v1494
        %v1844 = vunpack.c.l.b16 %v1495
        %v1845 = vunpack.c.h.b16 %v1495
        %v1846 = vunpack.c.l.b16 %v1496
        %v1847 = vunpack.c.h.b16 %v1496
        %v1848 = vunpack.c.l.b16 %v1497
        %v1849 = vunpack.c.h.b16 %v1497
        %v1850 = vunpack.c.l.b16 %v1498
        %v1851 = vunpack.c.h.b16 %v1498
        %v1852 = vunpack.c.l.b16 %v1499
        %v1853 = vunpack.c.h.b16 %v1499
        %v1854 = vunpack.c.l.b16 %v1500
        %v1855 = vunpack.c.h.b16 %v1500
        %v1856 = vunpack.c.l.b16 %v1501
        %v1857 = vunpack.c.h.b16 %v1501
        %v1858 = vunpack.c.l.b16 %v1502
        %v1859 = vunpack.c.h.b16 %v1502
        %v1860 = vunpack.c.l.b16 %v1503
        %v1861 = vunpack.c.h.b16 %v1503
        %v1862 = vunpack.c.l.b16 %v1504
        %v1863 = vunpack.c.h.b16 %v1504
        %v1864 = vunpack.c.l.b16 %v1505
        %v1865 = vunpack.c.h.b16 %v1505
        %v1866 = vunpack.c.l.b16 %v1506
        %v1867 = vunpack.c.h.b16 %v1506
        %v1868 = vunpack.c.l.b16 %v1507
        %v1869 = vunpack.c.h.b16 %v1507
        %v1870 = vunpack.c.l.b16 %v1508
        %v1871 = vunpack.c.h.b16 %v1508
        %v1872 = vunpack.c.l.b16 %v1509
        %v1873 = vunpack.c.h.b16 %v1509
        %v1874 = vunpack.c.l.b16 %v1510
        %v1875 = vunpack.c.h.b16 %v1510
        %v1876 = vunpack.c.l.b16 %v1511
        %v1877 = vunpack.c.h.b16 %v1511
        %v1878 = vunpack.c.l.b16 %v1512
        %v1879 = vunpack.c.h.b16 %v1512
        %v1880 = vunpack.c.l.b16 %v1513
        %v1881 = vunpack.c.h.b16 %v1513
        %v1882 = vunpack.c.l.b16 %v1514
        %v1883 = vunpack.c.h.b16 %v1514
        %v1884 = vunpack.c.l.b16 %v1515
        %v1885 = vunpack.c.h.b16 %v1515
        %v1886 = vunpack.c.l.b16 %v1516
        %v1887 = vunpack.c.h.b16 %v1516
        %v1888 = vunpack.c.l.b16 %v1517
        %v1889 = vunpack.c.h.b16 %v1517
        %v1890 = vunpack.c.l.b16 %v1518
        %v1891 = vunpack.c.h.b16 %v1518
        %v1892 = vunpack.c.l.b16 %v1519
        %v1893 = vunpack.c.h.b16 %v1519
        %v1894 = vunpack.c.l.b16 %v1520
        %v1895 = vunpack.c.h.b16 %v1520
        %v1896 = vunpack.c.l.b16 %v1521
        %v1897 = vunpack.c.h.b16 %v1521
        %v1898 = vunpack.c.l.b16 %v1522
        %v1899 = vunpack.c.h.b16 %v1522
        %v1900 = vunpack.c.l.b16 %v1523
        %v1901 = vunpack.c.h.b16 %v1523
        %v1902 = vunpack.c.l.b16 %v1524
        %v1903 = vunpack.c.h.b16 %v1524
        %v1904 = vunpack.c.l.b16 %v1525
        %v1905 = vunpack.c.h.b16 %v1525
        %v1906 = vunpack.c.l.b16 %v1526
        %v1907 = vunpack.c.h.b16 %v1526
        %v1908 = vunpack.c.l.b16 %v1527
        %v1909 = vunpack.c.h.b16 %v1527
        %v1910 = vunpack.c.l.b16 %v1528
        %v1911 = vunpack.c.h.b16 %v1528
        %v1912 = vunpack.c.l.b16 %v1529
        %v1913 = vunpack.c.h.b16 %v1529
        %v1914 = vunpack.c.l.b16 %v1530
        %v1915 = vunpack.c.h.b16 %v1530
        %v1916 = vunpack.c.l.b16 %v1531
        %v1917 = vunpack.c.h.b16 %v1531
        %v1918 = vunpack.c.l.b16 %v1532
        %v1919 = vunpack.c.h.b16 %v1532
        %v1920 = vunpack.c.l.b16 %v1533
        %v1921 = vunpack.c.h.b16 %v1533
        %v1922 = vunpack.c.l.b16 %v1534
        %v1923 = vunpack.c.h.b16 %v1534
        %v1924 = vunpack.c.l.b16 %v1535
        %v1925 = vunpack.c.h.b16 %v1535
        %v1926 = vunpack.c.l.b16 %v1536
        %v1927 = vunpack.c.h.b16 %v1536
        %v1928 = vunpack.c.l.b16 %v1537
        %v1929 = vunpack.c.h.b16 %v1537
        %v1930 = vunpack.c.l.b16 %v1538
        %v1931 = vunpack.c.h.b16 %v1538
        %v1932 = vunpack.c.l.b16 %v1539
        %v1933 = vunpack.c.h.b16 %v1539
        %v1934 = vunpack.c.l.b16 %v1540
        %v1935 = vunpack.c.h.b16 %v1540
        %v1936 = vunpack.c.l.b16 %v1541
        %v1937 = vunpack.c.h.b16 %v1541
        %v1938 = vunpack.c.l.b16 %v1542
        %v1939 = vunpack.c.h.b16 %v1542
        %v1940 = vunpack.c.l.b16 %v1543
        %v1941 = vunpack.c.h.b16 %v1543
        %v1942 = vunpack.c.l.b16 %v1544
        %v1943 = vunpack.c.h.b16 %v1544
        %v1944 = vunpack.c.l.b16 %v1545
        %v1945 = vunpack.c.h.b16 %v1545
        %v1946 = vunpack.c.l.b16 %v1546
        %v1947 = vunpack.c.h.b16 %v1546
        %v1948 = vunpack.c.l.b16 %v1547
        %v1949 = vunpack.c.h.b16 %v1547
        %v1950 = vunpack.c.l.b16 %v1548
        %v1951 = vunpack.c.h.b16 %v1548
        %v1952 = vunpack.c.l.b16 %v1549
        %v1953 = vunpack.c.h.b16 %v1549
        %v1954 = vunpack.c.l.b16 %v1550
        %v1955 = vunpack.c.h.b16 %v1550
        %v1956 = vunpack.c.l.b16 %v1551
        %v1957 = vunpack.c.h.b16 %v1551
        %v1958 = vpack.c.b16 %v1706, %v1702
        %v1959 = vpack.c.b16 %v1707, %v1703
        %v1960 = vpack.c.b16 %v1708, %v1704
        %v1961 = vpack.c.b16 %v1709, %v1705
        %v1962 = vpack.c.b16 %v1714, %v1710
        %v1963 = vpack.c.b16 %v1715, %v1711
        %v1964 = vpack.c.b16 %v1716, %v1712
        %v1965 = vpack.c.b16 %v1717, %v1713
        %v1966 = vpack.c.b16 %v1722, %v1718
        %v1967 = vpack.c.b16 %v1723, %v1719
        %v1968 = vpack.c.b16 %v1724, %v1720
        %v1969 = vpack.c.b16 %v1725, %v1721
        %v1970 = vpack.c.b16 %v1730, %v1726
        %v1971 = vpack.c.b16 %v1731, %v1727
        %v1972 = vpack.c.b16 %v1732, %v1728
        %v1973 = vpack.c.b16 %v1733, %v1729
        %v1974 = vpack.c.b16 %v1738, %v1734
        %v1975 = vpack.c.b16 %v1739, %v1735
        %v1976 = vpack.c.b16 %v1740, %v1736
        %v1977 = vpack.c.b16 %v1741, %v1737
        %v1978 = vpack.c.b16 %v1746, %v1742
        %v1979 = vpack.c.b16 %v1747, %v1743
        %v1980 = vpack.c.b16 %v1748, %v1744
        %v1981 = vpack.c.b16 %v1749, %v1745
        %v1982 = vpack.c.b16 %v1754, %v1750
        %v1983 = vpack.c.b16 %v1755, %v1751
        %v1984 = vpack.c.b16 %v1756, %v1752
        %v1985 = vpack.c.b16 %v1757, %v1753
        %v1986 = vpack.c.b16 %v1762, %v1758
        %v1987 = vpack.c.b16 %v1763, %v1759
        %v1988 = vpack.c.b16 %v1764, %v1760
        %v1989 = vpack.c.b16 %v1765, %v1761
        %v1990 = vpack.c.b16 %v1770, %v1766
        %v1991 = vpack.c.b16 %v1771, %v1767
        %v1992 = vpack.c.b16 %v1772, %v1768
        %v1993 = vpack.c.b16 %v1773, %v1769
        %v1994 = vpack.c.b16 %v1778, %v1774
        %v1995 = vpack.c.b16 %v1779, %v1775
        %v1996 = vpack.c.b16 %v1780, %v1776
        %v1997 = vpack.c.b16 %v1781, %v1777
        %v1998 = vpack.c.b16 %v1786, %v1782
        %v1999 = vpack.c.b16 %v1787, %v1783
        %v2000 = vpack.c.b16 %v1788, %v1784
        %v2001 = vpack.c.b16 %v1789, %v1785
        %v2002 = vpack.c.b16 %v1794, %v1790
        %v2003 = vpack.c.b16 %v1795, %v1791
        %v2004 = vpack.c.b16 %v1796, %v1792
        %v2005 = vpack.c.b16 %v1797, %v1793
        %v2006 = vpack.c.b16 %v1802, %v1798
        %v2007 = vpack.c.b16 %v1803, %v1799
        %v2008 = vpack.c.b16 %v1804, %v1800
        %v2009 = vpack.c.b16 %v1805, %v1801
        %v2010 = vpack.c.b16 %v1810, %v1806
        %v2011 = vpack.c.b16 %v1811, %v1807
        %v2012 = vpack.c.b16 %v1812, %v1808
        %v2013 = vpack.c.b16 %v1813, %v1809
        %v2014 = vpack.c.b16 %v1818, %v1814
        %v2015 = vpack.c.b16 %v1819, %v1815
        %v2016 = vpack.c.b16 %v1820, %v1816
        %v2017 = vpack.c.b16 %v1821, %v1817
        %v2018 = vpack.c.b16 %v1826, %v1822
        %v2019 = vpack.c.b16 %v1827, %v1823
        %v2020 = vpack.c.b16 %v1828, %v1824
        %v2021 = vpack.c.b16 %v1829, %v1825
        %v2022 = vpack.c.b16 %v1834, %v1830
        %v2023 = vpack.c.b16 %v1835, %v1831
        %v2024 = vpack.c.b16 %v1836, %v1832
        %v2025 = vpack.c.b16 %v1837, %v1833
        %v2026 = vpack.c.b16 %v1842, %v1838
        %v2027 = vpack.c.b16 %v1843, %v1839
        %v2028 = vpack.c.b16 %v1844, %v1840
        %v2029 = vpack.c.b16 %v1845, %v1841
        %v2030 = vpack.c.b16 %v1850, %v1846
        %v2031 = vpack.c.b16 %v1851, %v1847
        %v2032 = vpack.c.b16 %v1852, %v1848
        %v2033 = vpack.c.b16 %v1853, %v1849
        %v2034 = vpack.c.b16 %v1858, %v1854
        %v2035 = vpack.c.b16 %v1859, %v1855
        %v2036 = vpack.c.b16 %v1860, %v1856
        %v2037 = vpack.c.b16 %v1861, %v1857
        %v2038 = vpack.c.b16 %v1866, %v1862
        %v2039 = vpack.c.b16 %v1867, %v1863
        %v2040 = vpack.c.b16 %v1868, %v1864
        %v2041 = vpack.c.b16 %v1869, %v1865
        %v2042 = vpack.c.b16 %v1874, %v1870
        %v2043 = vpack.c.b16 %v1875, %v1871
        %v2044 = vpack.c.b16 %v1876, %v1872
        %v2045 = vpack.c.b16 %v1877, %v1873
        %v2046 = vpack.c.b16 %v1882, %v1878
        %v2047 = vpack.c.b16 %v1883, %v1879
        %v2048 = vpack.c.b16 %v1884, %v1880
        %v2049 = vpack.c.b16 %v1885, %v1881
        %v2050 = vpack.c.b16 %v1890, %v1886
        %v2051 = vpack.c.b16 %v1891, %v1887
        %v2052 = vpack.c.b16 %v1892, %v1888
        %v2053 = vpack.c.b16 %v1893, %v1889
        %v2054 = vpack.c.b16 %v1898, %v1894
        %v2055 = vpack.c.b16 %v1899, %v1895
        %v2056 = vpack.c.b16 %v1900, %v1896
        %v2057 = vpack.c.b16 %v1901, %v1897
        %v2058 = vpack.c.b16 %v1906, %v1902
        %v2059 = vpack.c.b16 %v1907, %v1903
        %v2060 = vpack.c.b16 %v1908, %v1904
        %v2061 = vpack.c.b16 %v1909, %v1905
        %v2062 = vpack.c.b16 %v1914, %v1910
        %v2063 = vpack.c.b16 %v1915, %v1911
        %v2064 = vpack.c.b16 %v1916, %v1912
        %v2065 = vpack.c.b16 %v1917, %v1913
        %v2066 = vpack.c.b16 %v1922, %v1918
        %v2067 = vpack.c.b16 %v1923, %v1919
        %v2068 = vpack.c.b16 %v1924, %v1920
        %v2069 = vpack.c.b16 %v1925, %v1921
        %v2070 = vpack.c.b16 %v1930, %v1926
        %v2071 = vpack.c.b16 %v1931, %v1927
        %v2072 = vpack.c.b16 %v1932, %v1928
        %v2073 = vpack.c.b16 %v1933, %v1929
        %v2074 = vpack.c.b16 %v1938, %v1934
        %v2075 = vpack.c.b16 %v1939, %v1935
        %v2076 = vpack.c.b16 %v1940, %v1936
        %v2077 = vpack.c.b16 %v1941, %v1937
        %v2078 = vpack.c.b16 %v1946, %v1942
        %v2079 = vpack.c.b16 %v1947, %v1943
        %v2080 = vpack.c.b16 %v1948, %v1944
        %v2081 = vpack.c.b16 %v1949, %v1945
        %v2082 = vpack.c.b16 %v1954, %v1950
        %v2083 = vpack.c.b16 %v1955, %v1951
        %v2084 = vpack.c.b16 %v1956, %v1952
        %v2085 = vpack.c.b16 %v1957, %v1953
        %2214 = vmatprep.subr.bf16.mxu0 %v1959
        %2215 = vmatpush1.bf16.msra.mxu0 %v1958
        %2216 = vmatprep.subr.bf16.mxu0 %v1963
        %2217 = vmatpush1.bf16.msra.mxu0 %v1962
        %2218 = vmatprep.subr.bf16.mxu0 %v1967
        %2219 = vmatpush1.bf16.msra.mxu0 %v1966
        %2220 = vmatprep.subr.bf16.mxu0 %v1971
        %2221 = vmatpush1.bf16.msra.mxu0 %v1970
        %2222 = vmatprep.subr.bf16.mxu0 %v1975
        %2223 = vmatpush1.bf16.msra.mxu0 %v1974
        %2224 = vmatprep.subr.bf16.mxu0 %v1979
        %2225 = vmatpush1.bf16.msra.mxu0 %v1978
        %2226 = vmatprep.subr.bf16.mxu0 %v1983
        %2227 = vmatpush1.bf16.msra.mxu0 %v1982
        %2228 = vmatprep.subr.bf16.mxu0 %v1987
        %2229 = vmatpush1.bf16.msra.mxu0 %v1986
        %2230 = vmatprep.subr.bf16.mxu0 %v1991
        %2231 = vmatpush1.bf16.msra.mxu0 %v1990
        %2232 = vmatprep.subr.bf16.mxu0 %v1995
        %2233 = vmatpush1.bf16.msra.mxu0 %v1994
        %2234 = vmatprep.subr.bf16.mxu0 %v1999
        %2235 = vmatpush1.bf16.msra.mxu0 %v1998
        %2236 = vmatprep.subr.bf16.mxu0 %v2003
        %2237 = vmatpush1.bf16.msra.mxu0 %v2002
        %2238 = vmatprep.subr.bf16.mxu0 %v2007
        %2239 = vmatpush1.bf16.msra.mxu0 %v2006
        %2240 = vmatprep.subr.bf16.mxu0 %v2011
        %2241 = vmatpush1.bf16.msra.mxu0 %v2010
        %2242 = vmatprep.subr.bf16.mxu0 %v2015
        %2243 = vmatpush1.bf16.msra.mxu0 %v2014
        %2244 = vmatprep.subr.bf16.mxu0 %v2019
        %2245 = vmatpush1.bf16.msra.mxu0 %v2018
        %2246 = vmatprep.mubr.bf16.mxu0 %v1393
        %2247 = vmatmul.mubr.bf16.gmra.mrb[0].mxu0 %v1392
        %v2248 = vpop.f32.mrb[0].mxu0
        %v2249 = vadd.f32 %v1557, %v2248
        %v2250 = vpop.f32.mrb[0].mxu0
        %v2251 = vadd.f32 %v1561, %v2250
        %v2252 = vpop.f32.mrb[0].mxu0
        %v2253 = vadd.f32 %v1557, %v2252
        %v2254 = vpop.f32.mrb[0].mxu0
        %v2255 = vadd.f32 %v1561, %v2254
        %2256 = vmatprep.mubr.bf16.mxu0 %v1397
        %2257 = vmatmul.mubr.bf16.gmra.mrb[0].mxu0 %v1396
        %v2258 = vpop.f32.mrb[0].mxu0
        %v2259 = vadd.f32 %v1557, %v2258
        %v2260 = vpop.f32.mrb[0].mxu0
        %v2261 = vadd.f32 %v1561, %v2260
        %v2262 = vpop.f32.mrb[0].mxu0
        %v2263 = vadd.f32 %v1557, %v2262
        %v2264 = vpop.f32.mrb[0].mxu0
        %v2265 = vadd.f32 %v1561, %v2264
        %2266 = vmatprep.mubr.bf16.mxu0 %v1401
        %2267 = vmatmul.mubr.bf16.gmra.mrb[0].mxu0 %v1400
        %v2268 = vpop.f32.mrb[0].mxu0
        %v2269 = vadd.f32 %v1557, %v2268
        %v2270 = vpop.f32.mrb[0].mxu0
        %v2271 = vadd.f32 %v1561, %v2270
        %v2272 = vpop.f32.mrb[0].mxu0
        %v2273 = vadd.f32 %v1557, %v2272
        %v2274 = vpop.f32.mrb[0].mxu0
        %v2275 = vadd.f32 %v1561, %v2274
        %2276 = vmatprep.mubr.bf16.mxu0 %v1405
        %2277 = vmatmul.mubr.bf16.gmra.mrb[0].mxu0 %v1404
        %v2278 = vpop.f32.mrb[0].mxu0
        %v2279 = vadd.f32 %v1557, %v2278
        %v2280 = vpop.f32.mrb[0].mxu0
        %v2281 = vadd.f32 %v1561, %v2280
        %v2282 = vpop.f32.mrb[0].mxu0
        %v2283 = vadd.f32 %v1557, %v2282
        %v2284 = vpop.f32.mrb[0].mxu0
        %v2285 = vadd.f32 %v1561, %v2284
        %2286 = vdwg.mxu0
        %2287 = vmatprep.subr.bf16.mxu0 %v2023
        %2288 = vmatpush1.bf16.msra.mxu0 %v2022
        %2289 = vmatprep.subr.bf16.mxu0 %v2027
        %2290 = vmatpush1.bf16.msra.mxu0 %v2026
        %2291 = vmatprep.subr.bf16.mxu0 %v2031
        %2292 = vmatpush1.bf16.msra.mxu0 %v2030
        %2293 = vmatprep.subr.bf16.mxu0 %v2035
        %2294 = vmatpush1.bf16.msra.mxu0 %v2034
        %2295 = vmatprep.subr.bf16.mxu0 %v2039
        %2296 = vmatpush1.bf16.msra.mxu0 %v2038
        %2297 = vmatprep.subr.bf16.mxu0 %v2043
        %2298 = vmatpush1.bf16.msra.mxu0 %v2042
        %2299 = vmatprep.subr.bf16.mxu0 %v2047
        %2300 = vmatpush1.bf16.msra.mxu0 %v2046
        %2301 = vmatprep.subr.bf16.mxu0 %v2051
        %2302 = vmatpush1.bf16.msra.mxu0 %v2050
        %2303 = vmatprep.subr.bf16.mxu0 %v2055
        %2304 = vmatpush1.bf16.msra.mxu0 %v2054
        %2305 = vmatprep.subr.bf16.mxu0 %v2059
        %2306 = vmatpush1.bf16.msra.mxu0 %v2058
        %2307 = vmatprep.subr.bf16.mxu0 %v2063
        %2308 = vmatpush1.bf16.msra.mxu0 %v2062
        %2309 = vmatprep.subr.bf16.mxu0 %v2067
        %2310 = vmatpush1.bf16.msra.mxu0 %v2066
        %2311 = vmatprep.subr.bf16.mxu0 %v2071
        %2312 = vmatpush1.bf16.msra.mxu0 %v2070
        %2313 = vmatprep.subr.bf16.mxu0 %v2075
        %2314 = vmatpush1.bf16.msra.mxu0 %v2074
        %2315 = vmatprep.subr.bf16.mxu0 %v2079
        %2316 = vmatpush1.bf16.msra.mxu0 %v2078
        %2317 = vmatprep.subr.bf16.mxu0 %v2083
        %2318 = vmatpush1.bf16.msra.mxu0 %v2082
        %2319 = vmatprep.mubr.bf16.mxu0 %v1395
        %2320 = vmatmul.mubr.bf16.gmra.mrb[0].mxu0 %v1394
        %v2321 = vpop.f32.mrb[0].mxu0
        %v2322 = vadd.f32 %v2249, %v2321
        %v2323 = vpop.f32.mrb[0].mxu0
        %v2324 = vadd.f32 %v2251, %v2323
        %v2325 = vpop.f32.mrb[0].mxu0
        %v2326 = vadd.f32 %v2253, %v2325
        %v2327 = vpop.f32.mrb[0].mxu0
        %v2328 = vadd.f32 %v2255, %v2327
        %2329 = vmatprep.mubr.bf16.mxu0 %v1399
        %2330 = vmatmul.mubr.bf16.gmra.mrb[0].mxu0 %v1398
        %v2331 = vpop.f32.mrb[0].mxu0
        %v2332 = vadd.f32 %v2259, %v2331
        %v2333 = vpop.f32.mrb[0].mxu0
        %v2334 = vadd.f32 %v2261, %v2333
        %v2335 = vpop.f32.mrb[0].mxu0
        %v2336 = vadd.f32 %v2263, %v2335
        %v2337 = vpop.f32.mrb[0].mxu0
        %v2338 = vadd.f32 %v2265, %v2337
        %2339 = vmatprep.mubr.bf16.mxu0 %v1403
        %2340 = vmatmul.mubr.bf16.gmra.mrb[0].mxu0 %v1402
        %v2341 = vpop.f32.mrb[0].mxu0
        %v2342 = vadd.f32 %v2269, %v2341
        %v2343 = vpop.f32.mrb[0].mxu0
        %v2344 = vadd.f32 %v2271, %v2343
        %v2345 = vpop.f32.mrb[0].mxu0
        %v2346 = vadd.f32 %v2273, %v2345
        %v2347 = vpop.f32.mrb[0].mxu0
        %v2348 = vadd.f32 %v2275, %v2347
        %2349 = vmatprep.mubr.bf16.mxu0 %v1407
        %2350 = vmatmul.mubr.bf16.gmra.mrb[0].mxu0 %v1406
        %v2351 = vpop.f32.mrb[0].mxu0
        %v2352 = vadd.f32 %v2279, %v2351
        %v2353 = vpop.f32.mrb[0].mxu0
        %v2354 = vadd.f32 %v2281, %v2353
        %v2355 = vpop.f32.mrb[0].mxu0
        %v2356 = vadd.f32 %v2283, %v2355
        %v2357 = vpop.f32.mrb[0].mxu0
        %v2358 = vadd.f32 %v2285, %v2357
        %2359 = vdwg.mxu0
        %2360 = vmatprep.subr.bf16.mxu0 %v1961
        %2361 = vmatpush1.bf16.msra.mxu0 %v1960
        %2362 = vmatprep.subr.bf16.mxu0 %v1965
        %2363 = vmatpush1.bf16.msra.mxu0 %v1964
        %2364 = vmatprep.subr.bf16.mxu0 %v1969
        %2365 = vmatpush1.bf16.msra.mxu0 %v1968
        %2366 = vmatprep.subr.bf16.mxu0 %v1973
        %2367 = vmatpush1.bf16.msra.mxu0 %v1972
        %2368 = vmatprep.subr.bf16.mxu0 %v1977
        %2369 = vmatpush1.bf16.msra.mxu0 %v1976
        %2370 = vmatprep.subr.bf16.mxu0 %v1981
        %2371 = vmatpush1.bf16.msra.mxu0 %v1980
        %2372 = vmatprep.subr.bf16.mxu0 %v1985
        %2373 = vmatpush1.bf16.msra.mxu0 %v1984
        %2374 = vmatprep.subr.bf16.mxu0 %v1989
        %2375 = vmatpush1.bf16.msra.mxu0 %v1988
        %2376 = vmatprep.subr.bf16.mxu0 %v1993
        %2377 = vmatpush1.bf16.msra.mxu0 %v1992
        %2378 = vmatprep.subr.bf16.mxu0 %v1997
        %2379 = vmatpush1.bf16.msra.mxu0 %v1996
        %2380 = vmatprep.subr.bf16.mxu0 %v2001
        %2381 = vmatpush1.bf16.msra.mxu0 %v2000
        %2382 = vmatprep.subr.bf16.mxu0 %v2005
        %2383 = vmatpush1.bf16.msra.mxu0 %v2004
        %2384 = vmatprep.subr.bf16.mxu0 %v2009
        %2385 = vmatpush1.bf16.msra.mxu0 %v2008
        %2386 = vmatprep.subr.bf16.mxu0 %v2013
        %2387 = vmatpush1.bf16.msra.mxu0 %v2012
        %2388 = vmatprep.subr.bf16.mxu0 %v2017
        %2389 = vmatpush1.bf16.msra.mxu0 %v2016
        %2390 = vmatprep.subr.bf16.mxu0 %v2021
        %2391 = vmatpush1.bf16.msra.mxu0 %v2020
        %2392 = vmatprep.mubr.bf16.mxu0 %v1393
        %2393 = vmatmul.mubr.bf16.gmra.mrb[0].mxu0 %v1392
        %v2394 = vpop.f32.mrb[0].mxu0
        %v2395 = vadd.f32 %v1565, %v2394
        %v2396 = vpop.f32.mrb[0].mxu0
        %v2397 = vadd.f32 %v1569, %v2396
        %v2398 = vpop.f32.mrb[0].mxu0
        %v2399 = vadd.f32 %v1565, %v2398
        %v2400 = vpop.f32.mrb[0].mxu0
        %v2401 = vadd.f32 %v1569, %v2400
        %2402 = vmatprep.mubr.bf16.mxu0 %v1397
        %2403 = vmatmul.mubr.bf16.gmra.mrb[0].mxu0 %v1396
        %v2404 = vpop.f32.mrb[0].mxu0
        %v2405 = vadd.f32 %v1565, %v2404
        %v2406 = vpop.f32.mrb[0].mxu0
        %v2407 = vadd.f32 %v1569, %v2406
        %v2408 = vpop.f32.mrb[0].mxu0
        %v2409 = vadd.f32 %v1565, %v2408
        %v2410 = vpop.f32.mrb[0].mxu0
        %v2411 = vadd.f32 %v1569, %v2410
        %2412 = vmatprep.mubr.bf16.mxu0 %v1401
        %2413 = vmatmul.mubr.bf16.gmra.mrb[0].mxu0 %v1400
        %v2414 = vpop.f32.mrb[0].mxu0
        %v2415 = vadd.f32 %v1565, %v2414
        %v2416 = vpop.f32.mrb[0].mxu0
        %v2417 = vadd.f32 %v1569, %v2416
        %v2418 = vpop.f32.mrb[0].mxu0
        %v2419 = vadd.f32 %v1565, %v2418
        %v2420 = vpop.f32.mrb[0].mxu0
        %v2421 = vadd.f32 %v1569, %v2420
        %2422 = vmatprep.mubr.bf16.mxu0 %v1405
        %2423 = vmatmul.mubr.bf16.gmra.mrb[0].mxu0 %v1404
        %v2424 = vpop.f32.mrb[0].mxu0
        %v2425 = vadd.f32 %v1565, %v2424
        %v2426 = vpop.f32.mrb[0].mxu0
        %v2427 = vadd.f32 %v1569, %v2426
        %v2428 = vpop.f32.mrb[0].mxu0
        %v2429 = vadd.f32 %v1565, %v2428
        %v2430 = vpop.f32.mrb[0].mxu0
        %v2431 = vadd.f32 %v1569, %v2430
        %2432 = vdwg.mxu0
        %2433 = vmatprep.subr.bf16.mxu0 %v2025
        %2434 = vmatpush1.bf16.msra.mxu0 %v2024
        %2435 = vmatprep.subr.bf16.mxu0 %v2029
        %2436 = vmatpush1.bf16.msra.mxu0 %v2028
        %2437 = vmatprep.subr.bf16.mxu0 %v2033
        %2438 = vmatpush1.bf16.msra.mxu0 %v2032
        %2439 = vmatprep.subr.bf16.mxu0 %v2037
        %2440 = vmatpush1.bf16.msra.mxu0 %v2036
        %2441 = vmatprep.subr.bf16.mxu0 %v2041
        %2442 = vmatpush1.bf16.msra.mxu0 %v2040
        %2443 = vmatprep.subr.bf16.mxu0 %v2045
        %2444 = vmatpush1.bf16.msra.mxu0 %v2044
        %2445 = vmatprep.subr.bf16.mxu0 %v2049
        %2446 = vmatpush1.bf16.msra.mxu0 %v2048
        %2447 = vmatprep.subr.bf16.mxu0 %v2053
        %2448 = vmatpush1.bf16.msra.mxu0 %v2052
        %2449 = vmatprep.subr.bf16.mxu0 %v2057
        %2450 = vmatpush1.bf16.msra.mxu0 %v2056
        %2451 = vmatprep.subr.bf16.mxu0 %v2061
        %2452 = vmatpush1.bf16.msra.mxu0 %v2060
        %2453 = vmatprep.subr.bf16.mxu0 %v2065
        %2454 = vmatpush1.bf16.msra.mxu0 %v2064
        %2455 = vmatprep.subr.bf16.mxu0 %v2069
        %2456 = vmatpush1.bf16.msra.mxu0 %v2068
        %2457 = vmatprep.subr.bf16.mxu0 %v2073
        %2458 = vmatpush1.bf16.msra.mxu0 %v2072
        %2459 = vmatprep.subr.bf16.mxu0 %v2077
        %2460 = vmatpush1.bf16.msra.mxu0 %v2076
        %2461 = vmatprep.subr.bf16.mxu0 %v2081
        %2462 = vmatpush1.bf16.msra.mxu0 %v2080
        %2463 = vmatprep.subr.bf16.mxu0 %v2085
        %2464 = vmatpush1.bf16.msra.mxu0 %v2084
        %2465 = vmatprep.mubr.bf16.mxu0 %v1395
        %2466 = vmatmul.mubr.bf16.gmra.mrb[0].mxu0 %v1394
        %v2467 = vpop.f32.mrb[0].mxu0
        %v2468 = vadd.f32 %v2395, %v2467
        %v2469 = vpop.f32.mrb[0].mxu0
        %v2470 = vadd.f32 %v2397, %v2469
        %v2471 = vpop.f32.mrb[0].mxu0
        %v2472 = vadd.f32 %v2399, %v2471
        %v2473 = vpop.f32.mrb[0].mxu0
        %v2474 = vadd.f32 %v2401, %v2473
        %2475 = vmatprep.mubr.bf16.mxu0 %v1399
        %2476 = vmatmul.mubr.bf16.gmra.mrb[0].mxu0 %v1398
        %v2477 = vpop.f32.mrb[0].mxu0
        %v2478 = vadd.f32 %v2405, %v2477
        %v2479 = vpop.f32.mrb[0].mxu0
        %v2480 = vadd.f32 %v2407, %v2479
        %v2481 = vpop.f32.mrb[0].mxu0
        %v2482 = vadd.f32 %v2409, %v2481
        %v2483 = vpop.f32.mrb[0].mxu0
        %v2484 = vadd.f32 %v2411, %v2483
        %2485 = vmatprep.mubr.bf16.mxu0 %v1403
        %2486 = vmatmul.mubr.bf16.gmra.mrb[0].mxu0 %v1402
        %v2487 = vpop.f32.mrb[0].mxu0
        %v2488 = vadd.f32 %v2415, %v2487
        %v2489 = vpop.f32.mrb[0].mxu0
        %v2490 = vadd.f32 %v2417, %v2489
        %v2491 = vpop.f32.mrb[0].mxu0
        %v2492 = vadd.f32 %v2419, %v2491
        %v2493 = vpop.f32.mrb[0].mxu0
        %v2494 = vadd.f32 %v2421, %v2493
        %2495 = vmatprep.mubr.bf16.mxu0 %v1407
        %2496 = vmatmul.mubr.bf16.gmra.mrb[0].mxu0 %v1406
        %v2497 = vpop.f32.mrb[0].mxu0
        %v2498 = vadd.f32 %v2425, %v2497
        %v2499 = vpop.f32.mrb[0].mxu0
        %v2500 = vadd.f32 %v2427, %v2499
        %v2501 = vpop.f32.mrb[0].mxu0
        %v2502 = vadd.f32 %v2429, %v2501
        %v2503 = vpop.f32.mrb[0].mxu0
        %v2504 = vadd.f32 %v2431, %v2503
        %2505 = vdwg.mxu0
        %v2506 = vmax.f32 %v2322, 0.0
        %v2507 = vmax.f32 %v2324, 0.0
        %v2508 = vmax.f32 %v2468, 0.0
        %v2509 = vmax.f32 %v2470, 0.0
        %v2510 = vmax.f32 %v2326, 0.0
        %v2511 = vmax.f32 %v2328, 0.0
        %v2512 = vmax.f32 %v2472, 0.0
        %v2513 = vmax.f32 %v2474, 0.0
        %v2514 = vmax.f32 %v2332, 0.0
        %v2515 = vmax.f32 %v2334, 0.0
        %v2516 = vmax.f32 %v2478, 0.0
        %v2517 = vmax.f32 %v2480, 0.0
        %v2518 = vmax.f32 %v2336, 0.0
        %v2519 = vmax.f32 %v2338, 0.0
        %v2520 = vmax.f32 %v2482, 0.0
        %v2521 = vmax.f32 %v2484, 0.0
        %v2522 = vmax.f32 %v2342, 0.0
        %v2523 = vmax.f32 %v2344, 0.0
        %v2524 = vmax.f32 %v2488, 0.0
        %v2525 = vmax.f32 %v2490, 0.0
        %v2526 = vmax.f32 %v2346, 0.0
        %v2527 = vmax.f32 %v2348, 0.0
        %v2528 = vmax.f32 %v2492, 0.0
        %v2529 = vmax.f32 %v2494, 0.0
        %v2530 = vmax.f32 %v2352, 0.0
        %v2531 = vmax.f32 %v2354, 0.0
        %v2532 = vmax.f32 %v2498, 0.0
        %v2533 = vmax.f32 %v2500, 0.0
        %v2534 = vmax.f32 %v2356, 0.0
        %v2535 = vmax.f32 %v2358, 0.0
        %v2536 = vmax.f32 %v2502, 0.0
        %v2537 = vmax.f32 %v2504, 0.0
        %v2538 = vpack.c.bf16 %v2510, %v2506
        %v2539 = vpack.c.bf16 %v2511, %v2507
        %v2540 = vpack.c.bf16 %v2512, %v2508
        %v2541 = vpack.c.bf16 %v2513, %v2509
        %v2542 = vpack.c.bf16 %v2518, %v2514
        %v2543 = vpack.c.bf16 %v2519, %v2515
        %v2544 = vpack.c.bf16 %v2520, %v2516
        %v2545 = vpack.c.bf16 %v2521, %v2517
        %v2546 = vpack.c.bf16 %v2526, %v2522
        %v2547 = vpack.c.bf16 %v2527, %v2523
        %v2548 = vpack.c.bf16 %v2528, %v2524
        %v2549 = vpack.c.bf16 %v2529, %v2525
        %v2550 = vpack.c.bf16 %v2534, %v2530
        %v2551 = vpack.c.bf16 %v2535, %v2531
        %v2552 = vpack.c.bf16 %v2536, %v2532
        %v2553 = vpack.c.bf16 %v2537, %v2533
        %v2554 = vld [vmem:[#allocation4] sm:$0xff]
        %v2555 = vld [vmem:[#allocation4 + $0x8] sm:$0xff]
        %v2556 = vld [vmem:[#allocation4 + $0x10] sm:$0xff]
        %v2557 = vld [vmem:[#allocation4 + $0x18] sm:$0xff]
        %v2558 = vld [vmem:[#allocation4 + $0x20] sm:$0xff]
        %v2559 = vld [vmem:[#allocation4 + $0x28] sm:$0xff]
        %v2560 = vld [vmem:[#allocation4 + $0x30] sm:$0xff]
        %v2561 = vld [vmem:[#allocation4 + $0x38] sm:$0xff]
        %v2562 = vld [vmem:[#allocation4 + $0x40] sm:$0xff]
        %v2563 = vld [vmem:[#allocation4 + $0x48] sm:$0xff]
        %v2564 = vld [vmem:[#allocation4 + $0x50] sm:$0xff]
        %v2565 = vld [vmem:[#allocation4 + $0x58] sm:$0xff]
        %v2566 = vld [vmem:[#allocation4 + $0x60] sm:$0xff]
        %v2567 = vld [vmem:[#allocation4 + $0x68] sm:$0xff]
        %v2568 = vld [vmem:[#allocation4 + $0x70] sm:$0xff]
        %v2569 = vld [vmem:[#allocation4 + $0x78] sm:$0xff]
        %v2570 = vld [vmem:[#allocation4 + $0x80] sm:$0xff]
        %v2571 = vld [vmem:[#allocation4 + $0x88] sm:$0xff]
        %v2572 = vld [vmem:[#allocation4 + $0x90] sm:$0xff]
        %v2573 = vld [vmem:[#allocation4 + $0x98] sm:$0xff]
        %v2574 = vld [vmem:[#allocation4 + $0xa0] sm:$0xff]
        %v2575 = vld [vmem:[#allocation4 + $0xa8] sm:$0xff]
        %v2576 = vld [vmem:[#allocation4 + $0xb0] sm:$0xff]
        %v2577 = vld [vmem:[#allocation4 + $0xb8] sm:$0xff]
        %v2578 = vld [vmem:[#allocation4 + $0xc0] sm:$0xff]
        %v2579 = vld [vmem:[#allocation4 + $0xc8] sm:$0xff]
        %v2580 = vld [vmem:[#allocation4 + $0xd0] sm:$0xff]
        %v2581 = vld [vmem:[#allocation4 + $0xd8] sm:$0xff]
        %v2582 = vld [vmem:[#allocation4 + $0xe0] sm:$0xff]
        %v2583 = vld [vmem:[#allocation4 + $0xe8] sm:$0xff]
        %v2584 = vld [vmem:[#allocation4 + $0xf0] sm:$0xff]
        %v2585 = vld [vmem:[#allocation4 + $0xf8] sm:$0xff]
        %v2586 = vld [vmem:[#allocation4 + $0x100] sm:$0xff]
        %v2587 = vld [vmem:[#allocation4 + $0x108] sm:$0xff]
        %v2588 = vld [vmem:[#allocation4 + $0x110] sm:$0xff]
        %v2589 = vld [vmem:[#allocation4 + $0x118] sm:$0xff]
        %v2590 = vld [vmem:[#allocation4 + $0x120] sm:$0xff]
        %v2591 = vld [vmem:[#allocation4 + $0x128] sm:$0xff]
        %v2592 = vld [vmem:[#allocation4 + $0x130] sm:$0xff]
        %v2593 = vld [vmem:[#allocation4 + $0x138] sm:$0xff]
        %v2594 = vld [vmem:[#allocation4 + $0x140] sm:$0xff]
        %v2595 = vld [vmem:[#allocation4 + $0x148] sm:$0xff]
        %v2596 = vld [vmem:[#allocation4 + $0x150] sm:$0xff]
        %v2597 = vld [vmem:[#allocation4 + $0x158] sm:$0xff]
        %v2598 = vld [vmem:[#allocation4 + $0x160] sm:$0xff]
        %v2599 = vld [vmem:[#allocation4 + $0x168] sm:$0xff]
        %v2600 = vld [vmem:[#allocation4 + $0x170] sm:$0xff]
        %v2601 = vld [vmem:[#allocation4 + $0x178] sm:$0xff]
        %v2602 = vld [vmem:[#allocation4 + $0x180] sm:$0xff]
        %v2603 = vld [vmem:[#allocation4 + $0x188] sm:$0xff]
        %v2604 = vld [vmem:[#allocation4 + $0x190] sm:$0xff]
        %v2605 = vld [vmem:[#allocation4 + $0x198] sm:$0xff]
        %v2606 = vld [vmem:[#allocation4 + $0x1a0] sm:$0xff]
        %v2607 = vld [vmem:[#allocation4 + $0x1a8] sm:$0xff]
        %v2608 = vld [vmem:[#allocation4 + $0x1b0] sm:$0xff]
        %v2609 = vld [vmem:[#allocation4 + $0x1b8] sm:$0xff]
        %v2610 = vld [vmem:[#allocation4 + $0x1c0] sm:$0xff]
        %v2611 = vld [vmem:[#allocation4 + $0x1c8] sm:$0xff]
        %v2612 = vld [vmem:[#allocation4 + $0x1d0] sm:$0xff]
        %v2613 = vld [vmem:[#allocation4 + $0x1d8] sm:$0xff]
        %v2614 = vld [vmem:[#allocation4 + $0x1e0] sm:$0xff]
        %v2615 = vld [vmem:[#allocation4 + $0x1e8] sm:$0xff]
        %v2616 = vld [vmem:[#allocation4 + $0x1f0] sm:$0xff]
        %v2617 = vld [vmem:[#allocation4 + $0x1f8] sm:$0xff]
        %v2618 = vld [vmem:[#allocation4 + $0x200] sm:$0xff]
        %v2619 = vld [vmem:[#allocation4 + $0x208] sm:$0xff]
        %v2620 = vld [vmem:[#allocation4 + $0x210] sm:$0xff]
        %v2621 = vld [vmem:[#allocation4 + $0x218] sm:$0xff]
        %v2622 = vld [vmem:[#allocation4 + $0x220] sm:$0xff]
        %v2623 = vld [vmem:[#allocation4 + $0x228] sm:$0xff]
        %v2624 = vld [vmem:[#allocation4 + $0x230] sm:$0xff]
        %v2625 = vld [vmem:[#allocation4 + $0x238] sm:$0xff]
        %v2626 = vld [vmem:[#allocation4 + $0x240] sm:$0xff]
        %v2627 = vld [vmem:[#allocation4 + $0x248] sm:$0xff]
        %v2628 = vld [vmem:[#allocation4 + $0x250] sm:$0xff]
        %v2629 = vld [vmem:[#allocation4 + $0x258] sm:$0xff]
        %v2630 = vld [vmem:[#allocation4 + $0x260] sm:$0xff]
        %v2631 = vld [vmem:[#allocation4 + $0x268] sm:$0xff]
        %v2632 = vld [vmem:[#allocation4 + $0x270] sm:$0xff]
        %v2633 = vld [vmem:[#allocation4 + $0x278] sm:$0xff]
        %v2634 = vld [vmem:[#allocation4 + $0x280] sm:$0xff]
        %v2635 = vld [vmem:[#allocation4 + $0x288] sm:$0xff]
        %v2636 = vld [vmem:[#allocation4 + $0x290] sm:$0xff]
        %v2637 = vld [vmem:[#allocation4 + $0x298] sm:$0xff]
        %v2638 = vld [vmem:[#allocation4 + $0x2a0] sm:$0xff]
        %v2639 = vld [vmem:[#allocation4 + $0x2a8] sm:$0xff]
        %v2640 = vld [vmem:[#allocation4 + $0x2b0] sm:$0xff]
        %v2641 = vld [vmem:[#allocation4 + $0x2b8] sm:$0xff]
        %v2642 = vld [vmem:[#allocation4 + $0x2c0] sm:$0xff]
        %v2643 = vld [vmem:[#allocation4 + $0x2c8] sm:$0xff]
        %v2644 = vld [vmem:[#allocation4 + $0x2d0] sm:$0xff]
        %v2645 = vld [vmem:[#allocation4 + $0x2d8] sm:$0xff]
        %v2646 = vld [vmem:[#allocation4 + $0x2e0] sm:$0xff]
        %v2647 = vld [vmem:[#allocation4 + $0x2e8] sm:$0xff]
        %v2648 = vld [vmem:[#allocation4 + $0x2f0] sm:$0xff]
        %v2649 = vld [vmem:[#allocation4 + $0x2f8] sm:$0xff]
        %v2650 = vld [vmem:[#allocation4 + $0x300] sm:$0xff]
        %v2651 = vld [vmem:[#allocation4 + $0x308] sm:$0xff]
        %v2652 = vld [vmem:[#allocation4 + $0x310] sm:$0xff]
        %v2653 = vld [vmem:[#allocation4 + $0x318] sm:$0xff]
        %v2654 = vld [vmem:[#allocation4 + $0x320] sm:$0xff]
        %v2655 = vld [vmem:[#allocation4 + $0x328] sm:$0xff]
        %v2656 = vld [vmem:[#allocation4 + $0x330] sm:$0xff]
        %v2657 = vld [vmem:[#allocation4 + $0x338] sm:$0xff]
        %v2658 = vld [vmem:[#allocation4 + $0x340] sm:$0xff]
        %v2659 = vld [vmem:[#allocation4 + $0x348] sm:$0xff]
        %v2660 = vld [vmem:[#allocation4 + $0x350] sm:$0xff]
        %v2661 = vld [vmem:[#allocation4 + $0x358] sm:$0xff]
        %v2662 = vld [vmem:[#allocation4 + $0x360] sm:$0xff]
        %v2663 = vld [vmem:[#allocation4 + $0x368] sm:$0xff]
        %v2664 = vld [vmem:[#allocation4 + $0x370] sm:$0xff]
        %v2665 = vld [vmem:[#allocation4 + $0x378] sm:$0xff]
        %v2666 = vld [vmem:[#allocation4 + $0x380] sm:$0xff]
        %v2667 = vld [vmem:[#allocation4 + $0x388] sm:$0xff]
        %v2668 = vld [vmem:[#allocation4 + $0x390] sm:$0xff]
        %v2669 = vld [vmem:[#allocation4 + $0x398] sm:$0xff]
        %v2670 = vld [vmem:[#allocation4 + $0x3a0] sm:$0xff]
        %v2671 = vld [vmem:[#allocation4 + $0x3a8] sm:$0xff]
        %v2672 = vld [vmem:[#allocation4 + $0x3b0] sm:$0xff]
        %v2673 = vld [vmem:[#allocation4 + $0x3b8] sm:$0xff]
        %v2674 = vld [vmem:[#allocation4 + $0x3c0] sm:$0xff]
        %v2675 = vld [vmem:[#allocation4 + $0x3c8] sm:$0xff]
        %v2676 = vld [vmem:[#allocation4 + $0x3d0] sm:$0xff]
        %v2677 = vld [vmem:[#allocation4 + $0x3d8] sm:$0xff]
        %v2678 = vld [vmem:[#allocation4 + $0x3e0] sm:$0xff]
        %v2679 = vld [vmem:[#allocation4 + $0x3e8] sm:$0xff]
        %v2680 = vld [vmem:[#allocation4 + $0x3f0] sm:$0xff]
        %v2681 = vld [vmem:[#allocation4 + $0x3f8] sm:$0xff]
        %v2682 = vld [vmem:[%s8] sm:$0xf]
        %v2684 = vlaneseq
        %v2685 = vshrl.u32 %v2684, 7
        %v2686 = vsub.s32 0, %v2685
        %v2687 = vrot.slane %v2682, %v2686
        %v2688 = vlaneseq
        %v2689 = vshrl.u32 %v2688, 7
        %v2690 = vsub.s32 1, %v2689
        %v2691 = vrot.slane %v2682, %v2690
        %v2692 = vlaneseq
        %v2693 = vshrl.u32 %v2692, 7
        %v2694 = vsub.s32 2, %v2693
        %v2695 = vrot.slane %v2682, %v2694
        %v2696 = vlaneseq
        %v2697 = vshrl.u32 %v2696, 7
        %v2698 = vsub.s32 3, %v2697
        %v2699 = vrot.slane %v2682, %v2698
        %v2832 = vunpack.c.l.b16 %v2554
        %v2833 = vunpack.c.h.b16 %v2554
        %v2834 = vunpack.c.l.b16 %v2555
        %v2835 = vunpack.c.h.b16 %v2555
        %v2836 = vunpack.c.l.b16 %v2556
        %v2837 = vunpack.c.h.b16 %v2556
        %v2838 = vunpack.c.l.b16 %v2557
        %v2839 = vunpack.c.h.b16 %v2557
        %v2840 = vunpack.c.l.b16 %v2558
        %v2841 = vunpack.c.h.b16 %v2558
        %v2842 = vunpack.c.l.b16 %v2559
        %v2843 = vunpack.c.h.b16 %v2559
        %v2844 = vunpack.c.l.b16 %v2560
        %v2845 = vunpack.c.h.b16 %v2560
        %v2846 = vunpack.c.l.b16 %v2561
        %v2847 = vunpack.c.h.b16 %v2561
        %v2848 = vunpack.c.l.b16 %v2562
        %v2849 = vunpack.c.h.b16 %v2562
        %v2850 = vunpack.c.l.b16 %v2563
        %v2851 = vunpack.c.h.b16 %v2563
        %v2852 = vunpack.c.l.b16 %v2564
        %v2853 = vunpack.c.h.b16 %v2564
        %v2854 = vunpack.c.l.b16 %v2565
        %v2855 = vunpack.c.h.b16 %v2565
        %v2856 = vunpack.c.l.b16 %v2566
        %v2857 = vunpack.c.h.b16 %v2566
        %v2858 = vunpack.c.l.b16 %v2567
        %v2859 = vunpack.c.h.b16 %v2567
        %v2860 = vunpack.c.l.b16 %v2568
        %v2861 = vunpack.c.h.b16 %v2568
        %v2862 = vunpack.c.l.b16 %v2569
        %v2863 = vunpack.c.h.b16 %v2569
        %v2864 = vunpack.c.l.b16 %v2570
        %v2865 = vunpack.c.h.b16 %v2570
        %v2866 = vunpack.c.l.b16 %v2571
        %v2867 = vunpack.c.h.b16 %v2571
        %v2868 = vunpack.c.l.b16 %v2572
        %v2869 = vunpack.c.h.b16 %v2572
        %v2870 = vunpack.c.l.b16 %v2573
        %v2871 = vunpack.c.h.b16 %v2573
        %v2872 = vunpack.c.l.b16 %v2574
        %v2873 = vunpack.c.h.b16 %v2574
        %v2874 = vunpack.c.l.b16 %v2575
        %v2875 = vunpack.c.h.b16 %v2575
        %v2876 = vunpack.c.l.b16 %v2576
        %v2877 = vunpack.c.h.b16 %v2576
        %v2878 = vunpack.c.l.b16 %v2577
        %v2879 = vunpack.c.h.b16 %v2577
        %v2880 = vunpack.c.l.b16 %v2578
        %v2881 = vunpack.c.h.b16 %v2578
        %v2882 = vunpack.c.l.b16 %v2579
        %v2883 = vunpack.c.h.b16 %v2579
        %v2884 = vunpack.c.l.b16 %v2580
        %v2885 = vunpack.c.h.b16 %v2580
        %v2886 = vunpack.c.l.b16 %v2581
        %v2887 = vunpack.c.h.b16 %v2581
        %v2888 = vunpack.c.l.b16 %v2582
        %v2889 = vunpack.c.h.b16 %v2582
        %v2890 = vunpack.c.l.b16 %v2583
        %v2891 = vunpack.c.h.b16 %v2583
        %v2892 = vunpack.c.l.b16 %v2584
        %v2893 = vunpack.c.h.b16 %v2584
        %v2894 = vunpack.c.l.b16 %v2585
        %v2895 = vunpack.c.h.b16 %v2585
        %v2896 = vunpack.c.l.b16 %v2586
        %v2897 = vunpack.c.h.b16 %v2586
        %v2898 = vunpack.c.l.b16 %v2587
        %v2899 = vunpack.c.h.b16 %v2587
        %v2900 = vunpack.c.l.b16 %v2588
        %v2901 = vunpack.c.h.b16 %v2588
        %v2902 = vunpack.c.l.b16 %v2589
        %v2903 = vunpack.c.h.b16 %v2589
        %v2904 = vunpack.c.l.b16 %v2590
        %v2905 = vunpack.c.h.b16 %v2590
        %v2906 = vunpack.c.l.b16 %v2591
        %v2907 = vunpack.c.h.b16 %v2591
        %v2908 = vunpack.c.l.b16 %v2592
        %v2909 = vunpack.c.h.b16 %v2592
        %v2910 = vunpack.c.l.b16 %v2593
        %v2911 = vunpack.c.h.b16 %v2593
        %v2912 = vunpack.c.l.b16 %v2594
        %v2913 = vunpack.c.h.b16 %v2594
        %v2914 = vunpack.c.l.b16 %v2595
        %v2915 = vunpack.c.h.b16 %v2595
        %v2916 = vunpack.c.l.b16 %v2596
        %v2917 = vunpack.c.h.b16 %v2596
        %v2918 = vunpack.c.l.b16 %v2597
        %v2919 = vunpack.c.h.b16 %v2597
        %v2920 = vunpack.c.l.b16 %v2598
        %v2921 = vunpack.c.h.b16 %v2598
        %v2922 = vunpack.c.l.b16 %v2599
        %v2923 = vunpack.c.h.b16 %v2599
        %v2924 = vunpack.c.l.b16 %v2600
        %v2925 = vunpack.c.h.b16 %v2600
        %v2926 = vunpack.c.l.b16 %v2601
        %v2927 = vunpack.c.h.b16 %v2601
        %v2928 = vunpack.c.l.b16 %v2602
        %v2929 = vunpack.c.h.b16 %v2602
        %v2930 = vunpack.c.l.b16 %v2603
        %v2931 = vunpack.c.h.b16 %v2603
        %v2932 = vunpack.c.l.b16 %v2604
        %v2933 = vunpack.c.h.b16 %v2604
        %v2934 = vunpack.c.l.b16 %v2605
        %v2935 = vunpack.c.h.b16 %v2605
        %v2936 = vunpack.c.l.b16 %v2606
        %v2937 = vunpack.c.h.b16 %v2606
        %v2938 = vunpack.c.l.b16 %v2607
        %v2939 = vunpack.c.h.b16 %v2607
        %v2940 = vunpack.c.l.b16 %v2608
        %v2941 = vunpack.c.h.b16 %v2608
        %v2942 = vunpack.c.l.b16 %v2609
        %v2943 = vunpack.c.h.b16 %v2609
        %v2944 = vunpack.c.l.b16 %v2610
        %v2945 = vunpack.c.h.b16 %v2610
        %v2946 = vunpack.c.l.b16 %v2611
        %v2947 = vunpack.c.h.b16 %v2611
        %v2948 = vunpack.c.l.b16 %v2612
        %v2949 = vunpack.c.h.b16 %v2612
        %v2950 = vunpack.c.l.b16 %v2613
        %v2951 = vunpack.c.h.b16 %v2613
        %v2952 = vunpack.c.l.b16 %v2614
        %v2953 = vunpack.c.h.b16 %v2614
        %v2954 = vunpack.c.l.b16 %v2615
        %v2955 = vunpack.c.h.b16 %v2615
        %v2956 = vunpack.c.l.b16 %v2616
        %v2957 = vunpack.c.h.b16 %v2616
        %v2958 = vunpack.c.l.b16 %v2617
        %v2959 = vunpack.c.h.b16 %v2617
        %v2960 = vunpack.c.l.b16 %v2618
        %v2961 = vunpack.c.h.b16 %v2618
        %v2962 = vunpack.c.l.b16 %v2619
        %v2963 = vunpack.c.h.b16 %v2619
        %v2964 = vunpack.c.l.b16 %v2620
        %v2965 = vunpack.c.h.b16 %v2620
        %v2966 = vunpack.c.l.b16 %v2621
        %v2967 = vunpack.c.h.b16 %v2621
        %v2968 = vunpack.c.l.b16 %v2622
        %v2969 = vunpack.c.h.b16 %v2622
        %v2970 = vunpack.c.l.b16 %v2623
        %v2971 = vunpack.c.h.b16 %v2623
        %v2972 = vunpack.c.l.b16 %v2624
        %v2973 = vunpack.c.h.b16 %v2624
        %v2974 = vunpack.c.l.b16 %v2625
        %v2975 = vunpack.c.h.b16 %v2625
        %v2976 = vunpack.c.l.b16 %v2626
        %v2977 = vunpack.c.h.b16 %v2626
        %v2978 = vunpack.c.l.b16 %v2627
        %v2979 = vunpack.c.h.b16 %v2627
        %v2980 = vunpack.c.l.b16 %v2628
        %v2981 = vunpack.c.h.b16 %v2628
        %v2982 = vunpack.c.l.b16 %v2629
        %v2983 = vunpack.c.h.b16 %v2629
        %v2984 = vunpack.c.l.b16 %v2630
        %v2985 = vunpack.c.h.b16 %v2630
        %v2986 = vunpack.c.l.b16 %v2631
        %v2987 = vunpack.c.h.b16 %v2631
        %v2988 = vunpack.c.l.b16 %v2632
        %v2989 = vunpack.c.h.b16 %v2632
        %v2990 = vunpack.c.l.b16 %v2633
        %v2991 = vunpack.c.h.b16 %v2633
        %v2992 = vunpack.c.l.b16 %v2634
        %v2993 = vunpack.c.h.b16 %v2634
        %v2994 = vunpack.c.l.b16 %v2635
        %v2995 = vunpack.c.h.b16 %v2635
        %v2996 = vunpack.c.l.b16 %v2636
        %v2997 = vunpack.c.h.b16 %v2636
        %v2998 = vunpack.c.l.b16 %v2637
        %v2999 = vunpack.c.h.b16 %v2637
        %v3000 = vunpack.c.l.b16 %v2638
        %v3001 = vunpack.c.h.b16 %v2638
        %v3002 = vunpack.c.l.b16 %v2639
        %v3003 = vunpack.c.h.b16 %v2639
        %v3004 = vunpack.c.l.b16 %v2640
        %v3005 = vunpack.c.h.b16 %v2640
        %v3006 = vunpack.c.l.b16 %v2641
        %v3007 = vunpack.c.h.b16 %v2641
        %v3008 = vunpack.c.l.b16 %v2642
        %v3009 = vunpack.c.h.b16 %v2642
        %v3010 = vunpack.c.l.b16 %v2643
        %v3011 = vunpack.c.h.b16 %v2643
        %v3012 = vunpack.c.l.b16 %v2644
        %v3013 = vunpack.c.h.b16 %v2644
        %v3014 = vunpack.c.l.b16 %v2645
        %v3015 = vunpack.c.h.b16 %v2645
        %v3016 = vunpack.c.l.b16 %v2646
        %v3017 = vunpack.c.h.b16 %v2646
        %v3018 = vunpack.c.l.b16 %v2647
        %v3019 = vunpack.c.h.b16 %v2647
        %v3020 = vunpack.c.l.b16 %v2648
        %v3021 = vunpack.c.h.b16 %v2648
        %v3022 = vunpack.c.l.b16 %v2649
        %v3023 = vunpack.c.h.b16 %v2649
        %v3024 = vunpack.c.l.b16 %v2650
        %v3025 = vunpack.c.h.b16 %v2650
        %v3026 = vunpack.c.l.b16 %v2651
        %v3027 = vunpack.c.h.b16 %v2651
        %v3028 = vunpack.c.l.b16 %v2652
        %v3029 = vunpack.c.h.b16 %v2652
        %v3030 = vunpack.c.l.b16 %v2653
        %v3031 = vunpack.c.h.b16 %v2653
        %v3032 = vunpack.c.l.b16 %v2654
        %v3033 = vunpack.c.h.b16 %v2654
        %v3034 = vunpack.c.l.b16 %v2655
        %v3035 = vunpack.c.h.b16 %v2655
        %v3036 = vunpack.c.l.b16 %v2656
        %v3037 = vunpack.c.h.b16 %v2656
        %v3038 = vunpack.c.l.b16 %v2657
        %v3039 = vunpack.c.h.b16 %v2657
        %v3040 = vunpack.c.l.b16 %v2658
        %v3041 = vunpack.c.h.b16 %v2658
        %v3042 = vunpack.c.l.b16 %v2659
        %v3043 = vunpack.c.h.b16 %v2659
        %v3044 = vunpack.c.l.b16 %v2660
        %v3045 = vunpack.c.h.b16 %v2660
        %v3046 = vunpack.c.l.b16 %v2661
        %v3047 = vunpack.c.h.b16 %v2661
        %v3048 = vunpack.c.l.b16 %v2662
        %v3049 = vunpack.c.h.b16 %v2662
        %v3050 = vunpack.c.l.b16 %v2663
        %v3051 = vunpack.c.h.b16 %v2663
        %v3052 = vunpack.c.l.b16 %v2664
        %v3053 = vunpack.c.h.b16 %v2664
        %v3054 = vunpack.c.l.b16 %v2665
        %v3055 = vunpack.c.h.b16 %v2665
        %v3056 = vunpack.c.l.b16 %v2666
        %v3057 = vunpack.c.h.b16 %v2666
        %v3058 = vunpack.c.l.b16 %v2667
        %v3059 = vunpack.c.h.b16 %v2667
        %v3060 = vunpack.c.l.b16 %v2668
        %v3061 = vunpack.c.h.b16 %v2668
        %v3062 = vunpack.c.l.b16 %v2669
        %v3063 = vunpack.c.h.b16 %v2669
        %v3064 = vunpack.c.l.b16 %v2670
        %v3065 = vunpack.c.h.b16 %v2670
        %v3066 = vunpack.c.l.b16 %v2671
        %v3067 = vunpack.c.h.b16 %v2671
        %v3068 = vunpack.c.l.b16 %v2672
        %v3069 = vunpack.c.h.b16 %v2672
        %v3070 = vunpack.c.l.b16 %v2673
        %v3071 = vunpack.c.h.b16 %v2673
        %v3072 = vunpack.c.l.b16 %v2674
        %v3073 = vunpack.c.h.b16 %v2674
        %v3074 = vunpack.c.l.b16 %v2675
        %v3075 = vunpack.c.h.b16 %v2675
        %v3076 = vunpack.c.l.b16 %v2676
        %v3077 = vunpack.c.h.b16 %v2676
        %v3078 = vunpack.c.l.b16 %v2677
        %v3079 = vunpack.c.h.b16 %v2677
        %v3080 = vunpack.c.l.b16 %v2678
        %v3081 = vunpack.c.h.b16 %v2678
        %v3082 = vunpack.c.l.b16 %v2679
        %v3083 = vunpack.c.h.b16 %v2679
        %v3084 = vunpack.c.l.b16 %v2680
        %v3085 = vunpack.c.h.b16 %v2680
        %v3086 = vunpack.c.l.b16 %v2681
        %v3087 = vunpack.c.h.b16 %v2681
        %v3088 = vpack.c.b16 %v2836, %v2832
        %v3089 = vpack.c.b16 %v2837, %v2833
        %v3090 = vpack.c.b16 %v2838, %v2834
        %v3091 = vpack.c.b16 %v2839, %v2835
        %v3092 = vpack.c.b16 %v2844, %v2840
        %v3093 = vpack.c.b16 %v2845, %v2841
        %v3094 = vpack.c.b16 %v2846, %v2842
        %v3095 = vpack.c.b16 %v2847, %v2843
        %v3096 = vpack.c.b16 %v2852, %v2848
        %v3097 = vpack.c.b16 %v2853, %v2849
        %v3098 = vpack.c.b16 %v2854, %v2850
        %v3099 = vpack.c.b16 %v2855, %v2851
        %v3100 = vpack.c.b16 %v2860, %v2856
        %v3101 = vpack.c.b16 %v2861, %v2857
        %v3102 = vpack.c.b16 %v2862, %v2858
        %v3103 = vpack.c.b16 %v2863, %v2859
        %v3104 = vpack.c.b16 %v2868, %v2864
        %v3105 = vpack.c.b16 %v2869, %v2865
        %v3106 = vpack.c.b16 %v2870, %v2866
        %v3107 = vpack.c.b16 %v2871, %v2867
        %v3108 = vpack.c.b16 %v2876, %v2872
        %v3109 = vpack.c.b16 %v2877, %v2873
        %v3110 = vpack.c.b16 %v2878, %v2874
        %v3111 = vpack.c.b16 %v2879, %v2875
        %v3112 = vpack.c.b16 %v2884, %v2880
        %v3113 = vpack.c.b16 %v2885, %v2881
        %v3114 = vpack.c.b16 %v2886, %v2882
        %v3115 = vpack.c.b16 %v2887, %v2883
        %v3116 = vpack.c.b16 %v2892, %v2888
        %v3117 = vpack.c.b16 %v2893, %v2889
        %v3118 = vpack.c.b16 %v2894, %v2890
        %v3119 = vpack.c.b16 %v2895, %v2891
        %v3120 = vpack.c.b16 %v2900, %v2896
        %v3121 = vpack.c.b16 %v2901, %v2897
        %v3122 = vpack.c.b16 %v2902, %v2898
        %v3123 = vpack.c.b16 %v2903, %v2899
        %v3124 = vpack.c.b16 %v2908, %v2904
        %v3125 = vpack.c.b16 %v2909, %v2905
        %v3126 = vpack.c.b16 %v2910, %v2906
        %v3127 = vpack.c.b16 %v2911, %v2907
        %v3128 = vpack.c.b16 %v2916, %v2912
        %v3129 = vpack.c.b16 %v2917, %v2913
        %v3130 = vpack.c.b16 %v2918, %v2914
        %v3131 = vpack.c.b16 %v2919, %v2915
        %v3132 = vpack.c.b16 %v2924, %v2920
        %v3133 = vpack.c.b16 %v2925, %v2921
        %v3134 = vpack.c.b16 %v2926, %v2922
        %v3135 = vpack.c.b16 %v2927, %v2923
        %v3136 = vpack.c.b16 %v2932, %v2928
        %v3137 = vpack.c.b16 %v2933, %v2929
        %v3138 = vpack.c.b16 %v2934, %v2930
        %v3139 = vpack.c.b16 %v2935, %v2931
        %v3140 = vpack.c.b16 %v2940, %v2936
        %v3141 = vpack.c.b16 %v2941, %v2937
        %v3142 = vpack.c.b16 %v2942, %v2938
        %v3143 = vpack.c.b16 %v2943, %v2939
        %v3144 = vpack.c.b16 %v2948, %v2944
        %v3145 = vpack.c.b16 %v2949, %v2945
        %v3146 = vpack.c.b16 %v2950, %v2946
        %v3147 = vpack.c.b16 %v2951, %v2947
        %v3148 = vpack.c.b16 %v2956, %v2952
        %v3149 = vpack.c.b16 %v2957, %v2953
        %v3150 = vpack.c.b16 %v2958, %v2954
        %v3151 = vpack.c.b16 %v2959, %v2955
        %v3152 = vpack.c.b16 %v2964, %v2960
        %v3153 = vpack.c.b16 %v2965, %v2961
        %v3154 = vpack.c.b16 %v2966, %v2962
        %v3155 = vpack.c.b16 %v2967, %v2963
        %v3156 = vpack.c.b16 %v2972, %v2968
        %v3157 = vpack.c.b16 %v2973, %v2969
        %v3158 = vpack.c.b16 %v2974, %v2970
        %v3159 = vpack.c.b16 %v2975, %v2971
        %v3160 = vpack.c.b16 %v2980, %v2976
        %v3161 = vpack.c.b16 %v2981, %v2977
        %v3162 = vpack.c.b16 %v2982, %v2978
        %v3163 = vpack.c.b16 %v2983, %v2979
        %v3164 = vpack.c.b16 %v2988, %v2984
        %v3165 = vpack.c.b16 %v2989, %v2985
        %v3166 = vpack.c.b16 %v2990, %v2986
        %v3167 = vpack.c.b16 %v2991, %v2987
        %v3168 = vpack.c.b16 %v2996, %v2992
        %v3169 = vpack.c.b16 %v2997, %v2993
        %v3170 = vpack.c.b16 %v2998, %v2994
        %v3171 = vpack.c.b16 %v2999, %v2995
        %v3172 = vpack.c.b16 %v3004, %v3000
        %v3173 = vpack.c.b16 %v3005, %v3001
        %v3174 = vpack.c.b16 %v3006, %v3002
        %v3175 = vpack.c.b16 %v3007, %v3003
        %v3176 = vpack.c.b16 %v3012, %v3008
        %v3177 = vpack.c.b16 %v3013, %v3009
        %v3178 = vpack.c.b16 %v3014, %v3010
        %v3179 = vpack.c.b16 %v3015, %v3011
        %v3180 = vpack.c.b16 %v3020, %v3016
        %v3181 = vpack.c.b16 %v3021, %v3017
        %v3182 = vpack.c.b16 %v3022, %v3018
        %v3183 = vpack.c.b16 %v3023, %v3019
        %v3184 = vpack.c.b16 %v3028, %v3024
        %v3185 = vpack.c.b16 %v3029, %v3025
        %v3186 = vpack.c.b16 %v3030, %v3026
        %v3187 = vpack.c.b16 %v3031, %v3027
        %v3188 = vpack.c.b16 %v3036, %v3032
        %v3189 = vpack.c.b16 %v3037, %v3033
        %v3190 = vpack.c.b16 %v3038, %v3034
        %v3191 = vpack.c.b16 %v3039, %v3035
        %v3192 = vpack.c.b16 %v3044, %v3040
        %v3193 = vpack.c.b16 %v3045, %v3041
        %v3194 = vpack.c.b16 %v3046, %v3042
        %v3195 = vpack.c.b16 %v3047, %v3043
        %v3196 = vpack.c.b16 %v3052, %v3048
        %v3197 = vpack.c.b16 %v3053, %v3049
        %v3198 = vpack.c.b16 %v3054, %v3050
        %v3199 = vpack.c.b16 %v3055, %v3051
        %v3200 = vpack.c.b16 %v3060, %v3056
        %v3201 = vpack.c.b16 %v3061, %v3057
        %v3202 = vpack.c.b16 %v3062, %v3058
        %v3203 = vpack.c.b16 %v3063, %v3059
        %v3204 = vpack.c.b16 %v3068, %v3064
        %v3205 = vpack.c.b16 %v3069, %v3065
        %v3206 = vpack.c.b16 %v3070, %v3066
        %v3207 = vpack.c.b16 %v3071, %v3067
        %v3208 = vpack.c.b16 %v3076, %v3072
        %v3209 = vpack.c.b16 %v3077, %v3073
        %v3210 = vpack.c.b16 %v3078, %v3074
        %v3211 = vpack.c.b16 %v3079, %v3075
        %v3212 = vpack.c.b16 %v3084, %v3080
        %v3213 = vpack.c.b16 %v3085, %v3081
        %v3214 = vpack.c.b16 %v3086, %v3082
        %v3215 = vpack.c.b16 %v3087, %v3083
        %3344 = vmatprep.subr.bf16.mxu0 %v3089
        %3345 = vmatpush1.bf16.msra.mxu0 %v3088
        %3346 = vmatprep.subr.bf16.mxu0 %v3093
        %3347 = vmatpush1.bf16.msra.mxu0 %v3092
        %3348 = vmatprep.subr.bf16.mxu0 %v3097
        %3349 = vmatpush1.bf16.msra.mxu0 %v3096
        %3350 = vmatprep.subr.bf16.mxu0 %v3101
        %3351 = vmatpush1.bf16.msra.mxu0 %v3100
        %3352 = vmatprep.subr.bf16.mxu0 %v3105
        %3353 = vmatpush1.bf16.msra.mxu0 %v3104
        %3354 = vmatprep.subr.bf16.mxu0 %v3109
        %3355 = vmatpush1.bf16.msra.mxu0 %v3108
        %3356 = vmatprep.subr.bf16.mxu0 %v3113
        %3357 = vmatpush1.bf16.msra.mxu0 %v3112
        %3358 = vmatprep.subr.bf16.mxu0 %v3117
        %3359 = vmatpush1.bf16.msra.mxu0 %v3116
        %3360 = vmatprep.subr.bf16.mxu0 %v3121
        %3361 = vmatpush1.bf16.msra.mxu0 %v3120
        %3362 = vmatprep.subr.bf16.mxu0 %v3125
        %3363 = vmatpush1.bf16.msra.mxu0 %v3124
        %3364 = vmatprep.subr.bf16.mxu0 %v3129
        %3365 = vmatpush1.bf16.msra.mxu0 %v3128
        %3366 = vmatprep.subr.bf16.mxu0 %v3133
        %3367 = vmatpush1.bf16.msra.mxu0 %v3132
        %3368 = vmatprep.subr.bf16.mxu0 %v3137
        %3369 = vmatpush1.bf16.msra.mxu0 %v3136
        %3370 = vmatprep.subr.bf16.mxu0 %v3141
        %3371 = vmatpush1.bf16.msra.mxu0 %v3140
        %3372 = vmatprep.subr.bf16.mxu0 %v3145
        %3373 = vmatpush1.bf16.msra.mxu0 %v3144
        %3374 = vmatprep.subr.bf16.mxu0 %v3149
        %3375 = vmatpush1.bf16.msra.mxu0 %v3148
        %3376 = vmatprep.mubr.bf16.mxu0 %v1409
        %3377 = vmatmul.mubr.bf16.gmra.mrb[0].mxu0 %v1408
        %v3378 = vpop.f32.mrb[0].mxu0
        %v3379 = vadd.f32 %v2687, %v3378
        %v3380 = vpop.f32.mrb[0].mxu0
        %v3381 = vadd.f32 %v2691, %v3380
        %v3382 = vpop.f32.mrb[0].mxu0
        %v3383 = vadd.f32 %v2687, %v3382
        %v3384 = vpop.f32.mrb[0].mxu0
        %v3385 = vadd.f32 %v2691, %v3384
        %3386 = vmatprep.mubr.bf16.mxu0 %v1413
        %3387 = vmatmul.mubr.bf16.gmra.mrb[0].mxu0 %v1412
        %v3388 = vpop.f32.mrb[0].mxu0
        %v3389 = vadd.f32 %v2687, %v3388
        %v3390 = vpop.f32.mrb[0].mxu0
        %v3391 = vadd.f32 %v2691, %v3390
        %v3392 = vpop.f32.mrb[0].mxu0
        %v3393 = vadd.f32 %v2687, %v3392
        %v3394 = vpop.f32.mrb[0].mxu0
        %v3395 = vadd.f32 %v2691, %v3394
        %3396 = vmatprep.mubr.bf16.mxu0 %v1417
        %3397 = vmatmul.mubr.bf16.gmra.mrb[0].mxu0 %v1416
        %v3398 = vpop.f32.mrb[0].mxu0
        %v3399 = vadd.f32 %v2687, %v3398
        %v3400 = vpop.f32.mrb[0].mxu0
        %v3401 = vadd.f32 %v2691, %v3400
        %v3402 = vpop.f32.mrb[0].mxu0
        %v3403 = vadd.f32 %v2687, %v3402
        %v3404 = vpop.f32.mrb[0].mxu0
        %v3405 = vadd.f32 %v2691, %v3404
        %3406 = vmatprep.mubr.bf16.mxu0 %v1421
        %3407 = vmatmul.mubr.bf16.gmra.mrb[0].mxu0 %v1420
        %v3408 = vpop.f32.mrb[0].mxu0
        %v3409 = vadd.f32 %v2687, %v3408
        %v3410 = vpop.f32.mrb[0].mxu0
        %v3411 = vadd.f32 %v2691, %v3410
        %v3412 = vpop.f32.mrb[0].mxu0
        %v3413 = vadd.f32 %v2687, %v3412
        %v3414 = vpop.f32.mrb[0].mxu0
        %v3415 = vadd.f32 %v2691, %v3414
        %3416 = vdwg.mxu0
        %3417 = vmatprep.subr.bf16.mxu0 %v3153
        %3418 = vmatpush1.bf16.msra.mxu0 %v3152
        %3419 = vmatprep.subr.bf16.mxu0 %v3157
        %3420 = vmatpush1.bf16.msra.mxu0 %v3156
        %3421 = vmatprep.subr.bf16.mxu0 %v3161
        %3422 = vmatpush1.bf16.msra.mxu0 %v3160
        %3423 = vmatprep.subr.bf16.mxu0 %v3165
        %3424 = vmatpush1.bf16.msra.mxu0 %v3164
        %3425 = vmatprep.subr.bf16.mxu0 %v3169
        %3426 = vmatpush1.bf16.msra.mxu0 %v3168
        %3427 = vmatprep.subr.bf16.mxu0 %v3173
        %3428 = vmatpush1.bf16.msra.mxu0 %v3172
        %3429 = vmatprep.subr.bf16.mxu0 %v3177
        %3430 = vmatpush1.bf16.msra.mxu0 %v3176
        %3431 = vmatprep.subr.bf16.mxu0 %v3181
        %3432 = vmatpush1.bf16.msra.mxu0 %v3180
        %3433 = vmatprep.subr.bf16.mxu0 %v3185
        %3434 = vmatpush1.bf16.msra.mxu0 %v3184
        %3435 = vmatprep.subr.bf16.mxu0 %v3189
        %3436 = vmatpush1.bf16.msra.mxu0 %v3188
        %3437 = vmatprep.subr.bf16.mxu0 %v3193
        %3438 = vmatpush1.bf16.msra.mxu0 %v3192
        %3439 = vmatprep.subr.bf16.mxu0 %v3197
        %3440 = vmatpush1.bf16.msra.mxu0 %v3196
        %3441 = vmatprep.subr.bf16.mxu0 %v3201
        %3442 = vmatpush1.bf16.msra.mxu0 %v3200
        %3443 = vmatprep.subr.bf16.mxu0 %v3205
        %3444 = vmatpush1.bf16.msra.mxu0 %v3204
        %3445 = vmatprep.subr.bf16.mxu0 %v3209
        %3446 = vmatpush1.bf16.msra.mxu0 %v3208
        %3447 = vmatprep.subr.bf16.mxu0 %v3213
        %3448 = vmatpush1.bf16.msra.mxu0 %v3212
        %3449 = vmatprep.mubr.bf16.mxu0 %v1411
        %3450 = vmatmul.mubr.bf16.gmra.mrb[0].mxu0 %v1410
        %v3451 = vpop.f32.mrb[0].mxu0
        %v3452 = vadd.f32 %v3379, %v3451
        %v3453 = vpop.f32.mrb[0].mxu0
        %v3454 = vadd.f32 %v3381, %v3453
        %v3455 = vpop.f32.mrb[0].mxu0
        %v3456 = vadd.f32 %v3383, %v3455
        %v3457 = vpop.f32.mrb[0].mxu0
        %v3458 = vadd.f32 %v3385, %v3457
        %3459 = vmatprep.mubr.bf16.mxu0 %v1415
        %3460 = vmatmul.mubr.bf16.gmra.mrb[0].mxu0 %v1414
        %v3461 = vpop.f32.mrb[0].mxu0
        %v3462 = vadd.f32 %v3389, %v3461
        %v3463 = vpop.f32.mrb[0].mxu0
        %v3464 = vadd.f32 %v3391, %v3463
        %v3465 = vpop.f32.mrb[0].mxu0
        %v3466 = vadd.f32 %v3393, %v3465
        %v3467 = vpop.f32.mrb[0].mxu0
        %v3468 = vadd.f32 %v3395, %v3467
        %3469 = vmatprep.mubr.bf16.mxu0 %v1419
        %3470 = vmatmul.mubr.bf16.gmra.mrb[0].mxu0 %v1418
        %v3471 = vpop.f32.mrb[0].mxu0
        %v3472 = vadd.f32 %v3399, %v3471
        %v3473 = vpop.f32.mrb[0].mxu0
        %v3474 = vadd.f32 %v3401, %v3473
        %v3475 = vpop.f32.mrb[0].mxu0
        %v3476 = vadd.f32 %v3403, %v3475
        %v3477 = vpop.f32.mrb[0].mxu0
        %v3478 = vadd.f32 %v3405, %v3477
        %3479 = vmatprep.mubr.bf16.mxu0 %v1423
        %3480 = vmatmul.mubr.bf16.gmra.mrb[0].mxu0 %v1422
        %v3481 = vpop.f32.mrb[0].mxu0
        %v3482 = vadd.f32 %v3409, %v3481
        %v3483 = vpop.f32.mrb[0].mxu0
        %v3484 = vadd.f32 %v3411, %v3483
        %v3485 = vpop.f32.mrb[0].mxu0
        %v3486 = vadd.f32 %v3413, %v3485
        %v3487 = vpop.f32.mrb[0].mxu0
        %v3488 = vadd.f32 %v3415, %v3487
        %3489 = vdwg.mxu0
        %3490 = vmatprep.subr.bf16.mxu0 %v3091
        %3491 = vmatpush1.bf16.msra.mxu0 %v3090
        %3492 = vmatprep.subr.bf16.mxu0 %v3095
        %3493 = vmatpush1.bf16.msra.mxu0 %v3094
        %3494 = vmatprep.subr.bf16.mxu0 %v3099
        %3495 = vmatpush1.bf16.msra.mxu0 %v3098
        %3496 = vmatprep.subr.bf16.mxu0 %v3103
        %3497 = vmatpush1.bf16.msra.mxu0 %v3102
        %3498 = vmatprep.subr.bf16.mxu0 %v3107
        %3499 = vmatpush1.bf16.msra.mxu0 %v3106
        %3500 = vmatprep.subr.bf16.mxu0 %v3111
        %3501 = vmatpush1.bf16.msra.mxu0 %v3110
        %3502 = vmatprep.subr.bf16.mxu0 %v3115
        %3503 = vmatpush1.bf16.msra.mxu0 %v3114
        %3504 = vmatprep.subr.bf16.mxu0 %v3119
        %3505 = vmatpush1.bf16.msra.mxu0 %v3118
        %3506 = vmatprep.subr.bf16.mxu0 %v3123
        %3507 = vmatpush1.bf16.msra.mxu0 %v3122
        %3508 = vmatprep.subr.bf16.mxu0 %v3127
        %3509 = vmatpush1.bf16.msra.mxu0 %v3126
        %3510 = vmatprep.subr.bf16.mxu0 %v3131
        %3511 = vmatpush1.bf16.msra.mxu0 %v3130
        %3512 = vmatprep.subr.bf16.mxu0 %v3135
        %3513 = vmatpush1.bf16.msra.mxu0 %v3134
        %3514 = vmatprep.subr.bf16.mxu0 %v3139
        %3515 = vmatpush1.bf16.msra.mxu0 %v3138
        %3516 = vmatprep.subr.bf16.mxu0 %v3143
        %3517 = vmatpush1.bf16.msra.mxu0 %v3142
        %3518 = vmatprep.subr.bf16.mxu0 %v3147
        %3519 = vmatpush1.bf16.msra.mxu0 %v3146
        %3520 = vmatprep.subr.bf16.mxu0 %v3151
        %3521 = vmatpush1.bf16.msra.mxu0 %v3150
        %3522 = vmatprep.mubr.bf16.mxu0 %v1409
        %3523 = vmatmul.mubr.bf16.gmra.mrb[0].mxu0 %v1408
        %v3524 = vpop.f32.mrb[0].mxu0
        %v3525 = vadd.f32 %v2695, %v3524
        %v3526 = vpop.f32.mrb[0].mxu0
        %v3527 = vadd.f32 %v2699, %v3526
        %v3528 = vpop.f32.mrb[0].mxu0
        %v3529 = vadd.f32 %v2695, %v3528
        %v3530 = vpop.f32.mrb[0].mxu0
        %v3531 = vadd.f32 %v2699, %v3530
        %3532 = vmatprep.mubr.bf16.mxu0 %v1413
        %3533 = vmatmul.mubr.bf16.gmra.mrb[0].mxu0 %v1412
        %v3534 = vpop.f32.mrb[0].mxu0
        %v3535 = vadd.f32 %v2695, %v3534
        %v3536 = vpop.f32.mrb[0].mxu0
        %v3537 = vadd.f32 %v2699, %v3536
        %v3538 = vpop.f32.mrb[0].mxu0
        %v3539 = vadd.f32 %v2695, %v3538
        %v3540 = vpop.f32.mrb[0].mxu0
        %v3541 = vadd.f32 %v2699, %v3540
        %3542 = vmatprep.mubr.bf16.mxu0 %v1417
        %3543 = vmatmul.mubr.bf16.gmra.mrb[0].mxu0 %v1416
        %v3544 = vpop.f32.mrb[0].mxu0
        %v3545 = vadd.f32 %v2695, %v3544
        %v3546 = vpop.f32.mrb[0].mxu0
        %v3547 = vadd.f32 %v2699, %v3546
        %v3548 = vpop.f32.mrb[0].mxu0
        %v3549 = vadd.f32 %v2695, %v3548
        %v3550 = vpop.f32.mrb[0].mxu0
        %v3551 = vadd.f32 %v2699, %v3550
        %3552 = vmatprep.mubr.bf16.mxu0 %v1421
        %3553 = vmatmul.mubr.bf16.gmra.mrb[0].mxu0 %v1420
        %v3554 = vpop.f32.mrb[0].mxu0
        %v3555 = vadd.f32 %v2695, %v3554
        %v3556 = vpop.f32.mrb[0].mxu0
        %v3557 = vadd.f32 %v2699, %v3556
        %v3558 = vpop.f32.mrb[0].mxu0
        %v3559 = vadd.f32 %v2695, %v3558
        %v3560 = vpop.f32.mrb[0].mxu0
        %v3561 = vadd.f32 %v2699, %v3560
        %3562 = vdwg.mxu0
        %3563 = vmatprep.subr.bf16.mxu0 %v3155
        %3564 = vmatpush1.bf16.msra.mxu0 %v3154
        %3565 = vmatprep.subr.bf16.mxu0 %v3159
        %3566 = vmatpush1.bf16.msra.mxu0 %v3158
        %3567 = vmatprep.subr.bf16.mxu0 %v3163
        %3568 = vmatpush1.bf16.msra.mxu0 %v3162
        %3569 = vmatprep.subr.bf16.mxu0 %v3167
        %3570 = vmatpush1.bf16.msra.mxu0 %v3166
        %3571 = vmatprep.subr.bf16.mxu0 %v3171
        %3572 = vmatpush1.bf16.msra.mxu0 %v3170
        %3573 = vmatprep.subr.bf16.mxu0 %v3175
        %3574 = vmatpush1.bf16.msra.mxu0 %v3174
        %3575 = vmatprep.subr.bf16.mxu0 %v3179
        %3576 = vmatpush1.bf16.msra.mxu0 %v3178
        %3577 = vmatprep.subr.bf16.mxu0 %v3183
        %3578 = vmatpush1.bf16.msra.mxu0 %v3182
        %3579 = vmatprep.subr.bf16.mxu0 %v3187
        %3580 = vmatpush1.bf16.msra.mxu0 %v3186
        %3581 = vmatprep.subr.bf16.mxu0 %v3191
        %3582 = vmatpush1.bf16.msra.mxu0 %v3190
        %3583 = vmatprep.subr.bf16.mxu0 %v3195
        %3584 = vmatpush1.bf16.msra.mxu0 %v3194
        %3585 = vmatprep.subr.bf16.mxu0 %v3199
        %3586 = vmatpush1.bf16.msra.mxu0 %v3198
        %3587 = vmatprep.subr.bf16.mxu0 %v3203
        %3588 = vmatpush1.bf16.msra.mxu0 %v3202
        %3589 = vmatprep.subr.bf16.mxu0 %v3207
        %3590 = vmatpush1.bf16.msra.mxu0 %v3206
        %3591 = vmatprep.subr.bf16.mxu0 %v3211
        %3592 = vmatpush1.bf16.msra.mxu0 %v3210
        %3593 = vmatprep.subr.bf16.mxu0 %v3215
        %3594 = vmatpush1.bf16.msra.mxu0 %v3214
        %3595 = vmatprep.mubr.bf16.mxu0 %v1411
        %3596 = vmatmul.mubr.bf16.gmra.mrb[0].mxu0 %v1410
        %v3597 = vpop.f32.mrb[0].mxu0
        %v3598 = vadd.f32 %v3525, %v3597
        %v3599 = vpop.f32.mrb[0].mxu0
        %v3600 = vadd.f32 %v3527, %v3599
        %v3601 = vpop.f32.mrb[0].mxu0
        %v3602 = vadd.f32 %v3529, %v3601
        %v3603 = vpop.f32.mrb[0].mxu0
        %v3604 = vadd.f32 %v3531, %v3603
        %3605 = vmatprep.mubr.bf16.mxu0 %v1415
        %3606 = vmatmul.mubr.bf16.gmra.mrb[0].mxu0 %v1414
        %v3607 = vpop.f32.mrb[0].mxu0
        %v3608 = vadd.f32 %v3535, %v3607
        %v3609 = vpop.f32.mrb[0].mxu0
        %v3610 = vadd.f32 %v3537, %v3609
        %v3611 = vpop.f32.mrb[0].mxu0
        %v3612 = vadd.f32 %v3539, %v3611
        %v3613 = vpop.f32.mrb[0].mxu0
        %v3614 = vadd.f32 %v3541, %v3613
        %3615 = vmatprep.mubr.bf16.mxu0 %v1419
        %3616 = vmatmul.mubr.bf16.gmra.mrb[0].mxu0 %v1418
        %v3617 = vpop.f32.mrb[0].mxu0
        %v3618 = vadd.f32 %v3545, %v3617
        %v3619 = vpop.f32.mrb[0].mxu0
        %v3620 = vadd.f32 %v3547, %v3619
        %v3621 = vpop.f32.mrb[0].mxu0
        %v3622 = vadd.f32 %v3549, %v3621
        %v3623 = vpop.f32.mrb[0].mxu0
        %v3624 = vadd.f32 %v3551, %v3623
        %3625 = vmatprep.mubr.bf16.mxu0 %v1423
        %3626 = vmatmul.mubr.bf16.gmra.mrb[0].mxu0 %v1422
        %v3627 = vpop.f32.mrb[0].mxu0
        %v3628 = vadd.f32 %v3555, %v3627
        %v3629 = vpop.f32.mrb[0].mxu0
        %v3630 = vadd.f32 %v3557, %v3629
        %v3631 = vpop.f32.mrb[0].mxu0
        %v3632 = vadd.f32 %v3559, %v3631
        %v3633 = vpop.f32.mrb[0].mxu0
        %v3634 = vadd.f32 %v3561, %v3633
        %3635 = vdwg.mxu0
        %v3636 = vmax.f32 %v3452, 0.0
        %v3637 = vmax.f32 %v3454, 0.0
        %v3638 = vmax.f32 %v3598, 0.0
        %v3639 = vmax.f32 %v3600, 0.0
        %v3640 = vmax.f32 %v3456, 0.0
        %v3641 = vmax.f32 %v3458, 0.0
        %v3642 = vmax.f32 %v3602, 0.0
        %v3643 = vmax.f32 %v3604, 0.0
        %v3644 = vmax.f32 %v3462, 0.0
        %v3645 = vmax.f32 %v3464, 0.0
        %v3646 = vmax.f32 %v3608, 0.0
        %v3647 = vmax.f32 %v3610, 0.0
        %v3648 = vmax.f32 %v3466, 0.0
        %v3649 = vmax.f32 %v3468, 0.0
        %v3650 = vmax.f32 %v3612, 0.0
        %v3651 = vmax.f32 %v3614, 0.0
        %v3652 = vmax.f32 %v3472, 0.0
        %v3653 = vmax.f32 %v3474, 0.0
        %v3654 = vmax.f32 %v3618, 0.0
        %v3655 = vmax.f32 %v3620, 0.0
        %v3656 = vmax.f32 %v3476, 0.0
        %v3657 = vmax.f32 %v3478, 0.0
        %v3658 = vmax.f32 %v3622, 0.0
        %v3659 = vmax.f32 %v3624, 0.0
        %v3660 = vmax.f32 %v3482, 0.0
        %v3661 = vmax.f32 %v3484, 0.0
        %v3662 = vmax.f32 %v3628, 0.0
        %v3663 = vmax.f32 %v3630, 0.0
        %v3664 = vmax.f32 %v3486, 0.0
        %v3665 = vmax.f32 %v3488, 0.0
        %v3666 = vmax.f32 %v3632, 0.0
        %v3667 = vmax.f32 %v3634, 0.0
        %v3668 = vpack.c.bf16 %v3640, %v3636
        %v3669 = vpack.c.bf16 %v3641, %v3637
        %v3670 = vpack.c.bf16 %v3642, %v3638
        %v3671 = vpack.c.bf16 %v3643, %v3639
        %v3672 = vpack.c.bf16 %v3648, %v3644
        %v3673 = vpack.c.bf16 %v3649, %v3645
        %v3674 = vpack.c.bf16 %v3650, %v3646
        %v3675 = vpack.c.bf16 %v3651, %v3647
        %v3676 = vpack.c.bf16 %v3656, %v3652
        %v3677 = vpack.c.bf16 %v3657, %v3653
        %v3678 = vpack.c.bf16 %v3658, %v3654
        %v3679 = vpack.c.bf16 %v3659, %v3655
        %v3680 = vpack.c.bf16 %v3664, %v3660
        %v3681 = vpack.c.bf16 %v3665, %v3661
        %v3682 = vpack.c.bf16 %v3666, %v3662
        %v3683 = vpack.c.bf16 %v3667, %v3663
        %v3684 = vld [vmem:[%s9] sm:$0xf]
        %v3685 = vld [vmem:[%s9 + $0x4] sm:$0xf]
        %v3686 = vld [vmem:[%s9 + $0x8] sm:$0xf]
        %v3687 = vld [vmem:[%s9 + $0xc] sm:$0xf]
        %v3688 = vld [vmem:[%s9 + $0x10] sm:$0xf]
        %v3689 = vld [vmem:[%s9 + $0x14] sm:$0xf]
        %v3690 = vld [vmem:[%s9 + $0x18] sm:$0xf]
        %v3691 = vld [vmem:[%s9 + $0x1c] sm:$0xf]
        %v3692 = vld [vmem:[%s9 + $0x20] sm:$0xf]
        %v3693 = vld [vmem:[%s9 + $0x24] sm:$0xf]
        %v3694 = vld [vmem:[%s9 + $0x28] sm:$0xf]
        %v3695 = vld [vmem:[%s9 + $0x2c] sm:$0xf]
        %v3696 = vld [vmem:[%s9 + $0x30] sm:$0xf]
        %v3697 = vld [vmem:[%s9 + $0x34] sm:$0xf]
        %v3698 = vld [vmem:[%s9 + $0x38] sm:$0xf]
        %v3699 = vld [vmem:[%s9 + $0x3c] sm:$0xf]
        %v3700 = vld [vmem:[%s9 + $0x40] sm:$0xf]
        %v3701 = vld [vmem:[%s9 + $0x44] sm:$0xf]
        %v3702 = vld [vmem:[%s9 + $0x48] sm:$0xf]
        %v3703 = vld [vmem:[%s9 + $0x4c] sm:$0xf]
        %v3704 = vld [vmem:[%s9 + $0x50] sm:$0xf]
        %v3705 = vld [vmem:[%s9 + $0x54] sm:$0xf]
        %v3706 = vld [vmem:[%s9 + $0x58] sm:$0xf]
        %v3707 = vld [vmem:[%s9 + $0x5c] sm:$0xf]
        %v3708 = vld [vmem:[%s9 + $0x60] sm:$0xf]
        %v3709 = vld [vmem:[%s9 + $0x64] sm:$0xf]
        %v3710 = vld [vmem:[%s9 + $0x68] sm:$0xf]
        %v3711 = vld [vmem:[%s9 + $0x6c] sm:$0xf]
        %v3712 = vld [vmem:[%s9 + $0x70] sm:$0xf]
        %v3713 = vld [vmem:[%s9 + $0x74] sm:$0xf]
        %v3714 = vld [vmem:[%s9 + $0x78] sm:$0xf]
        %v3715 = vld [vmem:[%s9 + $0x7c] sm:$0xf]
        %v3716 = vld [vmem:[%s9 + $0x80] sm:$0xf]
        %v3717 = vld [vmem:[%s9 + $0x84] sm:$0xf]
        %v3718 = vld [vmem:[%s9 + $0x88] sm:$0xf]
        %v3719 = vld [vmem:[%s9 + $0x8c] sm:$0xf]
        %v3720 = vld [vmem:[%s9 + $0x90] sm:$0xf]
        %v3721 = vld [vmem:[%s9 + $0x94] sm:$0xf]
        %v3722 = vld [vmem:[%s9 + $0x98] sm:$0xf]
        %v3723 = vld [vmem:[%s9 + $0x9c] sm:$0xf]
        %v3724 = vld [vmem:[%s9 + $0xa0] sm:$0xf]
        %v3725 = vld [vmem:[%s9 + $0xa4] sm:$0xf]
        %v3726 = vld [vmem:[%s9 + $0xa8] sm:$0xf]
        %v3727 = vld [vmem:[%s9 + $0xac] sm:$0xf]
        %v3728 = vld [vmem:[%s9 + $0xb0] sm:$0xf]
        %v3729 = vld [vmem:[%s9 + $0xb4] sm:$0xf]
        %v3730 = vld [vmem:[%s9 + $0xb8] sm:$0xf]
        %v3731 = vld [vmem:[%s9 + $0xbc] sm:$0xf]
        %v3732 = vld [vmem:[%s9 + $0xc0] sm:$0xf]
        %v3733 = vld [vmem:[%s9 + $0xc4] sm:$0xf]
        %v3734 = vld [vmem:[%s9 + $0xc8] sm:$0xf]
        %v3735 = vld [vmem:[%s9 + $0xcc] sm:$0xf]
        %v3736 = vld [vmem:[%s9 + $0xd0] sm:$0xf]
        %v3737 = vld [vmem:[%s9 + $0xd4] sm:$0xf]
        %v3738 = vld [vmem:[%s9 + $0xd8] sm:$0xf]
        %v3739 = vld [vmem:[%s9 + $0xdc] sm:$0xf]
        %v3740 = vld [vmem:[%s9 + $0xe0] sm:$0xf]
        %v3741 = vld [vmem:[%s9 + $0xe4] sm:$0xf]
        %v3742 = vld [vmem:[%s9 + $0xe8] sm:$0xf]
        %v3743 = vld [vmem:[%s9 + $0xec] sm:$0xf]
        %v3744 = vld [vmem:[%s9 + $0xf0] sm:$0xf]
        %v3745 = vld [vmem:[%s9 + $0xf4] sm:$0xf]
        %v3746 = vld [vmem:[%s9 + $0xf8] sm:$0xf]
        %v3747 = vld [vmem:[%s9 + $0xfc] sm:$0xf]
        %v3748 = vld [vmem:[%s9 + $0x100] sm:$0xf]
        %v3749 = vld [vmem:[%s9 + $0x104] sm:$0xf]
        %v3750 = vld [vmem:[%s9 + $0x108] sm:$0xf]
        %v3751 = vld [vmem:[%s9 + $0x10c] sm:$0xf]
        %v3752 = vld [vmem:[%s9 + $0x110] sm:$0xf]
        %v3753 = vld [vmem:[%s9 + $0x114] sm:$0xf]
        %v3754 = vld [vmem:[%s9 + $0x118] sm:$0xf]
        %v3755 = vld [vmem:[%s9 + $0x11c] sm:$0xf]
        %v3756 = vld [vmem:[%s9 + $0x120] sm:$0xf]
        %v3757 = vld [vmem:[%s9 + $0x124] sm:$0xf]
        %v3758 = vld [vmem:[%s9 + $0x128] sm:$0xf]
        %v3759 = vld [vmem:[%s9 + $0x12c] sm:$0xf]
        %v3760 = vld [vmem:[%s9 + $0x130] sm:$0xf]
        %v3761 = vld [vmem:[%s9 + $0x134] sm:$0xf]
        %v3762 = vld [vmem:[%s9 + $0x138] sm:$0xf]
        %v3763 = vld [vmem:[%s9 + $0x13c] sm:$0xf]
        %v3764 = vld [vmem:[%s9 + $0x140] sm:$0xf]
        %v3765 = vld [vmem:[%s9 + $0x144] sm:$0xf]
        %v3766 = vld [vmem:[%s9 + $0x148] sm:$0xf]
        %v3767 = vld [vmem:[%s9 + $0x14c] sm:$0xf]
        %v3768 = vld [vmem:[%s9 + $0x150] sm:$0xf]
        %v3769 = vld [vmem:[%s9 + $0x154] sm:$0xf]
        %v3770 = vld [vmem:[%s9 + $0x158] sm:$0xf]
        %v3771 = vld [vmem:[%s9 + $0x15c] sm:$0xf]
        %v3772 = vld [vmem:[%s9 + $0x160] sm:$0xf]
        %v3773 = vld [vmem:[%s9 + $0x164] sm:$0xf]
        %v3774 = vld [vmem:[%s9 + $0x168] sm:$0xf]
        %v3775 = vld [vmem:[%s9 + $0x16c] sm:$0xf]
        %v3776 = vld [vmem:[%s9 + $0x170] sm:$0xf]
        %v3777 = vld [vmem:[%s9 + $0x174] sm:$0xf]
        %v3778 = vld [vmem:[%s9 + $0x178] sm:$0xf]
        %v3779 = vld [vmem:[%s9 + $0x17c] sm:$0xf]
        %v3780 = vld [vmem:[%s9 + $0x180] sm:$0xf]
        %v3781 = vld [vmem:[%s9 + $0x184] sm:$0xf]
        %v3782 = vld [vmem:[%s9 + $0x188] sm:$0xf]
        %v3783 = vld [vmem:[%s9 + $0x18c] sm:$0xf]
        %v3784 = vld [vmem:[%s9 + $0x190] sm:$0xf]
        %v3785 = vld [vmem:[%s9 + $0x194] sm:$0xf]
        %v3786 = vld [vmem:[%s9 + $0x198] sm:$0xf]
        %v3787 = vld [vmem:[%s9 + $0x19c] sm:$0xf]
        %v3788 = vld [vmem:[%s9 + $0x1a0] sm:$0xf]
        %v3789 = vld [vmem:[%s9 + $0x1a4] sm:$0xf]
        %v3790 = vld [vmem:[%s9 + $0x1a8] sm:$0xf]
        %v3791 = vld [vmem:[%s9 + $0x1ac] sm:$0xf]
        %v3792 = vld [vmem:[%s9 + $0x1b0] sm:$0xf]
        %v3793 = vld [vmem:[%s9 + $0x1b4] sm:$0xf]
        %v3794 = vld [vmem:[%s9 + $0x1b8] sm:$0xf]
        %v3795 = vld [vmem:[%s9 + $0x1bc] sm:$0xf]
        %v3796 = vld [vmem:[%s9 + $0x1c0] sm:$0xf]
        %v3797 = vld [vmem:[%s9 + $0x1c4] sm:$0xf]
        %v3798 = vld [vmem:[%s9 + $0x1c8] sm:$0xf]
        %v3799 = vld [vmem:[%s9 + $0x1cc] sm:$0xf]
        %v3800 = vld [vmem:[%s9 + $0x1d0] sm:$0xf]
        %v3801 = vld [vmem:[%s9 + $0x1d4] sm:$0xf]
        %v3802 = vld [vmem:[%s9 + $0x1d8] sm:$0xf]
        %v3803 = vld [vmem:[%s9 + $0x1dc] sm:$0xf]
        %v3804 = vld [vmem:[%s9 + $0x1e0] sm:$0xf]
        %v3805 = vld [vmem:[%s9 + $0x1e4] sm:$0xf]
        %v3806 = vld [vmem:[%s9 + $0x1e8] sm:$0xf]
        %v3807 = vld [vmem:[%s9 + $0x1ec] sm:$0xf]
        %v3808 = vld [vmem:[%s9 + $0x1f0] sm:$0xf]
        %v3809 = vld [vmem:[%s9 + $0x1f4] sm:$0xf]
        %v3810 = vld [vmem:[%s9 + $0x1f8] sm:$0xf]
        %v3811 = vld [vmem:[%s9 + $0x1fc] sm:$0xf]
        %v3812 = vld [vmem:[%s10] sm:$0x1]
        %v3814 = vlaneseq
        %v3815 = vshrl.u32 %v3814, 7
        %v3816 = vsub.s32 0, %v3815
        %v3817 = vrot.slane %v3812, %v3816
        %v3947 = vunpack.c.l.b16 %v3684
        %v3948 = vunpack.c.l.b16 %v3685
        %v3949 = vunpack.c.l.b16 %v3686
        %v3950 = vunpack.c.l.b16 %v3687
        %v3951 = vunpack.c.l.b16 %v3688
        %v3952 = vunpack.c.l.b16 %v3689
        %v3953 = vunpack.c.l.b16 %v3690
        %v3954 = vunpack.c.l.b16 %v3691
        %v3955 = vunpack.c.l.b16 %v3692
        %v3956 = vunpack.c.l.b16 %v3693
        %v3957 = vunpack.c.l.b16 %v3694
        %v3958 = vunpack.c.l.b16 %v3695
        %v3959 = vunpack.c.l.b16 %v3696
        %v3960 = vunpack.c.l.b16 %v3697
        %v3961 = vunpack.c.l.b16 %v3698
        %v3962 = vunpack.c.l.b16 %v3699
        %v3963 = vunpack.c.l.b16 %v3700
        %v3964 = vunpack.c.l.b16 %v3701
        %v3965 = vunpack.c.l.b16 %v3702
        %v3966 = vunpack.c.l.b16 %v3703
        %v3967 = vunpack.c.l.b16 %v3704
        %v3968 = vunpack.c.l.b16 %v3705
        %v3969 = vunpack.c.l.b16 %v3706
        %v3970 = vunpack.c.l.b16 %v3707
        %v3971 = vunpack.c.l.b16 %v3708
        %v3972 = vunpack.c.l.b16 %v3709
        %v3973 = vunpack.c.l.b16 %v3710
        %v3974 = vunpack.c.l.b16 %v3711
        %v3975 = vunpack.c.l.b16 %v3712
        %v3976 = vunpack.c.l.b16 %v3713
        %v3977 = vunpack.c.l.b16 %v3714
        %v3978 = vunpack.c.l.b16 %v3715
        %v3979 = vunpack.c.l.b16 %v3716
        %v3980 = vunpack.c.l.b16 %v3717
        %v3981 = vunpack.c.l.b16 %v3718
        %v3982 = vunpack.c.l.b16 %v3719
        %v3983 = vunpack.c.l.b16 %v3720
        %v3984 = vunpack.c.l.b16 %v3721
        %v3985 = vunpack.c.l.b16 %v3722
        %v3986 = vunpack.c.l.b16 %v3723
        %v3987 = vunpack.c.l.b16 %v3724
        %v3988 = vunpack.c.l.b16 %v3725
        %v3989 = vunpack.c.l.b16 %v3726
        %v3990 = vunpack.c.l.b16 %v3727
        %v3991 = vunpack.c.l.b16 %v3728
        %v3992 = vunpack.c.l.b16 %v3729
        %v3993 = vunpack.c.l.b16 %v3730
        %v3994 = vunpack.c.l.b16 %v3731
        %v3995 = vunpack.c.l.b16 %v3732
        %v3996 = vunpack.c.l.b16 %v3733
        %v3997 = vunpack.c.l.b16 %v3734
        %v3998 = vunpack.c.l.b16 %v3735
        %v3999 = vunpack.c.l.b16 %v3736
        %v4000 = vunpack.c.l.b16 %v3737
        %v4001 = vunpack.c.l.b16 %v3738
        %v4002 = vunpack.c.l.b16 %v3739
        %v4003 = vunpack.c.l.b16 %v3740
        %v4004 = vunpack.c.l.b16 %v3741
        %v4005 = vunpack.c.l.b16 %v3742
        %v4006 = vunpack.c.l.b16 %v3743
        %v4007 = vunpack.c.l.b16 %v3744
        %v4008 = vunpack.c.l.b16 %v3745
        %v4009 = vunpack.c.l.b16 %v3746
        %v4010 = vunpack.c.l.b16 %v3747
        %v4011 = vunpack.c.l.b16 %v3748
        %v4012 = vunpack.c.l.b16 %v3749
        %v4013 = vunpack.c.l.b16 %v3750
        %v4014 = vunpack.c.l.b16 %v3751
        %v4015 = vunpack.c.l.b16 %v3752
        %v4016 = vunpack.c.l.b16 %v3753
        %v4017 = vunpack.c.l.b16 %v3754
        %v4018 = vunpack.c.l.b16 %v3755
        %v4019 = vunpack.c.l.b16 %v3756
        %v4020 = vunpack.c.l.b16 %v3757
        %v4021 = vunpack.c.l.b16 %v3758
        %v4022 = vunpack.c.l.b16 %v3759
        %v4023 = vunpack.c.l.b16 %v3760
        %v4024 = vunpack.c.l.b16 %v3761
        %v4025 = vunpack.c.l.b16 %v3762
        %v4026 = vunpack.c.l.b16 %v3763
        %v4027 = vunpack.c.l.b16 %v3764
        %v4028 = vunpack.c.l.b16 %v3765
        %v4029 = vunpack.c.l.b16 %v3766
        %v4030 = vunpack.c.l.b16 %v3767
        %v4031 = vunpack.c.l.b16 %v3768
        %v4032 = vunpack.c.l.b16 %v3769
        %v4033 = vunpack.c.l.b16 %v3770
        %v4034 = vunpack.c.l.b16 %v3771
        %v4035 = vunpack.c.l.b16 %v3772
        %v4036 = vunpack.c.l.b16 %v3773
        %v4037 = vunpack.c.l.b16 %v3774
        %v4038 = vunpack.c.l.b16 %v3775
        %v4039 = vunpack.c.l.b16 %v3776
        %v4040 = vunpack.c.l.b16 %v3777
        %v4041 = vunpack.c.l.b16 %v3778
        %v4042 = vunpack.c.l.b16 %v3779
        %v4043 = vunpack.c.l.b16 %v3780
        %v4044 = vunpack.c.l.b16 %v3781
        %v4045 = vunpack.c.l.b16 %v3782
        %v4046 = vunpack.c.l.b16 %v3783
        %v4047 = vunpack.c.l.b16 %v3784
        %v4048 = vunpack.c.l.b16 %v3785
        %v4049 = vunpack.c.l.b16 %v3786
        %v4050 = vunpack.c.l.b16 %v3787
        %v4051 = vunpack.c.l.b16 %v3788
        %v4052 = vunpack.c.l.b16 %v3789
        %v4053 = vunpack.c.l.b16 %v3790
        %v4054 = vunpack.c.l.b16 %v3791
        %v4055 = vunpack.c.l.b16 %v3792
        %v4056 = vunpack.c.l.b16 %v3793
        %v4057 = vunpack.c.l.b16 %v3794
        %v4058 = vunpack.c.l.b16 %v3795
        %v4059 = vunpack.c.l.b16 %v3796
        %v4060 = vunpack.c.l.b16 %v3797
        %v4061 = vunpack.c.l.b16 %v3798
        %v4062 = vunpack.c.l.b16 %v3799
        %v4063 = vunpack.c.l.b16 %v3800
        %v4064 = vunpack.c.l.b16 %v3801
        %v4065 = vunpack.c.l.b16 %v3802
        %v4066 = vunpack.c.l.b16 %v3803
        %v4067 = vunpack.c.l.b16 %v3804
        %v4068 = vunpack.c.l.b16 %v3805
        %v4069 = vunpack.c.l.b16 %v3806
        %v4070 = vunpack.c.l.b16 %v3807
        %v4071 = vunpack.c.l.b16 %v3808
        %v4072 = vunpack.c.l.b16 %v3809
        %v4073 = vunpack.c.l.b16 %v3810
        %v4074 = vunpack.c.l.b16 %v3811
        %v4075 = vpack.c.b16 %v3948, %v3947
        %v4076 = vpack.c.b16 %v3950, %v3949
        %v4077 = vpack.c.b16 %v3952, %v3951
        %v4078 = vpack.c.b16 %v3954, %v3953
        %v4079 = vpack.c.b16 %v3956, %v3955
        %v4080 = vpack.c.b16 %v3958, %v3957
        %v4081 = vpack.c.b16 %v3960, %v3959
        %v4082 = vpack.c.b16 %v3962, %v3961
        %v4083 = vpack.c.b16 %v3964, %v3963
        %v4084 = vpack.c.b16 %v3966, %v3965
        %v4085 = vpack.c.b16 %v3968, %v3967
        %v4086 = vpack.c.b16 %v3970, %v3969
        %v4087 = vpack.c.b16 %v3972, %v3971
        %v4088 = vpack.c.b16 %v3974, %v3973
        %v4089 = vpack.c.b16 %v3976, %v3975
        %v4090 = vpack.c.b16 %v3978, %v3977
        %v4091 = vpack.c.b16 %v3980, %v3979
        %v4092 = vpack.c.b16 %v3982, %v3981
        %v4093 = vpack.c.b16 %v3984, %v3983
        %v4094 = vpack.c.b16 %v3986, %v3985
        %v4095 = vpack.c.b16 %v3988, %v3987
        %v4096 = vpack.c.b16 %v3990, %v3989
        %v4097 = vpack.c.b16 %v3992, %v3991
        %v4098 = vpack.c.b16 %v3994, %v3993
        %v4099 = vpack.c.b16 %v3996, %v3995
        %v4100 = vpack.c.b16 %v3998, %v3997
        %v4101 = vpack.c.b16 %v4000, %v3999
        %v4102 = vpack.c.b16 %v4002, %v4001
        %v4103 = vpack.c.b16 %v4004, %v4003
        %v4104 = vpack.c.b16 %v4006, %v4005
        %v4105 = vpack.c.b16 %v4008, %v4007
        %v4106 = vpack.c.b16 %v4010, %v4009
        %v4107 = vpack.c.b16 %v4012, %v4011
        %v4108 = vpack.c.b16 %v4014, %v4013
        %v4109 = vpack.c.b16 %v4016, %v4015
        %v4110 = vpack.c.b16 %v4018, %v4017
        %v4111 = vpack.c.b16 %v4020, %v4019
        %v4112 = vpack.c.b16 %v4022, %v4021
        %v4113 = vpack.c.b16 %v4024, %v4023
        %v4114 = vpack.c.b16 %v4026, %v4025
        %v4115 = vpack.c.b16 %v4028, %v4027
        %v4116 = vpack.c.b16 %v4030, %v4029
        %v4117 = vpack.c.b16 %v4032, %v4031
        %v4118 = vpack.c.b16 %v4034, %v4033
        %v4119 = vpack.c.b16 %v4036, %v4035
        %v4120 = vpack.c.b16 %v4038, %v4037
        %v4121 = vpack.c.b16 %v4040, %v4039
        %v4122 = vpack.c.b16 %v4042, %v4041
        %v4123 = vpack.c.b16 %v4044, %v4043
        %v4124 = vpack.c.b16 %v4046, %v4045
        %v4125 = vpack.c.b16 %v4048, %v4047
        %v4126 = vpack.c.b16 %v4050, %v4049
        %v4127 = vpack.c.b16 %v4052, %v4051
        %v4128 = vpack.c.b16 %v4054, %v4053
        %v4129 = vpack.c.b16 %v4056, %v4055
        %v4130 = vpack.c.b16 %v4058, %v4057
        %v4131 = vpack.c.b16 %v4060, %v4059
        %v4132 = vpack.c.b16 %v4062, %v4061
        %v4133 = vpack.c.b16 %v4064, %v4063
        %v4134 = vpack.c.b16 %v4066, %v4065
        %v4135 = vpack.c.b16 %v4068, %v4067
        %v4136 = vpack.c.b16 %v4070, %v4069
        %v4137 = vpack.c.b16 %v4072, %v4071
        %v4138 = vpack.c.b16 %v4074, %v4073
        %4203 = vmatprep.subr.bf16.mxu0 0
        %4204 = vmatpush1.bf16.msra.mxu0 %v4075
        %4205 = vmatprep.subr.bf16.mxu0 0
        %4206 = vmatpush1.bf16.msra.mxu0 %v4076
        %4207 = vmatprep.subr.bf16.mxu0 0
        %4208 = vmatpush1.bf16.msra.mxu0 %v4077
        %4209 = vmatprep.subr.bf16.mxu0 0
        %4210 = vmatpush1.bf16.msra.mxu0 %v4078
        %4211 = vmatprep.subr.bf16.mxu0 0
        %4212 = vmatpush1.bf16.msra.mxu0 %v4079
        %4213 = vmatprep.subr.bf16.mxu0 0
        %4214 = vmatpush1.bf16.msra.mxu0 %v4080
        %4215 = vmatprep.subr.bf16.mxu0 0
        %4216 = vmatpush1.bf16.msra.mxu0 %v4081
        %4217 = vmatprep.subr.bf16.mxu0 0
        %4218 = vmatpush1.bf16.msra.mxu0 %v4082
        %4219 = vmatprep.subr.bf16.mxu0 0
        %4220 = vmatpush1.bf16.msra.mxu0 %v4083
        %4221 = vmatprep.subr.bf16.mxu0 0
        %4222 = vmatpush1.bf16.msra.mxu0 %v4084
        %4223 = vmatprep.subr.bf16.mxu0 0
        %4224 = vmatpush1.bf16.msra.mxu0 %v4085
        %4225 = vmatprep.subr.bf16.mxu0 0
        %4226 = vmatpush1.bf16.msra.mxu0 %v4086
        %4227 = vmatprep.subr.bf16.mxu0 0
        %4228 = vmatpush1.bf16.msra.mxu0 %v4087
        %4229 = vmatprep.subr.bf16.mxu0 0
        %4230 = vmatpush1.bf16.msra.mxu0 %v4088
        %4231 = vmatprep.subr.bf16.mxu0 0
        %4232 = vmatpush1.bf16.msra.mxu0 %v4089
        %4233 = vmatprep.subr.bf16.mxu0 0
        %4234 = vmatpush1.bf16.msra.mxu0 %v4090
        %4235 = vmatprep.mubr.bf16.mxu0 %v2539
        %4236 = vmatmul.mubr.bf16.gmra.mrb[0].mxu0 %v2538
        %v4237 = vpop.f32.mrb[0].mxu0
        %v4238 = vadd.f32 %v3817, %v4237
        %v4239 = vpop.f32.mrb[0].mxu0
        %v4240 = vpop.f32.mrb[0].mxu0
        %v4241 = vadd.f32 %v3817, %v4240
        %v4242 = vpop.f32.mrb[0].mxu0
        %4243 = vmatprep.mubr.bf16.mxu0 %v2543
        %4244 = vmatmul.mubr.bf16.gmra.mrb[0].mxu0 %v2542
        %v4245 = vpop.f32.mrb[0].mxu0
        %v4246 = vadd.f32 %v3817, %v4245
        %v4247 = vpop.f32.mrb[0].mxu0
        %v4248 = vpop.f32.mrb[0].mxu0
        %v4249 = vadd.f32 %v3817, %v4248
        %v4250 = vpop.f32.mrb[0].mxu0
        %4251 = vmatprep.mubr.bf16.mxu0 %v2547
        %4252 = vmatmul.mubr.bf16.gmra.mrb[0].mxu0 %v2546
        %v4253 = vpop.f32.mrb[0].mxu0
        %v4254 = vadd.f32 %v3817, %v4253
        %v4255 = vpop.f32.mrb[0].mxu0
        %v4256 = vpop.f32.mrb[0].mxu0
        %v4257 = vadd.f32 %v3817, %v4256
        %v4258 = vpop.f32.mrb[0].mxu0
        %4259 = vmatprep.mubr.bf16.mxu0 %v2551
        %4260 = vmatmul.mubr.bf16.gmra.mrb[0].mxu0 %v2550
        %v4261 = vpop.f32.mrb[0].mxu0
        %v4262 = vadd.f32 %v3817, %v4261
        %v4263 = vpop.f32.mrb[0].mxu0
        %v4264 = vpop.f32.mrb[0].mxu0
        %v4265 = vadd.f32 %v3817, %v4264
        %v4266 = vpop.f32.mrb[0].mxu0
        %4267 = vdwg.mxu0
        %4268 = vmatprep.subr.bf16.mxu0 0
        %4269 = vmatpush1.bf16.msra.mxu0 %v4091
        %4270 = vmatprep.subr.bf16.mxu0 0
        %4271 = vmatpush1.bf16.msra.mxu0 %v4092
        %4272 = vmatprep.subr.bf16.mxu0 0
        %4273 = vmatpush1.bf16.msra.mxu0 %v4093
        %4274 = vmatprep.subr.bf16.mxu0 0
        %4275 = vmatpush1.bf16.msra.mxu0 %v4094
        %4276 = vmatprep.subr.bf16.mxu0 0
        %4277 = vmatpush1.bf16.msra.mxu0 %v4095
        %4278 = vmatprep.subr.bf16.mxu0 0
        %4279 = vmatpush1.bf16.msra.mxu0 %v4096
        %4280 = vmatprep.subr.bf16.mxu0 0
        %4281 = vmatpush1.bf16.msra.mxu0 %v4097
        %4282 = vmatprep.subr.bf16.mxu0 0
        %4283 = vmatpush1.bf16.msra.mxu0 %v4098
        %4284 = vmatprep.subr.bf16.mxu0 0
        %4285 = vmatpush1.bf16.msra.mxu0 %v4099
        %4286 = vmatprep.subr.bf16.mxu0 0
        %4287 = vmatpush1.bf16.msra.mxu0 %v4100
        %4288 = vmatprep.subr.bf16.mxu0 0
        %4289 = vmatpush1.bf16.msra.mxu0 %v4101
        %4290 = vmatprep.subr.bf16.mxu0 0
        %4291 = vmatpush1.bf16.msra.mxu0 %v4102
        %4292 = vmatprep.subr.bf16.mxu0 0
        %4293 = vmatpush1.bf16.msra.mxu0 %v4103
        %4294 = vmatprep.subr.bf16.mxu0 0
        %4295 = vmatpush1.bf16.msra.mxu0 %v4104
        %4296 = vmatprep.subr.bf16.mxu0 0
        %4297 = vmatpush1.bf16.msra.mxu0 %v4105
        %4298 = vmatprep.subr.bf16.mxu0 0
        %4299 = vmatpush1.bf16.msra.mxu0 %v4106
        %4300 = vmatprep.mubr.bf16.mxu0 %v2541
        %4301 = vmatmul.mubr.bf16.gmra.mrb[0].mxu0 %v2540
        %v4302 = vpop.f32.mrb[0].mxu0
        %v4303 = vadd.f32 %v4238, %v4302
        %v4304 = vpop.f32.mrb[0].mxu0
        %v4305 = vpop.f32.mrb[0].mxu0
        %v4306 = vadd.f32 %v4241, %v4305
        %v4307 = vpop.f32.mrb[0].mxu0
        %4308 = vmatprep.mubr.bf16.mxu0 %v2545
        %4309 = vmatmul.mubr.bf16.gmra.mrb[0].mxu0 %v2544
        %v4310 = vpop.f32.mrb[0].mxu0
        %v4311 = vadd.f32 %v4246, %v4310
        %v4312 = vpop.f32.mrb[0].mxu0
        %v4313 = vpop.f32.mrb[0].mxu0
        %v4314 = vadd.f32 %v4249, %v4313
        %v4315 = vpop.f32.mrb[0].mxu0
        %4316 = vmatprep.mubr.bf16.mxu0 %v2549
        %4317 = vmatmul.mubr.bf16.gmra.mrb[0].mxu0 %v2548
        %v4318 = vpop.f32.mrb[0].mxu0
        %v4319 = vadd.f32 %v4254, %v4318
        %v4320 = vpop.f32.mrb[0].mxu0
        %v4321 = vpop.f32.mrb[0].mxu0
        %v4322 = vadd.f32 %v4257, %v4321
        %v4323 = vpop.f32.mrb[0].mxu0
        %4324 = vmatprep.mubr.bf16.mxu0 %v2553
        %4325 = vmatmul.mubr.bf16.gmra.mrb[0].mxu0 %v2552
        %v4326 = vpop.f32.mrb[0].mxu0
        %v4327 = vadd.f32 %v4262, %v4326
        %v4328 = vpop.f32.mrb[0].mxu0
        %v4329 = vpop.f32.mrb[0].mxu0
        %v4330 = vadd.f32 %v4265, %v4329
        %v4331 = vpop.f32.mrb[0].mxu0
        %4332 = vdwg.mxu0
        %4333 = vmatprep.subr.bf16.mxu0 0
        %4334 = vmatpush1.bf16.msra.mxu0 %v4107
        %4335 = vmatprep.subr.bf16.mxu0 0
        %4336 = vmatpush1.bf16.msra.mxu0 %v4108
        %4337 = vmatprep.subr.bf16.mxu0 0
        %4338 = vmatpush1.bf16.msra.mxu0 %v4109
        %4339 = vmatprep.subr.bf16.mxu0 0
        %4340 = vmatpush1.bf16.msra.mxu0 %v4110
        %4341 = vmatprep.subr.bf16.mxu0 0
        %4342 = vmatpush1.bf16.msra.mxu0 %v4111
        %4343 = vmatprep.subr.bf16.mxu0 0
        %4344 = vmatpush1.bf16.msra.mxu0 %v4112
        %4345 = vmatprep.subr.bf16.mxu0 0
        %4346 = vmatpush1.bf16.msra.mxu0 %v4113
        %4347 = vmatprep.subr.bf16.mxu0 0
        %4348 = vmatpush1.bf16.msra.mxu0 %v4114
        %4349 = vmatprep.subr.bf16.mxu0 0
        %4350 = vmatpush1.bf16.msra.mxu0 %v4115
        %4351 = vmatprep.subr.bf16.mxu0 0
        %4352 = vmatpush1.bf16.msra.mxu0 %v4116
        %4353 = vmatprep.subr.bf16.mxu0 0
        %4354 = vmatpush1.bf16.msra.mxu0 %v4117
        %4355 = vmatprep.subr.bf16.mxu0 0
        %4356 = vmatpush1.bf16.msra.mxu0 %v4118
        %4357 = vmatprep.subr.bf16.mxu0 0
        %4358 = vmatpush1.bf16.msra.mxu0 %v4119
        %4359 = vmatprep.subr.bf16.mxu0 0
        %4360 = vmatpush1.bf16.msra.mxu0 %v4120
        %4361 = vmatprep.subr.bf16.mxu0 0
        %4362 = vmatpush1.bf16.msra.mxu0 %v4121
        %4363 = vmatprep.subr.bf16.mxu0 0
        %4364 = vmatpush1.bf16.msra.mxu0 %v4122
        %4365 = vmatprep.mubr.bf16.mxu0 %v3669
        %4366 = vmatmul.mubr.bf16.gmra.mrb[0].mxu0 %v3668
        %v4367 = vpop.f32.mrb[0].mxu0
        %v4368 = vadd.f32 %v4303, %v4367
        %v4369 = vpop.f32.mrb[0].mxu0
        %v4370 = vpop.f32.mrb[0].mxu0
        %v4371 = vadd.f32 %v4306, %v4370
        %v4372 = vpop.f32.mrb[0].mxu0
        %4373 = vmatprep.mubr.bf16.mxu0 %v3673
        %4374 = vmatmul.mubr.bf16.gmra.mrb[0].mxu0 %v3672
        %v4375 = vpop.f32.mrb[0].mxu0
        %v4376 = vadd.f32 %v4311, %v4375
        %v4377 = vpop.f32.mrb[0].mxu0
        %v4378 = vpop.f32.mrb[0].mxu0
        %v4379 = vadd.f32 %v4314, %v4378
        %v4380 = vpop.f32.mrb[0].mxu0
        %4381 = vmatprep.mubr.bf16.mxu0 %v3677
        %4382 = vmatmul.mubr.bf16.gmra.mrb[0].mxu0 %v3676
        %v4383 = vpop.f32.mrb[0].mxu0
        %v4384 = vadd.f32 %v4319, %v4383
        %v4385 = vpop.f32.mrb[0].mxu0
        %v4386 = vpop.f32.mrb[0].mxu0
        %v4387 = vadd.f32 %v4322, %v4386
        %v4388 = vpop.f32.mrb[0].mxu0
        %4389 = vmatprep.mubr.bf16.mxu0 %v3681
        %4390 = vmatmul.mubr.bf16.gmra.mrb[0].mxu0 %v3680
        %v4391 = vpop.f32.mrb[0].mxu0
        %v4392 = vadd.f32 %v4327, %v4391
        %v4393 = vpop.f32.mrb[0].mxu0
        %v4394 = vpop.f32.mrb[0].mxu0
        %v4395 = vadd.f32 %v4330, %v4394
        %v4396 = vpop.f32.mrb[0].mxu0
        %4397 = vdwg.mxu0
        %4398 = vmatprep.subr.bf16.mxu0 0
        %4399 = vmatpush1.bf16.msra.mxu0 %v4123
        %4400 = vmatprep.subr.bf16.mxu0 0
        %4401 = vmatpush1.bf16.msra.mxu0 %v4124
        %4402 = vmatprep.subr.bf16.mxu0 0
        %4403 = vmatpush1.bf16.msra.mxu0 %v4125
        %4404 = vmatprep.subr.bf16.mxu0 0
        %4405 = vmatpush1.bf16.msra.mxu0 %v4126
        %4406 = vmatprep.subr.bf16.mxu0 0
        %4407 = vmatpush1.bf16.msra.mxu0 %v4127
        %4408 = vmatprep.subr.bf16.mxu0 0
        %4409 = vmatpush1.bf16.msra.mxu0 %v4128
        %4410 = vmatprep.subr.bf16.mxu0 0
        %4411 = vmatpush1.bf16.msra.mxu0 %v4129
        %4412 = vmatprep.subr.bf16.mxu0 0
        %4413 = vmatpush1.bf16.msra.mxu0 %v4130
        %4414 = vmatprep.subr.bf16.mxu0 0
        %4415 = vmatpush1.bf16.msra.mxu0 %v4131
        %4416 = vmatprep.subr.bf16.mxu0 0
        %4417 = vmatpush1.bf16.msra.mxu0 %v4132
        %4418 = vmatprep.subr.bf16.mxu0 0
        %4419 = vmatpush1.bf16.msra.mxu0 %v4133
        %4420 = vmatprep.subr.bf16.mxu0 0
        %4421 = vmatpush1.bf16.msra.mxu0 %v4134
        %4422 = vmatprep.subr.bf16.mxu0 0
        %4423 = vmatpush1.bf16.msra.mxu0 %v4135
        %4424 = vmatprep.subr.bf16.mxu0 0
        %4425 = vmatpush1.bf16.msra.mxu0 %v4136
        %4426 = vmatprep.subr.bf16.mxu0 0
        %4427 = vmatpush1.bf16.msra.mxu0 %v4137
        %4428 = vmatprep.subr.bf16.mxu0 0
        %4429 = vmatpush1.bf16.msra.mxu0 %v4138
        %4430 = vmatprep.mubr.bf16.mxu0 %v3671
        %4431 = vmatmul.mubr.bf16.gmra.mrb[0].mxu0 %v3670
        %v4432 = vpop.f32.mrb[0].mxu0
        %v4433 = vadd.f32 %v4368, %v4432
        %v4434 = vpop.f32.mrb[0].mxu0
        %v4435 = vpop.f32.mrb[0].mxu0
        %v4436 = vadd.f32 %v4371, %v4435
        %v4437 = vpop.f32.mrb[0].mxu0
        %4438 = vmatprep.mubr.bf16.mxu0 %v3675
        %4439 = vmatmul.mubr.bf16.gmra.mrb[0].mxu0 %v3674
        %v4440 = vpop.f32.mrb[0].mxu0
        %v4441 = vadd.f32 %v4376, %v4440
        %v4442 = vpop.f32.mrb[0].mxu0
        %v4443 = vpop.f32.mrb[0].mxu0
        %v4444 = vadd.f32 %v4379, %v4443
        %v4445 = vpop.f32.mrb[0].mxu0
        %4446 = vmatprep.mubr.bf16.mxu0 %v3679
        %4447 = vmatmul.mubr.bf16.gmra.mrb[0].mxu0 %v3678
        %v4448 = vpop.f32.mrb[0].mxu0
        %v4449 = vadd.f32 %v4384, %v4448
        %v4450 = vpop.f32.mrb[0].mxu0
        %v4451 = vpop.f32.mrb[0].mxu0
        %v4452 = vadd.f32 %v4387, %v4451
        %v4453 = vpop.f32.mrb[0].mxu0
        %4454 = vmatprep.mubr.bf16.mxu0 %v3683
        %4455 = vmatmul.mubr.bf16.gmra.mrb[0].mxu0 %v3682
        %v4456 = vpop.f32.mrb[0].mxu0
        %v4457 = vadd.f32 %v4392, %v4456
        %v4458 = vpop.f32.mrb[0].mxu0
        %v4459 = vpop.f32.mrb[0].mxu0
        %v4460 = vadd.f32 %v4395, %v4459
        %v4461 = vpop.f32.mrb[0].mxu0
        %4462 = vdwg.mxu0
        %v4463 = vlaneseq
        %v4464 = vand.u32 %v4463, 127
        %vm4465 = vcmp.lt.s32.totalorder %v4464, 24
        %v4466 = vmax.f32 %v4433, 0.0
        %v4467 = vmax.f32 %v4436, 0.0
        %v4468 = vmax.f32 %v4441, 0.0
        %v4469 = vmax.f32 %v4444, 0.0
        %v4470 = vmax.f32 %v4449, 0.0
        %v4471 = vmax.f32 %v4452, 0.0
        %v4472 = vmax.f32 %v4457, 0.0
        %v4473 = vmax.f32 %v4460, 0.0
        %v4474 = vand.u32 2147483647, %v4433
        %v4475 = vand.u32 2147483647, %v4436
        %v4476 = vand.u32 2147483647, %v4441
        %v4477 = vand.u32 2147483647, %v4444
        %v4478 = vand.u32 2147483647, %v4449
        %v4479 = vand.u32 2147483647, %v4452
        %v4480 = vand.u32 2147483647, %v4457
        %v4481 = vand.u32 2147483647, %v4460
        %v4482 = vsub.f32 0.0, %v4474
        %v4483 = vsub.f32 0.0, %v4475
        %v4484 = vsub.f32 0.0, %v4476
        %v4485 = vsub.f32 0.0, %v4477
        %v4486 = vsub.f32 0.0, %v4478
        %v4487 = vsub.f32 0.0, %v4479
        %v4488 = vsub.f32 0.0, %v4480
        %v4489 = vsub.f32 0.0, %v4481
        %v4490 = vmul.f32 %v4482, 1.442695
        %v4491 = vpow.pop %v4490
        %v4492 = vmul.f32 %v4483, 1.442695
        %v4493 = vpow.pop %v4492
        %v4494 = vmul.f32 %v4484, 1.442695
        %v4495 = vpow.pop %v4494
        %v4496 = vmul.f32 %v4485, 1.442695
        %v4497 = vpow.pop %v4496
        %v4498 = vmul.f32 %v4486, 1.442695
        %v4499 = vpow.pop %v4498
        %v4500 = vmul.f32 %v4487, 1.442695
        %v4501 = vpow.pop %v4500
        %v4502 = vmul.f32 %v4488, 1.442695
        %v4503 = vpow.pop %v4502
        %v4504 = vmul.f32 %v4489, 1.442695
        %v4505 = vpow.pop %v4504
        %v4506 = vadd.f32 %v4491, 1.0
        %v4507 = vlog2.pop %v4506
        %v4508 = vmul.f32 %v4507, 0.6931472
        %v4509 = vmul.f32 -0.5, %v4491
        %v4510 = vadd.f32 %v4509, 1.0
        %v4511 = vmul.f32 %v4510, %v4491
        %v4512 = vand.u32 2147483647, %v4491
        %vm4513 = vcmp.lt.f32.partialorder %v4512, 0.0004427343
        %v4514 = vsel %vm4513, %v4511, %v4508
        %v4515 = vadd.f32 %v4493, 1.0
        %v4516 = vlog2.pop %v4515
        %v4517 = vmul.f32 %v4516, 0.6931472
        %v4518 = vmul.f32 -0.5, %v4493
        %v4519 = vadd.f32 %v4518, 1.0
        %v4520 = vmul.f32 %v4519, %v4493
        %v4521 = vand.u32 2147483647, %v4493
        %vm4522 = vcmp.lt.f32.partialorder %v4521, 0.0004427343
        %v4523 = vsel %vm4522, %v4520, %v4517
        %v4524 = vadd.f32 %v4495, 1.0
        %v4525 = vlog2.pop %v4524
        %v4526 = vmul.f32 %v4525, 0.6931472
        %v4527 = vmul.f32 -0.5, %v4495
        %v4528 = vadd.f32 %v4527, 1.0
        %v4529 = vmul.f32 %v4528, %v4495
        %v4530 = vand.u32 2147483647, %v4495
        %vm4531 = vcmp.lt.f32.partialorder %v4530, 0.0004427343
        %v4532 = vsel %vm4531, %v4529, %v4526
        %v4533 = vadd.f32 %v4497, 1.0
        %v4534 = vlog2.pop %v4533
        %v4535 = vmul.f32 %v4534, 0.6931472
        %v4536 = vmul.f32 -0.5, %v4497
        %v4537 = vadd.f32 %v4536, 1.0
        %v4538 = vmul.f32 %v4537, %v4497
        %v4539 = vand.u32 2147483647, %v4497
        %vm4540 = vcmp.lt.f32.partialorder %v4539, 0.0004427343
        %v4541 = vsel %vm4540, %v4538, %v4535
        %v4542 = vadd.f32 %v4499, 1.0
        %v4543 = vlog2.pop %v4542
        %v4544 = vmul.f32 %v4543, 0.6931472
        %v4545 = vmul.f32 -0.5, %v4499
        %v4546 = vadd.f32 %v4545, 1.0
        %v4547 = vmul.f32 %v4546, %v4499
        %v4548 = vand.u32 2147483647, %v4499
        %vm4549 = vcmp.lt.f32.partialorder %v4548, 0.0004427343
        %v4550 = vsel %vm4549, %v4547, %v4544
        %v4551 = vadd.f32 %v4501, 1.0
        %v4552 = vlog2.pop %v4551
        %v4553 = vmul.f32 %v4552, 0.6931472
        %v4554 = vmul.f32 -0.5, %v4501
        %v4555 = vadd.f32 %v4554, 1.0
        %v4556 = vmul.f32 %v4555, %v4501
        %v4557 = vand.u32 2147483647, %v4501
        %vm4558 = vcmp.lt.f32.partialorder %v4557, 0.0004427343
        %v4559 = vsel %vm4558, %v4556, %v4553
        %v4560 = vadd.f32 %v4503, 1.0
        %v4561 = vlog2.pop %v4560
        %v4562 = vmul.f32 %v4561, 0.6931472
        %v4563 = vmul.f32 -0.5, %v4503
        %v4564 = vadd.f32 %v4563, 1.0
        %v4565 = vmul.f32 %v4564, %v4503
        %v4566 = vand.u32 2147483647, %v4503
        %vm4567 = vcmp.lt.f32.partialorder %v4566, 0.0004427343
        %v4568 = vsel %vm4567, %v4565, %v4562
        %v4569 = vadd.f32 %v4505, 1.0
        %v4570 = vlog2.pop %v4569
        %v4571 = vmul.f32 %v4570, 0.6931472
        %v4572 = vmul.f32 -0.5, %v4505
        %v4573 = vadd.f32 %v4572, 1.0
        %v4574 = vmul.f32 %v4573, %v4505
        %v4575 = vand.u32 2147483647, %v4505
        %vm4576 = vcmp.lt.f32.partialorder %v4575, 0.0004427343
        %v4577 = vsel %vm4576, %v4574, %v4571
        %v4578 = vadd.f32 %v4466, %v4514
        %v4579 = vadd.f32 %v4467, %v4523
        %v4580 = vadd.f32 %v4468, %v4532
        %v4581 = vadd.f32 %v4469, %v4541
        %v4582 = vadd.f32 %v4470, %v4550
        %v4583 = vadd.f32 %v4471, %v4559
        %v4584 = vadd.f32 %v4472, %v4568
        %v4585 = vadd.f32 %v4473, %v4577
        %v4586 = vadd.f32 %v4578, 1e-06
        %v4587 = vadd.f32 %v4579, 1e-06
        %v4588 = vadd.f32 %v4580, 1e-06
        %v4589 = vadd.f32 %v4581, 1e-06
        %v4590 = vadd.f32 %v4582, 1e-06
        %v4591 = vadd.f32 %v4583, 1e-06
        %v4592 = vadd.f32 %v4584, 1e-06
        %v4593 = vadd.f32 %v4585, 1e-06
        %v4594 = vsel %vm4465, %v4433, %v4586
        %v4595 = vsel %vm4465, %v4436, %v4587
        %v4596 = vsel %vm4465, %v4441, %v4588
        %v4597 = vsel %vm4465, %v4444, %v4589
        %v4598 = vsel %vm4465, %v4449, %v4590
        %v4599 = vsel %vm4465, %v4452, %v4591
        %v4600 = vsel %vm4465, %v4457, %v4592
        %v4601 = vsel %vm4465, %v4460, %v4593
        %vm4602 = vcmask 392192
        %4603 = vst.msk [vmem:[%s440] sm:$0xff] %vm4602, %v4594
        %4604 = vst.msk [vmem:[%s440 + $0x8] sm:$0xff] %vm4602, %v4595
        %4605 = vst.msk [vmem:[%s440 + $0x10] sm:$0xff] %vm4602, %v4596
        %4606 = vst.msk [vmem:[%s440 + $0x18] sm:$0xff] %vm4602, %v4597
        %4607 = vst.msk [vmem:[%s440 + $0x20] sm:$0xff] %vm4602, %v4598
        %4608 = vst.msk [vmem:[%s440 + $0x28] sm:$0xff] %vm4602, %v4599
        %4609 = vst.msk [vmem:[%s440 + $0x30] sm:$0xff] %vm4602, %v4600
        %4610 = vst.msk [vmem:[%s440 + $0x38] sm:$0xff] %vm4602, %v4601
        %s4611 = smul.u32 8, %s24
        %p4612 = scmp.lt.s32.totalorder %s4611, 31
        %s4613 = scalar_select %p4612, %s4611, 31
        %s4614 = smul.addr %s4613, 8
        %s4615 = scalar_lea.vmem %s11, %s4614
        // Predicated region
        $region73: #{tpu_custom_call.1} parent=63 // pred_check
          %p4616 = pneg %p283
        $region74: #{tpu_custom_call.1} parent=63 // pred_check_branch
          %4618 = sbr.rel (%p4616) target = $region76
        $region75: #{tpu_custom_call.1} parent=63 // pred_region
          %s4619 = smul.u32 8, %s24
        $region76: #{tpu_custom_call.1} parent=63 // pred_fallthru
          _
      $region64: #{tpu_custom_call.1} parent=5 // pred_fallthru
        _
      %p4620 = scmp.le.s32.totalorder 2, %s19
      // Predicated region
      $region77: #{tpu_custom_call.1} parent=5 // pred_check
        %p4621 = pneg %p4620
      $region78: #{tpu_custom_call.1} parent=5 // pred_check_branch
        %4623 = sbr.rel (%p4621) target = $region80
      $region79: #{tpu_custom_call.1} parent=5 // pred_region
        %s4624 = ssub.s32 %s19, 2
        // Predicated region
        $region81: #{tpu_custom_call.1} parent=79 // pred_check
          %p4625 = pneg %p289
        $region82: #{tpu_custom_call.1} parent=79 // pred_check_branch
          %4627 = sbr.rel (%p4625) target = $region84
        $region83: #{tpu_custom_call.1} parent=79 // pred_region
          %s4628 = smul.u32 8, %s25
          %p4629 = scmp.lt.s32.totalorder %s4628, 31
          %s4630 = scalar_select %p4629, %s4628, 31
          %s4631 = smul.addr %s4630, 8
          %s4632 = scalar_lea.vmem %s11, %s4631
        $region84: #{tpu_custom_call.1} parent=79 // pred_fallthru
          _
      $region80: #{tpu_custom_call.1} parent=5 // pred_fallthru
        _
    $region6: #{tpu_custom_call.1} parent=1 // loop_footer
      %s23 = sadd.s32 1, %s19
    $region7: #{tpu_custom_call.1} parent=1 // loop_footer_branch
      %18 = sbr.rel target = $region3
    $region8: #{tpu_custom_call.1} parent=1 // loop_exit
      _
    %4633 = vsyncpa [#allocation3], 1
    %s4634 = scalar_lea.sflag [#allocation3], 1
    %4635 = vsyncpa %s4634, 1
    %4636 = vsyncpa [#allocation5], 1

</llo_original>
